<compile_context>
chip_gen: v5e
topology: v5e:2x2
jax: 0.10.0
libtpu: 0.0.40
codegen_flags: <defaults>
</compile_context>

<pallas_src>
import functools
import math

import jax
import jax.numpy as jnp
from jax.experimental import pallas as pl
from jax.experimental.pallas import tpu as pltpu

LN_EPS = 1e-5                      # XLMRobertaConfig default layer_norm_eps
VMEM_LIMIT = 32 * 1024 * 1024      # explicit scoped-VMEM cap, safe on v5e/v6e/v7x

_MM_PARAMS = pltpu.CompilerParams(
    dimension_semantics=("parallel", "parallel", "arbitrary"),
    vmem_limit_bytes=VMEM_LIMIT)
_LN_PARAMS = pltpu.CompilerParams(
    dimension_semantics=("parallel",),
    vmem_limit_bytes=VMEM_LIMIT)


# ------------------------------ small helpers --------------------------------

def _pick_tile(dim, prefs):
    """Largest preferred tile that divides `dim`, else the full dim (always legal)."""
    for p in prefs:
        if dim >= p and dim % p == 0:
            return p
    return dim


def _layernorm_f32(x, gamma, beta):
    mean = jnp.mean(x, axis=-1, keepdims=True)
    var = jnp.mean(jnp.square(x - mean), axis=-1, keepdims=True)
    return (x - mean) * jax.lax.rsqrt(var + LN_EPS) * gamma + beta


def _gelu(x):
    # TODO(synk): HF XLM-R uses exact erf-based GELU; tanh approximation kept here
    # so the transcendental maps onto the TPU EUP without relying on an erf lowering.
    c = math.sqrt(2.0 / math.pi)
    return 0.5 * x * (1.0 + jnp.tanh(c * (x + 0.044715 * x * x * x)))


def _bf16(x):
    return x if x.dtype == jnp.bfloat16 else x.astype(jnp.bfloat16)


def _mm_tiles(M, N, K, *, full_n=False):
    tm = _pick_tile(M, (512, 256, 128))
    tn = N if full_n else _pick_tile(N, (768, 512, 256, 128))
    tk = K if K <= 768 else _pick_tile(K, (512, 256))
    return tm, tn, tk


# ----------------------- kernel 1: tiled matmul + bias ------------------------

def matmul_bias_kernel(x_ref, w_ref, b_ref, o_ref, acc_ref, *, activation):
    @pl.when(pl.program_id(2) == 0)
    def _():
        acc_ref[...] = jnp.zeros_like(acc_ref)

    # x and w arrive as bf16; accumulate in f32 on the MXU.
    acc_ref[...] += jnp.dot(x_ref[...], w_ref[...],
                            preferred_element_type=jnp.float32)

    @pl.when(pl.program_id(2) == pl.num_programs(2) - 1)
    def _():
        y = acc_ref[...] + b_ref[...].astype(jnp.float32)
        if activation == "gelu":
            y = _gelu(y)
        o_ref[...] = y.astype(o_ref.dtype)


def matmul_bias(x, w, b, *, activation=None, out_dtype=jnp.bfloat16):
    """y = act(x @ w + b).  x: (M, K) bf16, w: (K, N) bf16, b: (1, N) f32."""
    x = _bf16(x)
    M, K = x.shape
    Kw, N = w.shape
    assert K == Kw
    tm, tn, tk = _mm_tiles(M, N, K)
    grid = (M // tm, N // tn, K // tk)
    return pl.pallas_call(
        functools.partial(matmul_bias_kernel, activation=activation),
        out_shape=jax.ShapeDtypeStruct((M, N), out_dtype),
        grid=grid,
        in_specs=[pl.BlockSpec((tm, tk), lambda i, j, k: (i, k)),
                  pl.BlockSpec((tk, tn), lambda i, j, k: (k, j)),
                  pl.BlockSpec((1, tn), lambda i, j, k: (0, j))],
        out_specs=pl.BlockSpec((tm, tn), lambda i, j, k: (i, j)),
        scratch_shapes=[pltpu.VMEM((tm, tn), jnp.float32)],
        compiler_params=_MM_PARAMS,
    )(x, w, b)


# ------------- kernel 1b: matmul + bias + residual + LayerNorm (fused) --------

def matmul_bias_res_ln_kernel(x_ref, w_ref, b_ref, res_ref, g_ref, bt_ref,
                              o_ref, acc_ref):
    @pl.when(pl.program_id(2) == 0)
    def _():
        acc_ref[...] = jnp.zeros_like(acc_ref)

    acc_ref[...] += jnp.dot(x_ref[...], w_ref[...],
                            preferred_element_type=jnp.float32)

    @pl.when(pl.program_id(2) == pl.num_programs(2) - 1)
    def _():
        y = (acc_ref[...]
             + b_ref[...].astype(jnp.float32)
             + res_ref[...].astype(jnp.float32))
        o_ref[...] = _layernorm_f32(y,
                                    g_ref[...].astype(jnp.float32),
                                    bt_ref[...].astype(jnp.float32)
                                    ).astype(o_ref.dtype)


def matmul_bias_res_ln(x, w, b, res, gamma, beta, *, out_dtype=jnp.bfloat16):
    """y = LayerNorm(x @ w + b + res).  Requires full-width output tiles (tn == N)."""
    x = _bf16(x)
    res = _bf16(res)
    M, K = x.shape
    Kw, N = w.shape
    assert K == Kw and res.shape == (M, N)
    tm, tn, tk = _mm_tiles(M, N, K, full_n=True)   # tn == N: LN needs the whole row
    grid = (M // tm, 1, K // tk)
    return pl.pallas_call(
        matmul_bias_res_ln_kernel,
        out_shape=jax.ShapeDtypeStruct((M, N), out_dtype),
        grid=grid,
        in_specs=[pl.BlockSpec((tm, tk), lambda i, j, k: (i, k)),
                  pl.BlockSpec((tk, tn), lambda i, j, k: (k, j)),
                  pl.BlockSpec((1, tn), lambda i, j, k: (0, j)),
                  pl.BlockSpec((tm, tn), lambda i, j, k: (i, j)),
                  pl.BlockSpec((1, tn), lambda i, j, k: (0, j)),
                  pl.BlockSpec((1, tn), lambda i, j, k: (0, j))],
        out_specs=pl.BlockSpec((tm, tn), lambda i, j, k: (i, j)),
        scratch_shapes=[pltpu.VMEM((tm, tn), jnp.float32)],
        compiler_params=_MM_PARAMS,
    )(x, w, b, res, gamma, beta)


# ------------------ kernel 2: flash attention (online softmax) ----------------

def flash_attention_kernel(q_ref, k_ref, v_ref, o_ref, m_sc, l_sc, acc_sc):
    kv = pl.program_id(2)

    @pl.when(kv == 0)
    def _():
        m_sc[...] = jnp.full_like(m_sc, -jnp.inf)
        l_sc[...] = jnp.zeros_like(l_sc)
        acc_sc[...] = jnp.zeros_like(acc_sc)

    # Blocks arrive in (seq, heads, head_dim) layout straight from the QKV matmul
    # output (no HBM transpose); move to head-major in VMEM via the XLU.
    q = pltpu.einshape("qhd->hqd", q_ref[...])        # (nh, tq, hd) bf16
    k = pltpu.einshape("khd->hkd", k_ref[...])        # (nh, tk, hd) bf16
    v = pltpu.einshape("khd->hkd", v_ref[...])        # (nh, tk, hd) bf16

    # 1/sqrt(hd) softmax scale is pre-folded into the Q projection weights.
    s = jnp.einsum("hqd,hkd->hqk", q, k,
                   preferred_element_type=jnp.float32)        # (nh, tq, tk) f32

    m_prev = m_sc[...]
    m_new = jnp.maximum(m_prev, jnp.max(s, axis=-1, keepdims=True))
    alpha = jnp.exp(m_prev - m_new)
    p = jnp.exp(s - m_new)
    l_sc[...] = alpha * l_sc[...] + jnp.sum(p, axis=-1, keepdims=True)
    acc_sc[...] = alpha * acc_sc[...] + jnp.einsum(
        "hqk,hkd->hqd", p.astype(v.dtype), v, preferred_element_type=jnp.float32)
    m_sc[...] = m_new

    @pl.when(kv == pl.num_programs(2) - 1)
    def _():
        o = acc_sc[...] * pl.reciprocal(l_sc[...], approx=True)   # EUP divide
        # Write back in (seq, heads, head_dim) so the (B, S, H) view is free.
        o_ref[...] = pltpu.einshape("hqd->qhd", o).astype(o_ref.dtype)


def flash_attention(qkv5d):
    """qkv5d: (B, S, 3, nh, hd) bf16 -> context (B, S, nh, hd) bf16."""
    B, S, three, nh, hd = qkv5d.shape
    assert three == 3
    # Full-KV blocks for short sequences (single kv step at S <= 512).
    # TODO(synk): on v7x keep B * (S // tq) >= 2 so both TensorCores get work.
    tq = _pick_tile(S, (512, 256, 128))
    tk = _pick_tile(S, (512, 256, 128))
    grid = (B, S // tq, S // tk)
    return pl.pallas_call(
        flash_attention_kernel,
        out_shape=jax.ShapeDtypeStruct((B, S, nh, hd), jnp.bfloat16),
        grid=grid,
        in_specs=[
            pl.BlockSpec((None, tq, None, nh, hd), lambda b, i, j: (b, i, 0, 0, 0)),
            pl.BlockSpec((None, tk, None, nh, hd), lambda b, i, j: (b, j, 1, 0, 0)),
            pl.BlockSpec((None, tk, None, nh, hd), lambda b, i, j: (b, j, 2, 0, 0)),
        ],
        out_specs=pl.BlockSpec((None, tq, nh, hd), lambda b, i, j: (b, i, 0, 0)),
        scratch_shapes=[pltpu.VMEM((nh, tq, 1), jnp.float32),
                        pltpu.VMEM((nh, tq, 1), jnp.float32),
                        pltpu.VMEM((nh, tq, hd), jnp.float32)],
        compiler_params=pltpu.CompilerParams(
            dimension_semantics=("parallel", "parallel", "arbitrary"),
            vmem_limit_bytes=VMEM_LIMIT),
    )(qkv5d, qkv5d, qkv5d)


# ----------------------- kernel 3: LayerNorm (embeddings) ---------------------

def layernorm_kernel(x_ref, g_ref, b_ref, o_ref):
    x = x_ref[...].astype(jnp.float32)
    o_ref[...] = _layernorm_f32(x,
                                g_ref[...].astype(jnp.float32),
                                b_ref[...].astype(jnp.float32)).astype(o_ref.dtype)


def pallas_layernorm(x2d, gamma, beta, *, out_dtype=jnp.bfloat16):
    M, H = x2d.shape
    tr = _pick_tile(M, (512, 256, 128, 8))
    grid = (M // tr,)
    return pl.pallas_call(
        layernorm_kernel,
        out_shape=jax.ShapeDtypeStruct((M, H), out_dtype),
        grid=grid,
        in_specs=[pl.BlockSpec((tr, H), lambda i: (i, 0)),
                  pl.BlockSpec((1, H), lambda i: (0, 0)),
                  pl.BlockSpec((1, H), lambda i: (0, 0))],
        out_specs=pl.BlockSpec((tr, H), lambda i: (i, 0)),
        compiler_params=_LN_PARAMS,
    )(x2d, gamma, beta)


# ------------------------------ encoder forward --------------------------------

def encoder_layer(h2d, lp, B, S, num_heads):
    M, H = h2d.shape
    hd = H // num_heads

    # Fused QKV projection; output viewed as (B, S, 3, nh, hd) with no data movement.
    qkv = matmul_bias(h2d, lp["w_qkv"], lp["b_qkv"])               # (M, 3H) bf16
    qkv5d = qkv.reshape(B, S, 3, num_heads, hd)                    # free reshape
    ctx = flash_attention(qkv5d)                                   # (B, S, nh, hd) bf16
    ctx2d = ctx.reshape(M, H)                                      # free reshape

    # Attention output projection + residual + LayerNorm fused in one kernel.
    x1 = matmul_bias_res_ln(ctx2d, lp["wo"], lp["bo"],
                            h2d, lp["ln1_g"], lp["ln1_b"])         # (M, H) bf16

    ff1 = matmul_bias(x1, lp["w1"], lp["b1"], activation="gelu")   # (M, I) bf16
    # TODO(synk): optional further fusion of FFN1+GELU+FFN2 to keep (M, I) off HBM.
    return matmul_bias_res_ln(ff1, lp["w2"], lp["b2"],
                              x1, lp["ln2_g"], lp["ln2_b"])        # (M, H) bf16


def bert_encoder_forward(params, input_ids, num_heads):
    """Equivalent of BertEncoder.forward -> last_hidden_state (B, S, H)."""
    B, S = input_ids.shape
    H = params["word_emb"].shape[1]
    # XLM-Roberta: padding_idx = 1, positions for non-pad tokens start at 2.
    # TODO(synk): assumes no padding (no attention mask); padded batches need
    #             create_position_ids_from_input_ids + a masked softmax.
    pos_ids = jnp.arange(S, dtype=jnp.int32) + 2
    emb = (params["word_emb"][input_ids]
           + params["pos_emb"][pos_ids][None, :, :]
           + params["tok_emb"][0][None, None, :])                  # token_type_ids == 0
    h2d = pallas_layernorm(emb.reshape(B * S, H),
                           params["emb_ln_g"], params["emb_ln_b"])  # bf16 activations
    # dropout is identity in eval mode; pooler is unused for last_hidden_state.
    for lp in params["layers"]:
        h2d = encoder_layer(h2d, lp, B, S, num_heads)
    return h2d.reshape(B, S, H).astype(jnp.float32)


# ------------------------------ parameter init ---------------------------------

def init_params(key, vocab, max_pos, H, I, num_layers, num_heads,
                w_dtype=jnp.bfloat16):
    std = 0.02
    hd = H // num_heads
    q_scale = 1.0 / math.sqrt(hd)       # softmax scale folded into the Q projection
    keys = jax.random.split(key, 3 + num_layers)
    params = {
        "word_emb": jax.random.normal(keys[0], (vocab, H), jnp.float32) * std,
        "pos_emb": jax.random.normal(keys[1], (max_pos, H), jnp.float32) * std,
        "tok_emb": jax.random.normal(keys[2], (1, H), jnp.float32) * std,
        "emb_ln_g": jnp.ones((1, H), jnp.float32),
        "emb_ln_b": jnp.zeros((1, H), jnp.float32),
        "layers": [],
    }
    for i in range(num_layers):
        lk = jax.random.split(keys[3 + i], 4)
        # Fused [Wq | Wk | Wv] stored as (in, 3*out); columns ordered (3, nh, hd)
        # so the (M, 3H) output reshapes directly to (B, S, 3, nh, hd).
        w_qkv = jax.random.normal(lk[0], (H, 3 * H), jnp.float32) * std
        b_qkv = jnp.zeros((1, 3 * H), jnp.float32)
        w_qkv = w_qkv.at[:, :H].multiply(q_scale)
        b_qkv = b_qkv.at[:, :H].multiply(q_scale)
        layer = {
            "w_qkv": w_qkv.astype(w_dtype),
            "b_qkv": b_qkv,
            "wo": (jax.random.normal(lk[1], (H, H), jnp.float32) * std).astype(w_dtype),
            "bo": jnp.zeros((1, H), jnp.float32),
            "ln1_g": jnp.ones((1, H), jnp.float32),
            "ln1_b": jnp.zeros((1, H), jnp.float32),
            "w1": (jax.random.normal(lk[2], (H, I), jnp.float32) * std).astype(w_dtype),
            "b1": jnp.zeros((1, I), jnp.float32),
            "w2": (jax.random.normal(lk[3], (I, H), jnp.float32) * std).astype(w_dtype),
            "b2": jnp.zeros((1, H), jnp.float32),
            "ln2_g": jnp.ones((1, H), jnp.float32),
            "ln2_b": jnp.zeros((1, H), jnp.float32),
        }
        params["layers"].append(layer)
    return params


# ----------------------------------- main ---------------------------------------

if __name__ == "__main__":
    # Small XLM-Roberta-style config.
    BATCH, SEQ = 2, 8
    HIDDEN, INTER = 32, 64
    NUM_HEADS, NUM_LAYERS = 4, 2
    VOCAB, MAX_POS = 50, 32

    key = jax.random.PRNGKey(0)
    pkey, ikey = jax.random.split(key)
    params = init_params(pkey, VOCAB, MAX_POS, HIDDEN, INTER, NUM_LAYERS, NUM_HEADS)

    # token ids >= 2 (avoid bos=0 / pad=1 for simplicity; no attention mask needed)
    input_ids = jax.random.randint(ikey, (BATCH, SEQ), 2, VOCAB, dtype=jnp.int32)

    fwd = jax.jit(functools.partial(bert_encoder_forward, num_heads=NUM_HEADS))
    out = fwd(params, input_ids)
    out = jax.block_until_ready(out)

    assert out.shape == (BATCH, SEQ, HIDDEN), out.shape
    assert out.dtype == jnp.float32
    assert bool(jnp.all(jnp.isfinite(out)))
    print("KERNEL_OK")
</pallas_src>

<mosaic_0001>
module attributes {stable_mosaic.version = 11 : i64} {
  func.func @matmul_bias_kernel(%arg0: i32, %arg1: i32, %arg2: i32, %arg3: memref<16x32xbf16, #tpu.memory_space<vmem>>, %arg4: memref<32x96xbf16, #tpu.memory_space<vmem>>, %arg5: memref<1x96xf32, #tpu.memory_space<vmem>>, %arg6: memref<16x96xbf16, #tpu.memory_space<vmem>>, %arg7: memref<16x96xf32, #tpu.memory_space<vmem>>) attributes {dimension_semantics = [#tpu.dimension_semantics<parallel>, #tpu.dimension_semantics<parallel>, #tpu.dimension_semantics<arbitrary>], iteration_bounds = array<i64: 1, 1, 1>, scalar_prefetch = 0 : i64, scratch_operands = 1 : i64, tpu.core_type = #tpu.core_type<tc>, window_params = [{transform_indices = @transform_0, window_bounds = array<i64: 16, 32>}, {transform_indices = @transform_1, window_bounds = array<i64: 32, 96>}, {transform_indices = @transform_2, window_bounds = array<i64: 1, 96>}, {transform_indices = @transform_3, window_bounds = array<i64: 16, 96>}]} {
    %c0_i32 = arith.constant 0 : i32
    %0 = arith.cmpi eq, %arg2, %c0_i32 : i32
    %1 = arith.extui %0 : i1 to i32
    %c0_i32_0 = arith.constant 0 : i32
    %2 = arith.cmpi ne, %1, %c0_i32_0 : i32
    scf.if %2 {
      %cst_10 = arith.constant 0.000000e+00 : f32
      %12 = vector.broadcast %cst_10 : f32 to vector<16x96xf32>
      %c0_11 = arith.constant 0 : index
      %c0_12 = arith.constant 0 : index
      %13 = vector.load %arg7[%c0_11, %c0_12] : memref<16x96xf32, #tpu.memory_space<vmem>>, vector<16x96xf32>
      tpu.vector_store %arg7[%c0_11, %c0_12], %12 {strides = array<i32>} : memref<16x96xf32, #tpu.memory_space<vmem>>, vector<16x96xf32>,
    } else {
    }
    %c0 = arith.constant 0 : index
    %c0_1 = arith.constant 0 : index
    %3 = vector.load %arg7[%c0, %c0_1] : memref<16x96xf32, #tpu.memory_space<vmem>>, vector<16x96xf32>
    %c0_2 = arith.constant 0 : index
    %c0_3 = arith.constant 0 : index
    %4 = vector.load %arg3[%c0_2, %c0_3] : memref<16x32xbf16, #tpu.memory_space<vmem>>, vector<16x32xbf16>
    %c0_4 = arith.constant 0 : index
    %c0_5 = arith.constant 0 : index
    %5 = vector.load %arg4[%c0_4, %c0_5] : memref<32x96xbf16, #tpu.memory_space<vmem>>, vector<32x96xbf16>
    %cst = arith.constant dense<0.000000e+00> : vector<16x96xf32>
    %6 = tpu.matmul %4, %5, %cst {dimension_numbers = #tpu.dot_dimension_numbers<[1], [0], [0], [1], [0, 0, 1, 1], [], []>} : vector<16x32xbf16>, vector<32x96xbf16>, vector<16x96xf32> -> vector<16x96xf32>
    %7 = arith.addf %3, %6 : vector<16x96xf32>
    %c0_6 = arith.constant 0 : index
    %c0_7 = arith.constant 0 : index
    %8 = vector.load %arg7[%c0_6, %c0_7] : memref<16x96xf32, #tpu.memory_space<vmem>>, vector<16x96xf32>
    tpu.vector_store %arg7[%c0_6, %c0_7], %7 {strides = array<i32>} : memref<16x96xf32, #tpu.memory_space<vmem>>, vector<16x96xf32>,
    %c0_i32_8 = arith.constant 0 : i32
    %9 = arith.cmpi eq, %arg2, %c0_i32_8 : i32
    %10 = arith.extui %9 : i1 to i32
    %c0_i32_9 = arith.constant 0 : i32
    %11 = arith.cmpi ne, %10, %c0_i32_9 : i32
    scf.if %11 {
      %c0_10 = arith.constant 0 : index
      %c0_11 = arith.constant 0 : index
      %12 = vector.load %arg7[%c0_10, %c0_11] : memref<16x96xf32, #tpu.memory_space<vmem>>, vector<16x96xf32>
      %c0_12 = arith.constant 0 : index
      %c0_13 = arith.constant 0 : index
      %13 = vector.load %arg5[%c0_12, %c0_13] : memref<1x96xf32, #tpu.memory_space<vmem>>, vector<1x96xf32>
      %14 = vector.broadcast %13 : vector<1x96xf32> to vector<16x96xf32>
      %15 = arith.addf %12, %14 : vector<16x96xf32>
      %16 = arith.truncf %15 : vector<16x96xf32> to vector<16x96xbf16>
      %c0_14 = arith.constant 0 : index
      %c0_15 = arith.constant 0 : index
      %17 = vector.load %arg6[%c0_14, %c0_15] : memref<16x96xbf16, #tpu.memory_space<vmem>>, vector<16x96xbf16>
      tpu.vector_store %arg6[%c0_14, %c0_15], %16 {strides = array<i32>} : memref<16x96xbf16, #tpu.memory_space<vmem>>, vector<16x96xbf16>,
    } else {
    }
    return
  }
  func.func @transform_0(%arg0: i32, %arg1: i32, %arg2: i32) -> (i32, i32) {
    %c0_i32 = arith.constant 0 : i32
    return %arg0, %arg2 : i32, i32
  }
  func.func @transform_1(%arg0: i32, %arg1: i32, %arg2: i32) -> (i32, i32) {
    %c0_i32 = arith.constant 0 : i32
    return %arg2, %arg1 : i32, i32
  }
  func.func @transform_2(%arg0: i32, %arg1: i32, %arg2: i32) -> (i32, i32) {
    %c0_i32 = arith.constant 0 : i32
    %c0_i32_0 = arith.constant 0 : i32
    return %c0_i32, %arg1 : i32, i32
  }
  func.func @transform_3(%arg0: i32, %arg1: i32, %arg2: i32) -> (i32, i32) {
    %c0_i32 = arith.constant 0 : i32
    return %arg0, %arg1 : i32, i32
  }
}

module attributes {stable_mosaic.version = 11 : i64} {
  func.func @layernorm_kernel(%arg0: i32, %arg1: memref<8x32xf32, #tpu.memory_space<vmem>>, %arg2: memref<1x32xf32, #tpu.memory_space<vmem>>, %arg3: memref<1x32xf32, #tpu.memory_space<vmem>>, %arg4: memref<8x32xbf16, #tpu.memory_space<vmem>>) attributes {dimension_semantics = [#tpu.dimension_semantics<parallel>], iteration_bounds = array<i64: 2>, scalar_prefetch = 0 : i64, scratch_operands = 0 : i64, tpu.core_type = #tpu.core_type<tc>, window_params = [{transform_indices = @transform_0, window_bounds = array<i64: 8, 32>}, {pipeline_mode = #tpu.pipeline_mode<synchronous>, transform_indices = @transform_1, window_bounds = array<i64: 1, 32>}, {pipeline_mode = #tpu.pipeline_mode<synchronous>, transform_indices = @transform_2, window_bounds = array<i64: 1, 32>}, {transform_indices = @transform_3, window_bounds = array<i64: 8, 32>}]} {
    %c0 = arith.constant 0 : index
    %c0_0 = arith.constant 0 : index
    %0 = vector.load %arg1[%c0, %c0_0] : memref<8x32xf32, #tpu.memory_space<vmem>>, vector<8x32xf32>
    %c0_1 = arith.constant 0 : index
    %c0_2 = arith.constant 0 : index
    %1 = vector.load %arg2[%c0_1, %c0_2] : memref<1x32xf32, #tpu.memory_space<vmem>>, vector<1x32xf32>
    %c0_3 = arith.constant 0 : index
    %c0_4 = arith.constant 0 : index
    %2 = vector.load %arg3[%c0_3, %c0_4] : memref<1x32xf32, #tpu.memory_space<vmem>>, vector<1x32xf32>
    %cst = arith.constant dense<0.000000e+00> : vector<8xf32>
    %3 = vector.multi_reduction <add>, %0, %cst [1] : vector<8x32xf32> to vector<8xf32>
    %4 = vector.shape_cast %3 : vector<8xf32> to vector<8x1xf32>
    %cst_5 = arith.constant 3.200000e+01 : f32
    %5 = vector.broadcast %cst_5 : f32 to vector<8x1xf32>
    %6 = arith.divf %4, %5 : vector<8x1xf32>
    %7 = vector.broadcast %6 : vector<8x1xf32> to vector<8x32xf32>
    %8 = arith.subf %0, %7 : vector<8x32xf32>
    %9 = arith.mulf %8, %8 : vector<8x32xf32>
    %cst_6 = arith.constant dense<0.000000e+00> : vector<8xf32>
    %10 = vector.multi_reduction <add>, %9, %cst_6 [1] : vector<8x32xf32> to vector<8xf32>
    %11 = vector.shape_cast %10 : vector<8xf32> to vector<8x1xf32>
    %cst_7 = arith.constant 3.200000e+01 : f32
    %12 = vector.broadcast %cst_7 : f32 to vector<8x1xf32>
    %13 = arith.divf %11, %12 : vector<8x1xf32>
    %14 = vector.broadcast %6 : vector<8x1xf32> to vector<8x32xf32>
    %15 = arith.subf %0, %14 : vector<8x32xf32>
    %cst_8 = arith.constant 9.99999974E-6 : f32
    %16 = vector.broadcast %cst_8 : f32 to vector<8x1xf32>
    %17 = arith.addf %13, %16 : vector<8x1xf32>
    %18 = math.rsqrt %17 : vector<8x1xf32>
    %19 = vector.broadcast %18 : vector<8x1xf32> to vector<8x32xf32>
    %20 = arith.mulf %15, %19 : vector<8x32xf32>
    %21 = vector.broadcast %1 : vector<1x32xf32> to vector<8x32xf32>
    %22 = arith.mulf %20, %21 : vector<8x32xf32>
    %23 = vector.broadcast %2 : vector<1x32xf32> to vector<8x32xf32>
    %24 = arith.addf %22, %23 : vector<8x32xf32>
    %25 = arith.truncf %24 : vector<8x32xf32> to vector<8x32xbf16>
    %c0_9 = arith.constant 0 : index
    %c0_10 = arith.constant 0 : index
    %26 = vector.load %arg4[%c0_9, %c0_10] : memref<8x32xbf16, #tpu.memory_space<vmem>>, vector<8x32xbf16>
    tpu.vector_store %arg4[%c0_9, %c0_10], %25 {strides = array<i32>} : memref<8x32xbf16, #tpu.memory_space<vmem>>, vector<8x32xbf16>,
    return
  }
  func.func @transform_0(%arg0: i32) -> (i32, i32) {
    %c0_i32 = arith.constant 0 : i32
    %c0_i32_0 = arith.constant 0 : i32
    return %arg0, %c0_i32 : i32, i32
  }
  func.func @transform_1(%arg0: i32) -> (i32, i32) {
    %c0_i32 = arith.constant 0 : i32
    %c0_i32_0 = arith.constant 0 : i32
    %c0_i32_1 = arith.constant 0 : i32
    return %c0_i32, %c0_i32_0 : i32, i32
  }
  func.func @transform_2(%arg0: i32) -> (i32, i32) {
    %c0_i32 = arith.constant 0 : i32
    %c0_i32_0 = arith.constant 0 : i32
    %c0_i32_1 = arith.constant 0 : i32
    return %c0_i32, %c0_i32_0 : i32, i32
  }
  func.func @transform_3(%arg0: i32) -> (i32, i32) {
    %c0_i32 = arith.constant 0 : i32
    %c0_i32_0 = arith.constant 0 : i32
    return %arg0, %c0_i32 : i32, i32
  }
}

module attributes {stable_mosaic.version = 11 : i64} {
  func.func @flash_attention_kernel(%arg0: i32, %arg1: i32, %arg2: i32, %arg3: memref<1x8x1x4x8xbf16, #tpu.memory_space<vmem>>, %arg4: memref<1x8x1x4x8xbf16, #tpu.memory_space<vmem>>, %arg5: memref<1x8x1x4x8xbf16, #tpu.memory_space<vmem>>, %arg6: memref<1x8x4x8xbf16, #tpu.memory_space<vmem>>, %arg7: memref<4x8x1xf32, #tpu.memory_space<vmem>>, %arg8: memref<4x8x1xf32, #tpu.memory_space<vmem>>, %arg9: memref<4x8x8xf32, #tpu.memory_space<vmem>>) attributes {dimension_semantics = [#tpu.dimension_semantics<parallel>, #tpu.dimension_semantics<parallel>, #tpu.dimension_semantics<arbitrary>], iteration_bounds = array<i64: 2, 1, 1>, scalar_prefetch = 0 : i64, scratch_operands = 3 : i64, tpu.core_type = #tpu.core_type<tc>, window_params = [{transform_indices = @transform_0, window_bounds = array<i64: 1, 8, 1, 4, 8>}, {transform_indices = @transform_1, window_bounds = array<i64: 1, 8, 1, 4, 8>}, {transform_indices = @transform_2, window_bounds = array<i64: 1, 8, 1, 4, 8>}, {transform_indices = @transform_3, window_bounds = array<i64: 1, 8, 4, 8>}]} {
    %c0_i32 = arith.constant 0 : i32
    %0 = arith.cmpi eq, %arg2, %c0_i32 : i32
    %1 = arith.extui %0 : i1 to i32
    %c0_i32_0 = arith.constant 0 : i32
    %2 = arith.cmpi ne, %1, %c0_i32_0 : i32
    scf.if %2 {
      %cst_38 = arith.constant 0xFF800000 : f32
      %39 = vector.broadcast %cst_38 : f32 to vector<4x8x1xf32>
      %c0_39 = arith.constant 0 : index
      %c0_40 = arith.constant 0 : index
      %c0_41 = arith.constant 0 : index
      %40 = vector.load %arg7[%c0_39, %c0_40, %c0_41] : memref<4x8x1xf32, #tpu.memory_space<vmem>>, vector<4x8x1xf32>
      tpu.vector_store %arg7[%c0_39, %c0_40, %c0_41], %39 {strides = array<i32>} : memref<4x8x1xf32, #tpu.memory_space<vmem>>, vector<4x8x1xf32>,
      %cst_42 = arith.constant 0.000000e+00 : f32
      %41 = vector.broadcast %cst_42 : f32 to vector<4x8x1xf32>
      %c0_43 = arith.constant 0 : index
      %c0_44 = arith.constant 0 : index
      %c0_45 = arith.constant 0 : index
      %42 = vector.load %arg8[%c0_43, %c0_44, %c0_45] : memref<4x8x1xf32, #tpu.memory_space<vmem>>, vector<4x8x1xf32>
      tpu.vector_store %arg8[%c0_43, %c0_44, %c0_45], %41 {strides = array<i32>} : memref<4x8x1xf32, #tpu.memory_space<vmem>>, vector<4x8x1xf32>,
      %cst_46 = arith.constant 0.000000e+00 : f32
      %43 = vector.broadcast %cst_46 : f32 to vector<4x8x8xf32>
      %c0_47 = arith.constant 0 : index
      %c0_48 = arith.constant 0 : index
      %c0_49 = arith.constant 0 : index
      %44 = vector.load %arg9[%c0_47, %c0_48, %c0_49] : memref<4x8x8xf32, #tpu.memory_space<vmem>>, vector<4x8x8xf32>
      tpu.vector_store %arg9[%c0_47, %c0_48, %c0_49], %43 {strides = array<i32>} : memref<4x8x8xf32, #tpu.memory_space<vmem>>, vector<4x8x8xf32>,
    } else {
    }
    %c0 = arith.constant 0 : index
    %c0_1 = arith.constant 0 : index
    %c0_2 = arith.constant 0 : index
    %c0_3 = arith.constant 0 : index
    %c0_4 = arith.constant 0 : index
    %3 = vector.load %arg3[%c0, %c0_1, %c0_2, %c0_3, %c0_4] : memref<1x8x1x4x8xbf16, #tpu.memory_space<vmem>>, vector<1x8x1x4x8xbf16>
    %4 = vector.shape_cast %3 : vector<1x8x1x4x8xbf16> to vector<8x4x8xbf16>
    %5 = tpu.transpose %4, [1, 0, 2] : vector<8x4x8xbf16> -> vector<4x8x8xbf16>
    %c0_5 = arith.constant 0 : index
    %c0_6 = arith.constant 0 : index
    %c0_7 = arith.constant 0 : index
    %c0_8 = arith.constant 0 : index
    %c0_9 = arith.constant 0 : index
    %6 = vector.load %arg4[%c0_5, %c0_6, %c0_7, %c0_8, %c0_9] : memref<1x8x1x4x8xbf16, #tpu.memory_space<vmem>>, vector<1x8x1x4x8xbf16>
    %7 = vector.shape_cast %6 : vector<1x8x1x4x8xbf16> to vector<8x4x8xbf16>
    %8 = tpu.transpose %7, [1, 0, 2] : vector<8x4x8xbf16> -> vector<4x8x8xbf16>
    %c0_10 = arith.constant 0 : index
    %c0_11 = arith.constant 0 : index
    %c0_12 = arith.constant 0 : index
    %c0_13 = arith.constant 0 : index
    %c0_14 = arith.constant 0 : index
    %9 = vector.load %arg5[%c0_10, %c0_11, %c0_12, %c0_13, %c0_14] : memref<1x8x1x4x8xbf16, #tpu.memory_space<vmem>>, vector<1x8x1x4x8xbf16>
    %10 = vector.shape_cast %9 : vector<1x8x1x4x8xbf16> to vector<8x4x8xbf16>
    %11 = tpu.transpose %10, [1, 0, 2] : vector<8x4x8xbf16> -> vector<4x8x8xbf16>
    "tpu.trace_start"() <{level = 10 : i32, message = "hqd,hkd->hqk"}> : () -> ()
    %cst = arith.constant dense<0.000000e+00> : vector<4x8x8xf32>
    %12 = tpu.matmul %5, %8, %cst {dimension_numbers = #tpu.dot_dimension_numbers<[2], [2], [1], [1], [0, 0, 0, 1, 1, 1], [0], [0]>} : vector<4x8x8xbf16>, vector<4x8x8xbf16>, vector<4x8x8xf32> -> vector<4x8x8xf32>
    "tpu.trace_stop"() : () -> ()
    %c0_15 = arith.constant 0 : index
    %c0_16 = arith.constant 0 : index
    %c0_17 = arith.constant 0 : index
    %13 = vector.load %arg7[%c0_15, %c0_16, %c0_17] : memref<4x8x1xf32, #tpu.memory_space<vmem>>, vector<4x8x1xf32>
    %cst_18 = arith.constant dense<0xFF800000> : vector<4x8xf32>
    %14 = vector.multi_reduction <maximumf>, %12, %cst_18 [2] : vector<4x8x8xf32> to vector<4x8xf32>
    %15 = vector.shape_cast %14 : vector<4x8xf32> to vector<4x8x1xf32>
    %16 = arith.maximumf %13, %15 : vector<4x8x1xf32>
    %17 = arith.subf %13, %16 : vector<4x8x1xf32>
    %18 = math.exp %17 : vector<4x8x1xf32>
    %19 = vector.broadcast %16 : vector<4x8x1xf32> to vector<4x8x8xf32>
    %20 = arith.subf %12, %19 : vector<4x8x8xf32>
    %21 = math.exp %20 : vector<4x8x8xf32>
    %c0_19 = arith.constant 0 : index
    %c0_20 = arith.constant 0 : index
    %c0_21 = arith.constant 0 : index
    %22 = vector.load %arg8[%c0_19, %c0_20, %c0_21] : memref<4x8x1xf32, #tpu.memory_space<vmem>>, vector<4x8x1xf32>
    %23 = arith.mulf %18, %22 : vector<4x8x1xf32>
    %cst_22 = arith.constant dense<0.000000e+00> : vector<4x8xf32>
    %24 = vector.multi_reduction <add>, %21, %cst_22 [2] : vector<4x8x8xf32> to vector<4x8xf32>
    %25 = vector.shape_cast %24 : vector<4x8xf32> to vector<4x8x1xf32>
    %26 = arith.addf %23, %25 : vector<4x8x1xf32>
    %c0_23 = arith.constant 0 : index
    %c0_24 = arith.constant 0 : index
    %c0_25 = arith.constant 0 : index
    %27 = vector.load %arg8[%c0_23, %c0_24, %c0_25] : memref<4x8x1xf32, #tpu.memory_space<vmem>>, vector<4x8x1xf32>
    tpu.vector_store %arg8[%c0_23, %c0_24, %c0_25], %26 {strides = array<i32>} : memref<4x8x1xf32, #tpu.memory_space<vmem>>, vector<4x8x1xf32>,
    %c0_26 = arith.constant 0 : index
    %c0_27 = arith.constant 0 : index
    %c0_28 = arith.constant 0 : index
    %28 = vector.load %arg9[%c0_26, %c0_27, %c0_28] : memref<4x8x8xf32, #tpu.memory_space<vmem>>, vector<4x8x8xf32>
    %29 = vector.broadcast %18 : vector<4x8x1xf32> to vector<4x8x8xf32>
    %30 = arith.mulf %29, %28 : vector<4x8x8xf32>
    %31 = arith.truncf %21 : vector<4x8x8xf32> to vector<4x8x8xbf16>
    "tpu.trace_start"() <{level = 10 : i32, message = "hqk,hkd->hqd"}> : () -> ()
    %cst_29 = arith.constant dense<0.000000e+00> : vector<4x8x8xf32>
    %32 = tpu.matmul %31, %11, %cst_29 {dimension_numbers = #tpu.dot_dimension_numbers<[2], [1], [1], [2], [0, 0, 0, 1, 1, 2], [0], [0]>} : vector<4x8x8xbf16>, vector<4x8x8xbf16>, vector<4x8x8xf32> -> vector<4x8x8xf32>
    "tpu.trace_stop"() : () -> ()
    %33 = arith.addf %30, %32 : vector<4x8x8xf32>
    %c0_30 = arith.constant 0 : index
    %c0_31 = arith.constant 0 : index
    %c0_32 = arith.constant 0 : index
    %34 = vector.load %arg9[%c0_30, %c0_31, %c0_32] : memref<4x8x8xf32, #tpu.memory_space<vmem>>, vector<4x8x8xf32>
    tpu.vector_store %arg9[%c0_30, %c0_31, %c0_32], %33 {strides = array<i32>} : memref<4x8x8xf32, #tpu.memory_space<vmem>>, vector<4x8x8xf32>,
    %c0_33 = arith.constant 0 : index
    %c0_34 = arith.constant 0 : index
    %c0_35 = arith.constant 0 : index
    %35 = vector.load %arg7[%c0_33, %c0_34, %c0_35] : memref<4x8x1xf32, #tpu.memory_space<vmem>>, vector<4x8x1xf32>
    tpu.vector_store %arg7[%c0_33, %c0_34, %c0_35], %16 {strides = array<i32>} : memref<4x8x1xf32, #tpu.memory_space<vmem>>, vector<4x8x1xf32>,
    %c0_i32_36 = arith.constant 0 : i32
    %36 = arith.cmpi eq, %arg2, %c0_i32_36 : i32
    %37 = arith.extui %36 : i1 to i32
    %c0_i32_37 = arith.constant 0 : i32
    %38 = arith.cmpi ne, %37, %c0_i32_37 : i32
    scf.if %38 {
      %c0_38 = arith.constant 0 : index
      %c0_39 = arith.constant 0 : index
      %c0_40 = arith.constant 0 : index
      %39 = vector.load %arg9[%c0_38, %c0_39, %c0_40] : memref<4x8x8xf32, #tpu.memory_space<vmem>>, vector<4x8x8xf32>
      %c0_41 = arith.constant 0 : index
      %c0_42 = arith.constant 0 : index
      %c0_43 = arith.constant 0 : index
      %40 = vector.load %arg8[%c0_41, %c0_42, %c0_43] : memref<4x8x1xf32, #tpu.memory_space<vmem>>, vector<4x8x1xf32>
      %41 = tpu.reciprocal %40 {approx = true} : vector<4x8x1xf32> -> vector<4x8x1xf32>
      %42 = vector.broadcast %41 : vector<4x8x1xf32> to vector<4x8x8xf32>
      %43 = arith.mulf %39, %42 : vector<4x8x8xf32>
      %44 = tpu.transpose %43, [1, 0, 2] : vector<4x8x8xf32> -> vector<8x4x8xf32>
      %45 = arith.truncf %44 : vector<8x4x8xf32> to vector<8x4x8xbf16>
      %c0_44 = arith.constant 0 : index
      %c0_45 = arith.constant 0 : index
      %c0_46 = arith.constant 0 : index
      %c0_47 = arith.constant 0 : index
      %46 = vector.load %arg6[%c0_44, %c0_45, %c0_46, %c0_47] : memref<1x8x4x8xbf16, #tpu.memory_space<vmem>>, vector<1x8x4x8xbf16>
      %47 = vector.shape_cast %46 : vector<1x8x4x8xbf16> to vector<8x4x8xbf16>
      %48 = vector.shape_cast %45 : vector<8x4x8xbf16> to vector<1x8x4x8xbf16>
      tpu.vector_store %arg6[%c0_44, %c0_45, %c0_46, %c0_47], %48 {strides = array<i32>} : memref<1x8x4x8xbf16, #tpu.memory_space<vmem>>, vector<1x8x4x8xbf16>,
    } else {
    }
    return
  }
  func.func @transform_0(%arg0: i32, %arg1: i32, %arg2: i32) -> (i32, i32, i32, i32, i32) {
    %c0_i32 = arith.constant 0 : i32
    %c0_i32_0 = arith.constant 0 : i32
    %c0_i32_1 = arith.constant 0 : i32
    %c0_i32_2 = arith.constant 0 : i32
    return %arg0, %arg1, %c0_i32, %c0_i32_0, %c0_i32_1 : i32, i32, i32, i32, i32
  }
  func.func @transform_1(%arg0: i32, %arg1: i32, %arg2: i32) -> (i32, i32, i32, i32, i32) {
    %c1_i32 = arith.constant 1 : i32
    %c0_i32 = arith.constant 0 : i32
    %c0_i32_0 = arith.constant 0 : i32
    %c0_i32_1 = arith.constant 0 : i32
    return %arg0, %arg2, %c1_i32, %c0_i32, %c0_i32_0 : i32, i32, i32, i32, i32
  }
  func.func @transform_2(%arg0: i32, %arg1: i32, %arg2: i32) -> (i32, i32, i32, i32, i32) {
    %c2_i32 = arith.constant 2 : i32
    %c0_i32 = arith.constant 0 : i32
    %c0_i32_0 = arith.constant 0 : i32
    %c0_i32_1 = arith.constant 0 : i32
    return %arg0, %arg2, %c2_i32, %c0_i32, %c0_i32_0 : i32, i32, i32, i32, i32
  }
  func.func @transform_3(%arg0: i32, %arg1: i32, %arg2: i32) -> (i32, i32, i32, i32) {
    %c0_i32 = arith.constant 0 : i32
    %c0_i32_0 = arith.constant 0 : i32
    %c0_i32_1 = arith.constant 0 : i32
    return %arg0, %arg1, %c0_i32, %c0_i32_0 : i32, i32, i32, i32
  }
}

module attributes {stable_mosaic.version = 11 : i64} {
  func.func @matmul_bias_res_ln_kernel(%arg0: i32, %arg1: i32, %arg2: i32, %arg3: memref<16x32xbf16, #tpu.memory_space<vmem>>, %arg4: memref<32x32xbf16, #tpu.memory_space<vmem>>, %arg5: memref<1x32xf32, #tpu.memory_space<vmem>>, %arg6: memref<16x32xbf16, #tpu.memory_space<vmem>>, %arg7: memref<1x32xf32, #tpu.memory_space<vmem>>, %arg8: memref<1x32xf32, #tpu.memory_space<vmem>>, %arg9: memref<16x32xbf16, #tpu.memory_space<vmem>>, %arg10: memref<16x32xf32, #tpu.memory_space<vmem>>) attributes {dimension_semantics = [#tpu.dimension_semantics<parallel>, #tpu.dimension_semantics<parallel>, #tpu.dimension_semantics<arbitrary>], iteration_bounds = array<i64: 1, 1, 1>, scalar_prefetch = 0 : i64, scratch_operands = 1 : i64, tpu.core_type = #tpu.core_type<tc>, window_params = [{transform_indices = @transform_0, window_bounds = array<i64: 16, 32>}, {transform_indices = @transform_1, window_bounds = array<i64: 32, 32>}, {transform_indices = @transform_2, window_bounds = array<i64: 1, 32>}, {transform_indices = @transform_3, window_bounds = array<i64: 16, 32>}, {transform_indices = @transform_4, window_bounds = array<i64: 1, 32>}, {transform_indices = @transform_5, window_bounds = array<i64: 1, 32>}, {transform_indices = @transform_6, window_bounds = array<i64: 16, 32>}]} {
    %c0_i32 = arith.constant 0 : i32
    %0 = arith.cmpi eq, %arg2, %c0_i32 : i32
    %1 = arith.extui %0 : i1 to i32
    %c0_i32_0 = arith.constant 0 : i32
    %2 = arith.cmpi ne, %1, %c0_i32_0 : i32
    scf.if %2 {
      %cst_10 = arith.constant 0.000000e+00 : f32
      %12 = vector.broadcast %cst_10 : f32 to vector<16x32xf32>
      %c0_11 = arith.constant 0 : index
      %c0_12 = arith.constant 0 : index
      %13 = vector.load %arg10[%c0_11, %c0_12] : memref<16x32xf32, #tpu.memory_space<vmem>>, vector<16x32xf32>
      tpu.vector_store %arg10[%c0_11, %c0_12], %12 {strides = array<i32>} : memref<16x32xf32, #tpu.memory_space<vmem>>, vector<16x32xf32>,
    } else {
    }
    %c0 = arith.constant 0 : index
    %c0_1 = arith.constant 0 : index
    %3 = vector.load %arg10[%c0, %c0_1] : memref<16x32xf32, #tpu.memory_space<vmem>>, vector<16x32xf32>
    %c0_2 = arith.constant 0 : index
    %c0_3 = arith.constant 0 : index
    %4 = vector.load %arg3[%c0_2, %c0_3] : memref<16x32xbf16, #tpu.memory_space<vmem>>, vector<16x32xbf16>
    %c0_4 = arith.constant 0 : index
    %c0_5 = arith.constant 0 : index
    %5 = vector.load %arg4[%c0_4, %c0_5] : memref<32x32xbf16, #tpu.memory_space<vmem>>, vector<32x32xbf16>
    %cst = arith.constant dense<0.000000e+00> : vector<16x32xf32>
    %6 = tpu.matmul %4, %5, %cst {dimension_numbers = #tpu.dot_dimension_numbers<[1], [0], [0], [1], [0, 0, 1, 1], [], []>} : vector<16x32xbf16>, vector<32x32xbf16>, vector<16x32xf32> -> vector<16x32xf32>
    %7 = arith.addf %3, %6 : vector<16x32xf32>
    %c0_6 = arith.constant 0 : index
    %c0_7 = arith.constant 0 : index
    %8 = vector.load %arg10[%c0_6, %c0_7] : memref<16x32xf32, #tpu.memory_space<vmem>>, vector<16x32xf32>
    tpu.vector_store %arg10[%c0_6, %c0_7], %7 {strides = array<i32>} : memref<16x32xf32, #tpu.memory_space<vmem>>, vector<16x32xf32>,
    %c0_i32_8 = arith.constant 0 : i32
    %9 = arith.cmpi eq, %arg2, %c0_i32_8 : i32
    %10 = arith.extui %9 : i1 to i32
    %c0_i32_9 = arith.constant 0 : i32
    %11 = arith.cmpi ne, %10, %c0_i32_9 : i32
    scf.if %11 {
      %c0_10 = arith.constant 0 : index
      %c0_11 = arith.constant 0 : index
      %12 = vector.load %arg10[%c0_10, %c0_11] : memref<16x32xf32, #tpu.memory_space<vmem>>, vector<16x32xf32>
      %c0_12 = arith.constant 0 : index
      %c0_13 = arith.constant 0 : index
      %13 = vector.load %arg5[%c0_12, %c0_13] : memref<1x32xf32, #tpu.memory_space<vmem>>, vector<1x32xf32>
      %14 = vector.broadcast %13 : vector<1x32xf32> to vector<16x32xf32>
      %15 = arith.addf %12, %14 : vector<16x32xf32>
      %c0_14 = arith.constant 0 : index
      %c0_15 = arith.constant 0 : index
      %16 = vector.load %arg6[%c0_14, %c0_15] : memref<16x32xbf16, #tpu.memory_space<vmem>>, vector<16x32xbf16>
      %17 = arith.extf %16 : vector<16x32xbf16> to vector<16x32xf32>
      %18 = arith.addf %15, %17 : vector<16x32xf32>
      %c0_16 = arith.constant 0 : index
      %c0_17 = arith.constant 0 : index
      %19 = vector.load %arg7[%c0_16, %c0_17] : memref<1x32xf32, #tpu.memory_space<vmem>>, vector<1x32xf32>
      %c0_18 = arith.constant 0 : index
      %c0_19 = arith.constant 0 : index
      %20 = vector.load %arg8[%c0_18, %c0_19] : memref<1x32xf32, #tpu.memory_space<vmem>>, vector<1x32xf32>
      %cst_20 = arith.constant dense<0.000000e+00> : vector<16xf32>
      %21 = vector.multi_reduction <add>, %18, %cst_20 [1] : vector<16x32xf32> to vector<16xf32>
      %22 = vector.shape_cast %21 : vector<16xf32> to vector<16x1xf32>
      %cst_21 = arith.constant 3.200000e+01 : f32
      %23 = vector.broadcast %cst_21 : f32 to vector<16x1xf32>
      %24 = arith.divf %22, %23 : vector<16x1xf32>
      %25 = vector.broadcast %24 : vector<16x1xf32> to vector<16x32xf32>
      %26 = arith.subf %18, %25 : vector<16x32xf32>
      %27 = arith.mulf %26, %26 : vector<16x32xf32>
      %cst_22 = arith.constant dense<0.000000e+00> : vector<16xf32>
      %28 = vector.multi_reduction <add>, %27, %cst_22 [1] : vector<16x32xf32> to vector<16xf32>
      %29 = vector.shape_cast %28 : vector<16xf32> to vector<16x1xf32>
      %cst_23 = arith.constant 3.200000e+01 : f32
      %30 = vector.broadcast %cst_23 : f32 to vector<16x1xf32>
      %31 = arith.divf %29, %30 : vector<16x1xf32>
      %32 = vector.broadcast %24 : vector<16x1xf32> to vector<16x32xf32>
      %33 = arith.subf %18, %32 : vector<16x32xf32>
      %cst_24 = arith.constant 9.99999974E-6 : f32
      %34 = vector.broadcast %cst_24 : f32 to vector<16x1xf32>
      %35 = arith.addf %31, %34 : vector<16x1xf32>
      %36 = math.rsqrt %35 : vector<16x1xf32>
      %37 = vector.broadcast %36 : vector<16x1xf32> to vector<16x32xf32>
      %38 = arith.mulf %33, %37 : vector<16x32xf32>
      %39 = vector.broadcast %19 : vector<1x32xf32> to vector<16x32xf32>
      %40 = arith.mulf %38, %39 : vector<16x32xf32>
      %41 = vector.broadcast %20 : vector<1x32xf32> to vector<16x32xf32>
      %42 = arith.addf %40, %41 : vector<16x32xf32>
      %43 = arith.truncf %42 : vector<16x32xf32> to vector<16x32xbf16>
      %c0_25 = arith.constant 0 : index
      %c0_26 = arith.constant 0 : index
      %44 = vector.load %arg9[%c0_25, %c0_26] : memref<16x32xbf16, #tpu.memory_space<vmem>>, vector<16x32xbf16>
      tpu.vector_store %arg9[%c0_25, %c0_26], %43 {strides = array<i32>} : memref<16x32xbf16, #tpu.memory_space<vmem>>, vector<16x32xbf16>,
    } else {
    }
    return
  }
  func.func @transform_0(%arg0: i32, %arg1: i32, %arg2: i32) -> (i32, i32) {
    %c0_i32 = arith.constant 0 : i32
    return %arg0, %arg2 : i32, i32
  }
  func.func @transform_1(%arg0: i32, %arg1: i32, %arg2: i32) -> (i32, i32) {
    %c0_i32 = arith.constant 0 : i32
    return %arg2, %arg1 : i32, i32
  }
  func.func @transform_2(%arg0: i32, %arg1: i32, %arg2: i32) -> (i32, i32) {
    %c0_i32 = arith.constant 0 : i32
    %c0_i32_0 = arith.constant 0 : i32
    return %c0_i32, %arg1 : i32, i32
  }
  func.func @transform_3(%arg0: i32, %arg1: i32, %arg2: i32) -> (i32, i32) {
    %c0_i32 = arith.constant 0 : i32
    return %arg0, %arg1 : i32, i32
  }
  func.func @transform_4(%arg0: i32, %arg1: i32, %arg2: i32) -> (i32, i32) {
    %c0_i32 = arith.constant 0 : i32
    %c0_i32_0 = arith.constant 0 : i32
    return %c0_i32, %arg1 : i32, i32
  }
  func.func @transform_5(%arg0: i32, %arg1: i32, %arg2: i32) -> (i32, i32) {
    %c0_i32 = arith.constant 0 : i32
    %c0_i32_0 = arith.constant 0 : i32
    return %c0_i32, %arg1 : i32, i32
  }
  func.func @transform_6(%arg0: i32, %arg1: i32, %arg2: i32) -> (i32, i32) {
    %c0_i32 = arith.constant 0 : i32
    return %arg0, %arg1 : i32, i32
  }
}

module attributes {stable_mosaic.version = 11 : i64} {
  func.func @matmul_bias_kernel(%arg0: i32, %arg1: i32, %arg2: i32, %arg3: memref<16x32xbf16, #tpu.memory_space<vmem>>, %arg4: memref<32x64xbf16, #tpu.memory_space<vmem>>, %arg5: memref<1x64xf32, #tpu.memory_space<vmem>>, %arg6: memref<16x64xbf16, #tpu.memory_space<vmem>>, %arg7: memref<16x64xf32, #tpu.memory_space<vmem>>) attributes {dimension_semantics = [#tpu.dimension_semantics<parallel>, #tpu.dimension_semantics<parallel>, #tpu.dimension_semantics<arbitrary>], iteration_bounds = array<i64: 1, 1, 1>, scalar_prefetch = 0 : i64, scratch_operands = 1 : i64, tpu.core_type = #tpu.core_type<tc>, window_params = [{transform_indices = @transform_0, window_bounds = array<i64: 16, 32>}, {transform_indices = @transform_1, window_bounds = array<i64: 32, 64>}, {transform_indices = @transform_2, window_bounds = array<i64: 1, 64>}, {transform_indices = @transform_3, window_bounds = array<i64: 16, 64>}]} {
    %c0_i32 = arith.constant 0 : i32
    %0 = arith.cmpi eq, %arg2, %c0_i32 : i32
    %1 = arith.extui %0 : i1 to i32
    %c0_i32_0 = arith.constant 0 : i32
    %2 = arith.cmpi ne, %1, %c0_i32_0 : i32
    scf.if %2 {
      %cst_10 = arith.constant 0.000000e+00 : f32
      %12 = vector.broadcast %cst_10 : f32 to vector<16x64xf32>
      %c0_11 = arith.constant 0 : index
      %c0_12 = arith.constant 0 : index
      %13 = vector.load %arg7[%c0_11, %c0_12] : memref<16x64xf32, #tpu.memory_space<vmem>>, vector<16x64xf32>
      tpu.vector_store %arg7[%c0_11, %c0_12], %12 {strides = array<i32>} : memref<16x64xf32, #tpu.memory_space<vmem>>, vector<16x64xf32>,
    } else {
    }
    %c0 = arith.constant 0 : index
    %c0_1 = arith.constant 0 : index
    %3 = vector.load %arg7[%c0, %c0_1] : memref<16x64xf32, #tpu.memory_space<vmem>>, vector<16x64xf32>
    %c0_2 = arith.constant 0 : index
    %c0_3 = arith.constant 0 : index
    %4 = vector.load %arg3[%c0_2, %c0_3] : memref<16x32xbf16, #tpu.memory_space<vmem>>, vector<16x32xbf16>
    %c0_4 = arith.constant 0 : index
    %c0_5 = arith.constant 0 : index
    %5 = vector.load %arg4[%c0_4, %c0_5] : memref<32x64xbf16, #tpu.memory_space<vmem>>, vector<32x64xbf16>
    %cst = arith.constant dense<0.000000e+00> : vector<16x64xf32>
    %6 = tpu.matmul %4, %5, %cst {dimension_numbers = #tpu.dot_dimension_numbers<[1], [0], [0], [1], [0, 0, 1, 1], [], []>} : vector<16x32xbf16>, vector<32x64xbf16>, vector<16x64xf32> -> vector<16x64xf32>
    %7 = arith.addf %3, %6 : vector<16x64xf32>
    %c0_6 = arith.constant 0 : index
    %c0_7 = arith.constant 0 : index
    %8 = vector.load %arg7[%c0_6, %c0_7] : memref<16x64xf32, #tpu.memory_space<vmem>>, vector<16x64xf32>
    tpu.vector_store %arg7[%c0_6, %c0_7], %7 {strides = array<i32>} : memref<16x64xf32, #tpu.memory_space<vmem>>, vector<16x64xf32>,
    %c0_i32_8 = arith.constant 0 : i32
    %9 = arith.cmpi eq, %arg2, %c0_i32_8 : i32
    %10 = arith.extui %9 : i1 to i32
    %c0_i32_9 = arith.constant 0 : i32
    %11 = arith.cmpi ne, %10, %c0_i32_9 : i32
    scf.if %11 {
      %c0_10 = arith.constant 0 : index
      %c0_11 = arith.constant 0 : index
      %12 = vector.load %arg7[%c0_10, %c0_11] : memref<16x64xf32, #tpu.memory_space<vmem>>, vector<16x64xf32>
      %c0_12 = arith.constant 0 : index
      %c0_13 = arith.constant 0 : index
      %13 = vector.load %arg5[%c0_12, %c0_13] : memref<1x64xf32, #tpu.memory_space<vmem>>, vector<1x64xf32>
      %14 = vector.broadcast %13 : vector<1x64xf32> to vector<16x64xf32>
      %15 = arith.addf %12, %14 : vector<16x64xf32>
      %cst_14 = arith.constant 5.000000e-01 : f32
      %16 = vector.broadcast %cst_14 : f32 to vector<16x64xf32>
      %17 = arith.mulf %16, %15 : vector<16x64xf32>
      %cst_15 = arith.constant 4.471500e-02 : f32
      %18 = vector.broadcast %cst_15 : f32 to vector<16x64xf32>
      %19 = arith.mulf %18, %15 : vector<16x64xf32>
      %20 = arith.mulf %19, %15 : vector<16x64xf32>
      %21 = arith.mulf %20, %15 : vector<16x64xf32>
      %22 = arith.addf %15, %21 : vector<16x64xf32>
      %cst_16 = arith.constant 0.797884583 : f32
      %23 = vector.broadcast %cst_16 : f32 to vector<16x64xf32>
      %24 = arith.mulf %23, %22 : vector<16x64xf32>
      %25 = math.tanh %24 : vector<16x64xf32>
      %cst_17 = arith.constant 1.000000e+00 : f32
      %26 = vector.broadcast %cst_17 : f32 to vector<16x64xf32>
      %27 = arith.addf %26, %25 : vector<16x64xf32>
      %28 = arith.mulf %17, %27 : vector<16x64xf32>
      %29 = arith.truncf %28 : vector<16x64xf32> to vector<16x64xbf16>
      %c0_18 = arith.constant 0 : index
      %c0_19 = arith.constant 0 : index
      %30 = vector.load %arg6[%c0_18, %c0_19] : memref<16x64xbf16, #tpu.memory_space<vmem>>, vector<16x64xbf16>
      tpu.vector_store %arg6[%c0_18, %c0_19], %29 {strides = array<i32>} : memref<16x64xbf16, #tpu.memory_space<vmem>>, vector<16x64xbf16>,
    } else {
    }
    return
  }
  func.func @transform_0(%arg0: i32, %arg1: i32, %arg2: i32) -> (i32, i32) {
    %c0_i32 = arith.constant 0 : i32
    return %arg0, %arg2 : i32, i32
  }
  func.func @transform_1(%arg0: i32, %arg1: i32, %arg2: i32) -> (i32, i32) {
    %c0_i32 = arith.constant 0 : i32
    return %arg2, %arg1 : i32, i32
  }
  func.func @transform_2(%arg0: i32, %arg1: i32, %arg2: i32) -> (i32, i32) {
    %c0_i32 = arith.constant 0 : i32
    %c0_i32_0 = arith.constant 0 : i32
    return %c0_i32, %arg1 : i32, i32
  }
  func.func @transform_3(%arg0: i32, %arg1: i32, %arg2: i32) -> (i32, i32) {
    %c0_i32 = arith.constant 0 : i32
    return %arg0, %arg1 : i32, i32
  }
}

module attributes {stable_mosaic.version = 11 : i64} {
  func.func @matmul_bias_res_ln_kernel(%arg0: i32, %arg1: i32, %arg2: i32, %arg3: memref<16x64xbf16, #tpu.memory_space<vmem>>, %arg4: memref<64x32xbf16, #tpu.memory_space<vmem>>, %arg5: memref<1x32xf32, #tpu.memory_space<vmem>>, %arg6: memref<16x32xbf16, #tpu.memory_space<vmem>>, %arg7: memref<1x32xf32, #tpu.memory_space<vmem>>, %arg8: memref<1x32xf32, #tpu.memory_space<vmem>>, %arg9: memref<16x32xbf16, #tpu.memory_space<vmem>>, %arg10: memref<16x32xf32, #tpu.memory_space<vmem>>) attributes {dimension_semantics = [#tpu.dimension_semantics<parallel>, #tpu.dimension_semantics<parallel>, #tpu.dimension_semantics<arbitrary>], iteration_bounds = array<i64: 1, 1, 1>, scalar_prefetch = 0 : i64, scratch_operands = 1 : i64, tpu.core_type = #tpu.core_type<tc>, window_params = [{transform_indices = @transform_0, window_bounds = array<i64: 16, 64>}, {transform_indices = @transform_1, window_bounds = array<i64: 64, 32>}, {transform_indices = @transform_2, window_bounds = array<i64: 1, 32>}, {transform_indices = @transform_3, window_bounds = array<i64: 16, 32>}, {transform_indices = @transform_4, window_bounds = array<i64: 1, 32>}, {transform_indices = @transform_5, window_bounds = array<i64: 1, 32>}, {transform_indices = @transform_6, window_bounds = array<i64: 16, 32>}]} {
    %c0_i32 = arith.constant 0 : i32
    %0 = arith.cmpi eq, %arg2, %c0_i32 : i32
    %1 = arith.extui %0 : i1 to i32
    %c0_i32_0 = arith.constant 0 : i32
    %2 = arith.cmpi ne, %1, %c0_i32_0 : i32
    scf.if %2 {
      %cst_10 = arith.constant 0.000000e+00 : f32
      %12 = vector.broadcast %cst_10 : f32 to vector<16x32xf32>
      %c0_11 = arith.constant 0 : index
      %c0_12 = arith.constant 0 : index
      %13 = vector.load %arg10[%c0_11, %c0_12] : memref<16x32xf32, #tpu.memory_space<vmem>>, vector<16x32xf32>
      tpu.vector_store %arg10[%c0_11, %c0_12], %12 {strides = array<i32>} : memref<16x32xf32, #tpu.memory_space<vmem>>, vector<16x32xf32>,
    } else {
    }
    %c0 = arith.constant 0 : index
    %c0_1 = arith.constant 0 : index
    %3 = vector.load %arg10[%c0, %c0_1] : memref<16x32xf32, #tpu.memory_space<vmem>>, vector<16x32xf32>
    %c0_2 = arith.constant 0 : index
    %c0_3 = arith.constant 0 : index
    %4 = vector.load %arg3[%c0_2, %c0_3] : memref<16x64xbf16, #tpu.memory_space<vmem>>, vector<16x64xbf16>
    %c0_4 = arith.constant 0 : index
    %c0_5 = arith.constant 0 : index
    %5 = vector.load %arg4[%c0_4, %c0_5] : memref<64x32xbf16, #tpu.memory_space<vmem>>, vector<64x32xbf16>
    %cst = arith.constant dense<0.000000e+00> : vector<16x32xf32>
    %6 = tpu.matmul %4, %5, %cst {dimension_numbers = #tpu.dot_dimension_numbers<[1], [0], [0], [1], [0, 0, 1, 1], [], []>} : vector<16x64xbf16>, vector<64x32xbf16>, vector<16x32xf32> -> vector<16x32xf32>
    %7 = arith.addf %3, %6 : vector<16x32xf32>
    %c0_6 = arith.constant 0 : index
    %c0_7 = arith.constant 0 : index
    %8 = vector.load %arg10[%c0_6, %c0_7] : memref<16x32xf32, #tpu.memory_space<vmem>>, vector<16x32xf32>
    tpu.vector_store %arg10[%c0_6, %c0_7], %7 {strides = array<i32>} : memref<16x32xf32, #tpu.memory_space<vmem>>, vector<16x32xf32>,
    %c0_i32_8 = arith.constant 0 : i32
    %9 = arith.cmpi eq, %arg2, %c0_i32_8 : i32
    %10 = arith.extui %9 : i1 to i32
    %c0_i32_9 = arith.constant 0 : i32
    %11 = arith.cmpi ne, %10, %c0_i32_9 : i32
    scf.if %11 {
      %c0_10 = arith.constant 0 : index
      %c0_11 = arith.constant 0 : index
      %12 = vector.load %arg10[%c0_10, %c0_11] : memref<16x32xf32, #tpu.memory_space<vmem>>, vector<16x32xf32>
      %c0_12 = arith.constant 0 : index
      %c0_13 = arith.constant 0 : index
      %13 = vector.load %arg5[%c0_12, %c0_13] : memref<1x32xf32, #tpu.memory_space<vmem>>, vector<1x32xf32>
      %14 = vector.broadcast %13 : vector<1x32xf32> to vector<16x32xf32>
      %15 = arith.addf %12, %14 : vector<16x32xf32>
      %c0_14 = arith.constant 0 : index
      %c0_15 = arith.constant 0 : index
      %16 = vector.load %arg6[%c0_14, %c0_15] : memref<16x32xbf16, #tpu.memory_space<vmem>>, vector<16x32xbf16>
      %17 = arith.extf %16 : vector<16x32xbf16> to vector<16x32xf32>
      %18 = arith.addf %15, %17 : vector<16x32xf32>
      %c0_16 = arith.constant 0 : index
      %c0_17 = arith.constant 0 : index
      %19 = vector.load %arg7[%c0_16, %c0_17] : memref<1x32xf32, #tpu.memory_space<vmem>>, vector<1x32xf32>
      %c0_18 = arith.constant 0 : index
      %c0_19 = arith.constant 0 : index
      %20 = vector.load %arg8[%c0_18, %c0_19] : memref<1x32xf32, #tpu.memory_space<vmem>>, vector<1x32xf32>
      %cst_20 = arith.constant dense<0.000000e+00> : vector<16xf32>
      %21 = vector.multi_reduction <add>, %18, %cst_20 [1] : vector<16x32xf32> to vector<16xf32>
      %22 = vector.shape_cast %21 : vector<16xf32> to vector<16x1xf32>
      %cst_21 = arith.constant 3.200000e+01 : f32
      %23 = vector.broadcast %cst_21 : f32 to vector<16x1xf32>
      %24 = arith.divf %22, %23 : vector<16x1xf32>
      %25 = vector.broadcast %24 : vector<16x1xf32> to vector<16x32xf32>
      %26 = arith.subf %18, %25 : vector<16x32xf32>
      %27 = arith.mulf %26, %26 : vector<16x32xf32>
      %cst_22 = arith.constant dense<0.000000e+00> : vector<16xf32>
      %28 = vector.multi_reduction <add>, %27, %cst_22 [1] : vector<16x32xf32> to vector<16xf32>
      %29 = vector.shape_cast %28 : vector<16xf32> to vector<16x1xf32>
      %cst_23 = arith.constant 3.200000e+01 : f32
      %30 = vector.broadcast %cst_23 : f32 to vector<16x1xf32>
      %31 = arith.divf %29, %30 : vector<16x1xf32>
      %32 = vector.broadcast %24 : vector<16x1xf32> to vector<16x32xf32>
      %33 = arith.subf %18, %32 : vector<16x32xf32>
      %cst_24 = arith.constant 9.99999974E-6 : f32
      %34 = vector.broadcast %cst_24 : f32 to vector<16x1xf32>
      %35 = arith.addf %31, %34 : vector<16x1xf32>
      %36 = math.rsqrt %35 : vector<16x1xf32>
      %37 = vector.broadcast %36 : vector<16x1xf32> to vector<16x32xf32>
      %38 = arith.mulf %33, %37 : vector<16x32xf32>
      %39 = vector.broadcast %19 : vector<1x32xf32> to vector<16x32xf32>
      %40 = arith.mulf %38, %39 : vector<16x32xf32>
      %41 = vector.broadcast %20 : vector<1x32xf32> to vector<16x32xf32>
      %42 = arith.addf %40, %41 : vector<16x32xf32>
      %43 = arith.truncf %42 : vector<16x32xf32> to vector<16x32xbf16>
      %c0_25 = arith.constant 0 : index
      %c0_26 = arith.constant 0 : index
      %44 = vector.load %arg9[%c0_25, %c0_26] : memref<16x32xbf16, #tpu.memory_space<vmem>>, vector<16x32xbf16>
      tpu.vector_store %arg9[%c0_25, %c0_26], %43 {strides = array<i32>} : memref<16x32xbf16, #tpu.memory_space<vmem>>, vector<16x32xbf16>,
    } else {
    }
    return
  }
  func.func @transform_0(%arg0: i32, %arg1: i32, %arg2: i32) -> (i32, i32) {
    %c0_i32 = arith.constant 0 : i32
    return %arg0, %arg2 : i32, i32
  }
  func.func @transform_1(%arg0: i32, %arg1: i32, %arg2: i32) -> (i32, i32) {
    %c0_i32 = arith.constant 0 : i32
    return %arg2, %arg1 : i32, i32
  }
  func.func @transform_2(%arg0: i32, %arg1: i32, %arg2: i32) -> (i32, i32) {
    %c0_i32 = arith.constant 0 : i32
    %c0_i32_0 = arith.constant 0 : i32
    return %c0_i32, %arg1 : i32, i32
  }
  func.func @transform_3(%arg0: i32, %arg1: i32, %arg2: i32) -> (i32, i32) {
    %c0_i32 = arith.constant 0 : i32
    return %arg0, %arg1 : i32, i32
  }
  func.func @transform_4(%arg0: i32, %arg1: i32, %arg2: i32) -> (i32, i32) {
    %c0_i32 = arith.constant 0 : i32
    %c0_i32_0 = arith.constant 0 : i32
    return %c0_i32, %arg1 : i32, i32
  }
  func.func @transform_5(%arg0: i32, %arg1: i32, %arg2: i32) -> (i32, i32) {
    %c0_i32 = arith.constant 0 : i32
    %c0_i32_0 = arith.constant 0 : i32
    return %c0_i32, %arg1 : i32, i32
  }
  func.func @transform_6(%arg0: i32, %arg1: i32, %arg2: i32) -> (i32, i32) {
    %c0_i32 = arith.constant 0 : i32
    return %arg0, %arg1 : i32, i32
  }
}

</mosaic_0001>

<llo_original>
// kernel: bert_encoder_forward.12
$region0: #{bert_encoder_forward.12}
  #allocation0 [shape = 'u32[]', space=smem, size = 0x4, offset = 0x4, fixed_abs, tag = 'smem constant byte address 0x4 - core index']
  #allocation1 [shape = 'u32[72,128]{1,0:T(1,128)}', space=vmem, size = 0x9000, scoped, tag = 'internal scratch']
  #allocation2 [shape = 'f32[16,96]{1,0:T(8,128)}', space=vmem, size = 0x2000, scoped, tag = 'scratch operand']
  %s0 = inlined_call_operand.vmem [shape: bf16[16,32], index: 0, kind: input, shape index: {}]
  %s1 = inlined_call_operand.vmem [shape: bf16[32,96], index: 1, kind: input, shape index: {}]
  %s2 = inlined_call_operand.vmem [shape: f32[1,96], index: 2, kind: input, shape index: {}]
  %s3 = inlined_call_operand.vmem [shape: bf16[16,96], index: 3, kind: output, shape index: {}]
  %s4 = sld [smem:[#allocation0]]
  $region30: #{bert_encoder_forward.12} parent=0
    _
  %s6 = ssub.s32 1, %s4
  %s7 = scalar_select 0, %s6, %s4
  // Predicated region
  $region2: #{bert_encoder_forward.12} parent=0 // pred_check
    _
  $region3: #{bert_encoder_forward.12} parent=0 // pred_check_branch
    %9 = sbr.rel (0) target = $region5
  $region4: #{bert_encoder_forward.12} parent=0 // pred_region
    _
  $region5: #{bert_encoder_forward.12} parent=0 // pred_fallthru
    _
  // Predicated region
  $region6: #{bert_encoder_forward.12} parent=0 // pred_check
    _
  $region7: #{bert_encoder_forward.12} parent=0 // pred_check_branch
    %11 = sbr.rel (0) target = $region9
  $region8: #{bert_encoder_forward.12} parent=0 // pred_region
    _
  $region9: #{bert_encoder_forward.12} parent=0 // pred_fallthru
    _
  // Predicated region
  $region10: #{bert_encoder_forward.12} parent=0 // pred_check
    _
  $region11: #{bert_encoder_forward.12} parent=0 // pred_check_branch
    %13 = sbr.rel (0) target = $region13
  $region12: #{bert_encoder_forward.12} parent=0 // pred_region
    _
  $region13: #{bert_encoder_forward.12} parent=0 // pred_fallthru
    _
  %p15 = scmp.eq.s32.totalorder 0, 0
  // Predicated region
  $region14: #{bert_encoder_forward.12} parent=0 // pred_check
    %p16 = pneg %p15
  $region15: #{bert_encoder_forward.12} parent=0 // pred_check_branch
    %18 = sbr.rel (%p16) target = $region17
  $region16: #{bert_encoder_forward.12} parent=0 // pred_region
    %vm19 = vcmask 785408
    %20 = vst.msk [vmem:[#allocation2] sm:$0xff] %vm19, 0.0
    %21 = vst.msk [vmem:[#allocation2 + $0x8] sm:$0xff] %vm19, 0.0
  $region17: #{bert_encoder_forward.12} parent=0 // pred_fallthru
    _
  %v22 = vld [vmem:[#allocation2] sm:$0xff]
  %v23 = vld [vmem:[#allocation2 + $0x8] sm:$0xff]
  %v24 = vld [vmem:[%s0] sm:$0xf]
  %v25 = vld [vmem:[%s0 + $0x4] sm:$0xf]
  %v26 = vld [vmem:[%s1] sm:$0xf]
  %v27 = vld [vmem:[%s1 + $0x4] sm:$0xf]
  %v28 = vld [vmem:[%s1 + $0x8] sm:$0xf]
  %v29 = vld [vmem:[%s1 + $0xc] sm:$0xf]
  %v32 = vunpack.c.l.b16 %v24
  %v33 = vunpack.c.l.b16 %v25
  %v34 = vpack.c.b16 %v33, %v32
  %v39 = vunpack.c.l.b16 %v26
  %v40 = vunpack.c.l.b16 %v27
  %v41 = vunpack.c.l.b16 %v28
  %v42 = vunpack.c.l.b16 %v29
  %v43 = vpack.c.b16 %v40, %v39
  %v44 = vpack.c.b16 %v42, %v41
  %vm47 = vcmask 261120
  %v49 = vsel %vm47, %v34, 0
  %51 = vmatpush.bf16.msra.mxu0 0
  %52 = vmatpush.bf16.msra.mxu0 0
  %53 = vmatpush.bf16.msra.mxu0 0
  %54 = vmatpush.bf16.msra.mxu0 0
  %55 = vmatpush.bf16.msra.mxu0 0
  %56 = vmatpush.bf16.msra.mxu0 0
  %57 = vmatpush.bf16.msra.mxu0 %v44
  %58 = vmatpush.bf16.msra.mxu0 %v43
  %59 = vmatmul.bf16.gmra.mxu0 %v49
  %v60 = vpop.f32.mrf.mxu0
  %v61 = vadd.f32 0.0, %v60
  %v62 = vpop.f32.mrf.mxu0
  %v63 = vadd.f32 0.0, %v62
  %64 = vdwg.mxu0
  %v65 = vadd.f32 %v22, %v61
  %v66 = vadd.f32 %v23, %v63
  %vm67 = vcmask 785408
  %68 = vst.msk [vmem:[#allocation2] sm:$0xff] %vm67, %v65
  %69 = vst.msk [vmem:[#allocation2 + $0x8] sm:$0xff] %vm67, %v66
  // Predicated region
  $region18: #{bert_encoder_forward.12} parent=0 // pred_check
    %p70 = pneg %p15
  $region19: #{bert_encoder_forward.12} parent=0 // pred_check_branch
    %72 = sbr.rel (%p70) target = $region21
  $region20: #{bert_encoder_forward.12} parent=0 // pred_region
    %v73 = vld [vmem:[#allocation2] sm:$0xff]
    %v74 = vld [vmem:[#allocation2 + $0x8] sm:$0xff]
    %v75 = vld [vmem:[%s2] sm:$0x1]
    %v77 = vperm.slane %v75, 0
    %v79 = vadd.f32 %v73, %v77
    %v80 = vadd.f32 %v74, %v77
    %v81 = vpack.c.bf16 %v79, %v79
    %v82 = vpack.c.bf16 %v80, %v80
    %vm83 = vcmask 781312
    %84 = vst.msk [vmem:[%s3] sm:$0xf] %vm83, %v81
    %85 = vst.msk [vmem:[%s3 + $0x4] sm:$0xf] %vm83, %v82
  $region21: #{bert_encoder_forward.12} parent=0 // pred_fallthru
    _
  // Predicated region
  $region22: #{bert_encoder_forward.12} parent=0 // pred_check
    _
  $region23: #{bert_encoder_forward.12} parent=0 // pred_check_branch
    %87 = sbr.rel (0) target = $region25
  $region24: #{bert_encoder_forward.12} parent=0 // pred_region
    _
  $region25: #{bert_encoder_forward.12} parent=0 // pred_fallthru
    _
  // Predicated region
  $region26: #{bert_encoder_forward.12} parent=0 // pred_check
    _
  $region27: #{bert_encoder_forward.12} parent=0 // pred_check_branch
    %89 = sbr.rel (0) target = $region29
  $region28: #{bert_encoder_forward.12} parent=0 // pred_region
    _
  $region29: #{bert_encoder_forward.12} parent=0 // pred_fallthru
    _

// kernel: bert_encoder_forward.11
$region0: #{bert_encoder_forward.11}
  #allocation0 [shape = 'u32[]', space=smem, size = 0x4, offset = 0x4, fixed_abs, tag = 'smem constant byte address 0x4 - core index']
  #allocation1 [shape = 'u32[72,128]{1,0:T(1,128)}', space=vmem, size = 0x9000, scoped, tag = 'internal scratch']
  %s0 = inlined_call_operand.vmem [shape: f32[16,32], index: 0, kind: input, shape index: {}]
  %s1 = inlined_call_operand.vmem [shape: f32[1,32], index: 1, kind: input, shape index: {}]
  %s2 = inlined_call_operand.vmem [shape: f32[1,32], index: 2, kind: input, shape index: {}]
  %s3 = inlined_call_operand.vmem [shape: bf16[16,32], index: 3, kind: output, shape index: {}]
  %s4 = sld [smem:[#allocation0]]
  $region45: #{bert_encoder_forward.11} parent=0
    _
  %s6 = ssub.s32 1, %s4
  %s7 = scalar_select 0, %s6, %s4
  loop: start=0, step=1, limit=4
  $region2: #{bert_encoder_forward.11} parent=0 // loop_pre_header
    _
  $region3: #{bert_encoder_forward.11} parent=0 // loop_header
    %s9 = sphi 0, %s13
    %p10 = scmp.ge.s32.totalorder %s9, 4
    %s19 = sphi 0, %s21
    %s22 = sphi 0, %s19
    %s23 = sphi 0, %s22
    %s39 = sphi 0, %s23
    %s43 = sphi 0, %s43
    %s45 = sphi 0, %s43
    %s46 = sphi 0, %s45
    %s60 = sphi 0, %s46
    %s64 = sphi 0, %s64
    %s66 = sphi 0, %s64
    %s67 = sphi 0, %s66
    %s81 = sphi 0, %s67
    %s87 = sphi 0, %s89
    %s90 = sphi 0, %s87
    %s91 = sphi 0, %s90
    %s107 = sphi 0, %s91
  $region4: #{bert_encoder_forward.11} parent=0 // loop_header_branch
    %12 = sbr.rel (%p10) target = $region8
  $region5: #{bert_encoder_forward.11} parent=0 // loop_body
    %s14 = ssub.s32 %s9, 1
    %s15 = ssub.s32 %s9, 2
    %s16 = sadd.s32 %s9, 1
    %s17 = ssub.s32 %s9, %s16
    %p18 = scmp.eq.s32.totalorder %s17, 0
    %s20 = sadd.s32 %s19, 1
    %s21 = scalar_select %p18, %s19, %s20
    %p24 = pneg %p18
    %p25 = scmp.eq.s32.totalorder %s9, 1
    %p26 = por %p24, %p25
    %p27 = scmp.ne.s32.totalorder %s19, %s22
    %p28 = scmp.eq.s32.totalorder %s9, 0
    %p29 = por %p27, %p28
    %p30 = scmp.ne.s32.totalorder %s19, %s22
    %p31 = scmp.eq.s32.totalorder %s14, 1
    %p32 = por %p30, %p31
    %p33 = scmp.ne.s32.totalorder %s22, %s23
    %p34 = scmp.eq.s32.totalorder %s14, 0
    %p35 = por %p33, %p34
    %p36 = scmp.ne.s32.totalorder %s22, %s23
    %p37 = scmp.eq.s32.totalorder %s15, 1
    %p38 = por %p36, %p37
    %p40 = scmp.ne.s32.totalorder %s23, %s39
    %p41 = scmp.eq.s32.totalorder %s15, 0
    %p42 = por %p40, %p41
    %s44 = sadd.s32 %s43, 1
    %p47 = scmp.eq.s32.totalorder %s9, 1
    %p48 = scmp.ne.s32.totalorder %s43, %s45
    %p49 = scmp.eq.s32.totalorder %s9, 0
    %p50 = por %p48, %p49
    %p51 = scmp.ne.s32.totalorder %s43, %s45
    %p52 = scmp.eq.s32.totalorder %s14, 1
    %p53 = por %p51, %p52
    %p54 = scmp.ne.s32.totalorder %s45, %s46
    %p55 = scmp.eq.s32.totalorder %s14, 0
    %p56 = por %p54, %p55
    %p57 = scmp.ne.s32.totalorder %s45, %s46
    %p58 = scmp.eq.s32.totalorder %s15, 1
    %p59 = por %p57, %p58
    %p61 = scmp.ne.s32.totalorder %s46, %s60
    %p62 = scmp.eq.s32.totalorder %s15, 0
    %p63 = por %p61, %p62
    %s65 = sadd.s32 %s64, 1
    %p68 = scmp.eq.s32.totalorder %s9, 1
    %p69 = scmp.ne.s32.totalorder %s64, %s66
    %p70 = scmp.eq.s32.totalorder %s9, 0
    %p71 = por %p69, %p70
    %p72 = scmp.ne.s32.totalorder %s64, %s66
    %p73 = scmp.eq.s32.totalorder %s14, 1
    %p74 = por %p72, %p73
    %p75 = scmp.ne.s32.totalorder %s66, %s67
    %p76 = scmp.eq.s32.totalorder %s14, 0
    %p77 = por %p75, %p76
    %p78 = scmp.ne.s32.totalorder %s66, %s67
    %p79 = scmp.eq.s32.totalorder %s15, 1
    %p80 = por %p78, %p79
    %p82 = scmp.ne.s32.totalorder %s67, %s81
    %p83 = scmp.eq.s32.totalorder %s15, 0
    %p84 = por %p82, %p83
    %s85 = ssub.s32 %s9, %s16
    %p86 = scmp.eq.s32.totalorder %s85, 0
    %s88 = sadd.s32 %s87, 1
    %s89 = scalar_select %p86, %s87, %s88
    %p92 = pneg %p86
    %p93 = scmp.eq.s32.totalorder %s9, 1
    %p94 = por %p92, %p93
    %p95 = scmp.ne.s32.totalorder %s87, %s90
    %p96 = scmp.eq.s32.totalorder %s9, 0
    %p97 = por %p95, %p96
    %p98 = scmp.ne.s32.totalorder %s87, %s90
    %p99 = scmp.eq.s32.totalorder %s14, 1
    %p100 = por %p98, %p99
    %p101 = scmp.ne.s32.totalorder %s90, %s91
    %p102 = scmp.eq.s32.totalorder %s14, 0
    %p103 = por %p101, %p102
    %p104 = scmp.ne.s32.totalorder %s90, %s91
    %p105 = scmp.eq.s32.totalorder %s15, 1
    %p106 = por %p104, %p105
    %p108 = scmp.ne.s32.totalorder %s91, %s107
    %p109 = scmp.eq.s32.totalorder %s15, 0
    %p110 = por %p108, %p109
    %p111 = scmp.le.s32.totalorder 1, %s9
    %p112 = scmp.lt.s32.totalorder %s9, 3
    %p113 = pnand %p111, %p112
    %p114 = pneg %p113
    // Predicated region
    $region9: #{bert_encoder_forward.11} parent=5 // pred_check
      _
    $region10: #{bert_encoder_forward.11} parent=5 // pred_check_branch
      %116 = sbr.rel (%p113) target = $region12
    $region11: #{bert_encoder_forward.11} parent=5 // pred_region
      %s117 = ssub.s32 %s9, 1
      // Predicated region
      $region13: #{bert_encoder_forward.11} parent=11 // pred_check
        %p118 = pneg %p56
      $region14: #{bert_encoder_forward.11} parent=11 // pred_check_branch
        %120 = sbr.rel (%p118) target = $region16
      $region15: #{bert_encoder_forward.11} parent=11 // pred_region
        _
      $region16: #{bert_encoder_forward.11} parent=11 // pred_fallthru
        _
      // Predicated region
      $region17: #{bert_encoder_forward.11} parent=11 // pred_check
        %p121 = pneg %p77
      $region18: #{bert_encoder_forward.11} parent=11 // pred_check_branch
        %123 = sbr.rel (%p121) target = $region20
      $region19: #{bert_encoder_forward.11} parent=11 // pred_region
        _
      $region20: #{bert_encoder_forward.11} parent=11 // pred_fallthru
        _
    $region12: #{bert_encoder_forward.11} parent=5 // pred_fallthru
      _
    %p124 = scmp.lt.s32.totalorder %s9, 2
    // Predicated region
    $region21: #{bert_encoder_forward.11} parent=5 // pred_check
      %p125 = pneg %p124
    $region22: #{bert_encoder_forward.11} parent=5 // pred_check_branch
      %127 = sbr.rel (%p125) target = $region24
    $region23: #{bert_encoder_forward.11} parent=5 // pred_region
      // Predicated region
      $region25: #{bert_encoder_forward.11} parent=23 // pred_check
        %p128 = pneg %p29
      $region26: #{bert_encoder_forward.11} parent=23 // pred_check_branch
        %130 = sbr.rel (%p128) target = $region28
      $region27: #{bert_encoder_forward.11} parent=23 // pred_region
        %p131 = scmp.lt.s32.totalorder %s9, 1
        %s132 = scalar_select %p131, %s9, 1
        %s133 = smul.addr %s132, 8
        %s134 = scalar_lea.vmem %s0, %s133
      $region28: #{bert_encoder_forward.11} parent=23 // pred_fallthru
        _
    $region24: #{bert_encoder_forward.11} parent=5 // pred_fallthru
      _
    %p135 = scmp.le.s32.totalorder 1, %s9
    %p136 = scmp.lt.s32.totalorder %s9, 3
    %p137 = pnand %p135, %p136
    %p138 = pneg %p137
    // Predicated region
    $region29: #{bert_encoder_forward.11} parent=5 // pred_check
      _
    $region30: #{bert_encoder_forward.11} parent=5 // pred_check_branch
      %140 = sbr.rel (%p137) target = $region32
    $region31: #{bert_encoder_forward.11} parent=5 // pred_region
      %s141 = ssub.s32 %s9, 1
      %p142 = scmp.lt.s32.totalorder %s14, 1
      %s143 = scalar_select %p142, %s14, 1
      %s144 = smul.addr %s143, 8
      %s145 = scalar_lea.vmem %s0, %s144
      %p146 = pneg %p35
      %p147 = pneg %p32
      %p148 = pneg %p56
      %p149 = pneg %p53
      %p150 = pneg %p77
      %p151 = pneg %p74
      %p152 = pneg %p103
      %p153 = pneg %p100
      %p154 = scmp.lt.s32.totalorder %s14, 1
      %s155 = scalar_select %p154, %s14, 1
      %s156 = smul.addr %s155, 4
      %s157 = scalar_lea.vmem %s3, %s156
      %p158 = scmp.lt.s32.totalorder %s14, 1
      %s159 = scalar_select %p158, %s14, 1
      %s160 = smul.addr %s159, 8
      %s161 = scalar_lea.vmem %s0, %s160
      %p162 = scmp.lt.s32.totalorder %s14, 1
      %s163 = scalar_select %p162, %s14, 1
      %s164 = smul.addr %s163, 4
      %s165 = scalar_lea.vmem %s3, %s164
      %v166 = vld [vmem:[%s161] sm:$0xff]
      %v167 = vld [vmem:[%s1] sm:$0x1]
      %v168 = vld [vmem:[%s2] sm:$0x1]
      %vm169 = vcmask 261120
      %v170 = vsel %vm169, %v166, 0.0
      %171 = vadd.xlane.f32.xlu0 %v170
      %v172 = vpop.xlane.xlu0 %171
      %v173 = vrcp.pop 32.0
      %v174 = vmul.f32 32.0, %v173
      %v175 = vsub.f32 1.0, %v174
      %v176 = vmul.f32 %v173, %v175
      %v177 = vadd.f32 %v173, %v176
      %vm178 = vweird.f32 %v173
      %v179 = vsel %vm178, %v173, %v177
      %v180 = vmul.f32 %v172, %v179
      %v181 = vsub.f32 %v166, %v180
      %v182 = vmul.f32 %v181, %v181
      %v183 = vsel %vm169, %v182, 0.0
      %184 = vadd.xlane.f32.xlu0 %v183
      %v185 = vpop.xlane.xlu0 %184
      %v186 = vmul.f32 %v185, %v179
      %v187 = vadd.f32 %v186, 1e-05
      %v188 = vrsqrt.pop %v187
      %v189 = vmul.f32 %v188, %v187
      %v190 = vmul.f32 %v189, %v188
      %v191 = vmul.f32 0.5, %v190
      %v192 = vsub.f32 1.5, %v191
      %v193 = vmul.f32 %v188, %v192
      %vm194 = vweird.f32 %v187
      %vm195 = vweird.f32 %v188
      %vm196 = vmor %vm194, %vm195
      %v197 = vsel %vm196, %v188, %v193
      %v198 = vmul.f32 %v181, %v197
      %v200 = vperm.slane %v167, 0
      %v202 = vmul.f32 %v198, %v200
      %v204 = vperm.slane %v168, 0
      %v206 = vadd.f32 %v202, %v204
      %v207 = vpack.c.bf16 %v206, %v206
      %vm208 = vcmask 257024
      %209 = vst.msk [vmem:[%s165] sm:$0xf] %vm208, %v207
      %p210 = scmp.lt.s32.totalorder %s14, 1
      %s211 = scalar_select %p210, %s14, 1
      %s212 = smul.addr %s211, 4
      %s213 = scalar_lea.vmem %s3, %s212
      // Predicated region
      $region33: #{bert_encoder_forward.11} parent=31 // pred_check
        %p214 = pneg %p100
      $region34: #{bert_encoder_forward.11} parent=31 // pred_check_branch
        %216 = sbr.rel (%p214) target = $region36
      $region35: #{bert_encoder_forward.11} parent=31 // pred_region
        _
      $region36: #{bert_encoder_forward.11} parent=31 // pred_fallthru
        _
    $region32: #{bert_encoder_forward.11} parent=5 // pred_fallthru
      _
    %p217 = scmp.le.s32.totalorder 2, %s9
    // Predicated region
    $region37: #{bert_encoder_forward.11} parent=5 // pred_check
      %p218 = pneg %p217
    $region38: #{bert_encoder_forward.11} parent=5 // pred_check_branch
      %220 = sbr.rel (%p218) target = $region40
    $region39: #{bert_encoder_forward.11} parent=5 // pred_region
      %s221 = ssub.s32 %s9, 2
      // Predicated region
      $region41: #{bert_encoder_forward.11} parent=39 // pred_check
        %p222 = pneg %p106
      $region42: #{bert_encoder_forward.11} parent=39 // pred_check_branch
        %224 = sbr.rel (%p222) target = $region44
      $region43: #{bert_encoder_forward.11} parent=39 // pred_region
        %p225 = scmp.lt.s32.totalorder %s15, 1
        %s226 = scalar_select %p225, %s15, 1
        %s227 = smul.addr %s226, 4
        %s228 = scalar_lea.vmem %s3, %s227
      $region44: #{bert_encoder_forward.11} parent=39 // pred_fallthru
        _
    $region40: #{bert_encoder_forward.11} parent=5 // pred_fallthru
      _
  $region6: #{bert_encoder_forward.11} parent=0 // loop_footer
    %s13 = sadd.s32 1, %s9
  $region7: #{bert_encoder_forward.11} parent=0 // loop_footer_branch
    %8 = sbr.rel target = $region3
  $region8: #{bert_encoder_forward.11} parent=0 // loop_exit
    _

// kernel: bert_encoder_forward.14
$region0: #{bert_encoder_forward.14}
  #allocation0 [shape = 'u32[]', space=smem, size = 0x4, offset = 0x4, fixed_abs, tag = 'smem constant byte address 0x4 - core index']
  #allocation1 [shape = 'u32[72,128]{1,0:T(1,128)}', space=vmem, size = 0x9000, scoped, tag = 'internal scratch']
  #allocation2 [shape = 'f32[16,32]{1,0:T(8,128)}', space=vmem, size = 0x2000, scoped, tag = 'scratch operand']
  %s0 = inlined_call_operand.vmem [shape: bf16[16,32], index: 0, kind: input, shape index: {}]
  %s1 = inlined_call_operand.vmem [shape: bf16[32,32], index: 1, kind: input, shape index: {}]
  %s2 = inlined_call_operand.vmem [shape: f32[1,32], index: 2, kind: input, shape index: {}]
  %s3 = inlined_call_operand.vmem [shape: bf16[16,32], index: 3, kind: input, shape index: {}]
  %s4 = inlined_call_operand.vmem [shape: f32[1,32], index: 4, kind: input, shape index: {}]
  %s5 = inlined_call_operand.vmem [shape: f32[1,32], index: 5, kind: input, shape index: {}]
  %s6 = inlined_call_operand.vmem [shape: bf16[16,32], index: 6, kind: output, shape index: {}]
  %s7 = sld [smem:[#allocation0]]
  $region42: #{bert_encoder_forward.14} parent=0
    _
  %s9 = ssub.s32 1, %s7
  %s10 = scalar_select 0, %s9, %s7
  // Predicated region
  $region2: #{bert_encoder_forward.14} parent=0 // pred_check
    _
  $region3: #{bert_encoder_forward.14} parent=0 // pred_check_branch
    %12 = sbr.rel (0) target = $region5
  $region4: #{bert_encoder_forward.14} parent=0 // pred_region
    _
  $region5: #{bert_encoder_forward.14} parent=0 // pred_fallthru
    _
  // Predicated region
  $region6: #{bert_encoder_forward.14} parent=0 // pred_check
    _
  $region7: #{bert_encoder_forward.14} parent=0 // pred_check_branch
    %14 = sbr.rel (0) target = $region9
  $region8: #{bert_encoder_forward.14} parent=0 // pred_region
    _
  $region9: #{bert_encoder_forward.14} parent=0 // pred_fallthru
    _
  // Predicated region
  $region10: #{bert_encoder_forward.14} parent=0 // pred_check
    _
  $region11: #{bert_encoder_forward.14} parent=0 // pred_check_branch
    %16 = sbr.rel (0) target = $region13
  $region12: #{bert_encoder_forward.14} parent=0 // pred_region
    _
  $region13: #{bert_encoder_forward.14} parent=0 // pred_fallthru
    _
  // Predicated region
  $region14: #{bert_encoder_forward.14} parent=0 // pred_check
    _
  $region15: #{bert_encoder_forward.14} parent=0 // pred_check_branch
    %18 = sbr.rel (0) target = $region17
  $region16: #{bert_encoder_forward.14} parent=0 // pred_region
    _
  $region17: #{bert_encoder_forward.14} parent=0 // pred_fallthru
    _
  // Predicated region
  $region18: #{bert_encoder_forward.14} parent=0 // pred_check
    _
  $region19: #{bert_encoder_forward.14} parent=0 // pred_check_branch
    %20 = sbr.rel (0) target = $region21
  $region20: #{bert_encoder_forward.14} parent=0 // pred_region
    _
  $region21: #{bert_encoder_forward.14} parent=0 // pred_fallthru
    _
  // Predicated region
  $region22: #{bert_encoder_forward.14} parent=0 // pred_check
    _
  $region23: #{bert_encoder_forward.14} parent=0 // pred_check_branch
    %22 = sbr.rel (0) target = $region25
  $region24: #{bert_encoder_forward.14} parent=0 // pred_region
    _
  $region25: #{bert_encoder_forward.14} parent=0 // pred_fallthru
    _
  %p24 = scmp.eq.s32.totalorder 0, 0
  // Predicated region
  $region26: #{bert_encoder_forward.14} parent=0 // pred_check
    %p25 = pneg %p24
  $region27: #{bert_encoder_forward.14} parent=0 // pred_check_branch
    %27 = sbr.rel (%p25) target = $region29
  $region28: #{bert_encoder_forward.14} parent=0 // pred_region
    %vm28 = vcmask 261120
    %29 = vst.msk [vmem:[#allocation2] sm:$0xff] %vm28, 0.0
    %30 = vst.msk [vmem:[#allocation2 + $0x8] sm:$0xff] %vm28, 0.0
  $region29: #{bert_encoder_forward.14} parent=0 // pred_fallthru
    _
  %v31 = vld [vmem:[#allocation2] sm:$0xff]
  %v32 = vld [vmem:[#allocation2 + $0x8] sm:$0xff]
  %v33 = vld [vmem:[%s0] sm:$0xf]
  %v34 = vld [vmem:[%s0 + $0x4] sm:$0xf]
  %v35 = vld [vmem:[%s1] sm:$0xf]
  %v36 = vld [vmem:[%s1 + $0x4] sm:$0xf]
  %v37 = vld [vmem:[%s1 + $0x8] sm:$0xf]
  %v38 = vld [vmem:[%s1 + $0xc] sm:$0xf]
  %v41 = vunpack.c.l.b16 %v33
  %v42 = vunpack.c.l.b16 %v34
  %v43 = vpack.c.b16 %v42, %v41
  %v48 = vunpack.c.l.b16 %v35
  %v49 = vunpack.c.l.b16 %v36
  %v50 = vunpack.c.l.b16 %v37
  %v51 = vunpack.c.l.b16 %v38
  %v52 = vpack.c.b16 %v49, %v48
  %v53 = vpack.c.b16 %v51, %v50
  %vm56 = vcmask 261120
  %v58 = vsel %vm56, %v43, 0
  %60 = vmatpush.bf16.msra.mxu0 0
  %61 = vmatpush.bf16.msra.mxu0 0
  %62 = vmatpush.bf16.msra.mxu0 0
  %63 = vmatpush.bf16.msra.mxu0 0
  %64 = vmatpush.bf16.msra.mxu0 0
  %65 = vmatpush.bf16.msra.mxu0 0
  %66 = vmatpush.bf16.msra.mxu0 %v53
  %67 = vmatpush.bf16.msra.mxu0 %v52
  %68 = vmatmul.bf16.gmra.mxu0 %v58
  %v69 = vpop.f32.mrf.mxu0
  %v70 = vadd.f32 0.0, %v69
  %v71 = vpop.f32.mrf.mxu0
  %v72 = vadd.f32 0.0, %v71
  %73 = vdwg.mxu0
  %v74 = vadd.f32 %v31, %v70
  %v75 = vadd.f32 %v32, %v72
  %76 = vst.msk [vmem:[#allocation2] sm:$0xff] %vm56, %v74
  %77 = vst.msk [vmem:[#allocation2 + $0x8] sm:$0xff] %vm56, %v75
  // Predicated region
  $region30: #{bert_encoder_forward.14} parent=0 // pred_check
    %p78 = pneg %p24
  $region31: #{bert_encoder_forward.14} parent=0 // pred_check_branch
    %80 = sbr.rel (%p78) target = $region33
  $region32: #{bert_encoder_forward.14} parent=0 // pred_region
    %v81 = vld [vmem:[#allocation2] sm:$0xff]
    %v82 = vld [vmem:[#allocation2 + $0x8] sm:$0xff]
    %v83 = vld [vmem:[%s2] sm:$0x1]
    %v85 = vperm.slane %v83, 0
    %v87 = vadd.f32 %v81, %v85
    %v88 = vadd.f32 %v82, %v85
    %v89 = vld [vmem:[%s3] sm:$0xf]
    %v90 = vld [vmem:[%s3 + $0x4] sm:$0xf]
    %v91 = vunpack.c.l.bf16 %v89
    %v92 = vunpack.c.l.bf16 %v90
    %v93 = vadd.f32 %v87, %v91
    %v94 = vadd.f32 %v88, %v92
    %v95 = vld [vmem:[%s4] sm:$0x1]
    %v96 = vld [vmem:[%s5] sm:$0x1]
    %v97 = vsel %vm56, %v93, 0.0
    %98 = vadd.xlane.f32.xlu0 %v97
    %v99 = vpop.xlane.xlu0 %98
    %v100 = vsel %vm56, %v94, 0.0
    %101 = vadd.xlane.f32.xlu0 %v100
    %v102 = vpop.xlane.xlu0 %101
    %v103 = vrcp.pop 32.0
    %v104 = vmul.f32 32.0, %v103
    %v105 = vsub.f32 1.0, %v104
    %v106 = vmul.f32 %v103, %v105
    %v107 = vadd.f32 %v103, %v106
    %vm108 = vweird.f32 %v103
    %v109 = vsel %vm108, %v103, %v107
    %v110 = vmul.f32 %v99, %v109
    %v111 = vmul.f32 %v102, %v109
    %v112 = vsub.f32 %v93, %v110
    %v113 = vsub.f32 %v94, %v111
    %v114 = vmul.f32 %v112, %v112
    %v115 = vmul.f32 %v113, %v113
    %v116 = vsel %vm56, %v114, 0.0
    %117 = vadd.xlane.f32.xlu0 %v116
    %v118 = vpop.xlane.xlu0 %117
    %v119 = vsel %vm56, %v115, 0.0
    %120 = vadd.xlane.f32.xlu0 %v119
    %v121 = vpop.xlane.xlu0 %120
    %v122 = vmul.f32 %v118, %v109
    %v123 = vmul.f32 %v121, %v109
    %v124 = vadd.f32 %v122, 1e-05
    %v125 = vadd.f32 %v123, 1e-05
    %v126 = vrsqrt.pop %v124
    %v127 = vmul.f32 %v126, %v124
    %v128 = vmul.f32 %v127, %v126
    %v129 = vmul.f32 0.5, %v128
    %v130 = vsub.f32 1.5, %v129
    %v131 = vmul.f32 %v126, %v130
    %vm132 = vweird.f32 %v124
    %vm133 = vweird.f32 %v126
    %vm134 = vmor %vm132, %vm133
    %v135 = vsel %vm134, %v126, %v131
    %v136 = vrsqrt.pop %v125
    %v137 = vmul.f32 %v136, %v125
    %v138 = vmul.f32 %v137, %v136
    %v139 = vmul.f32 0.5, %v138
    %v140 = vsub.f32 1.5, %v139
    %v141 = vmul.f32 %v136, %v140
    %vm142 = vweird.f32 %v125
    %vm143 = vweird.f32 %v136
    %vm144 = vmor %vm142, %vm143
    %v145 = vsel %vm144, %v136, %v141
    %v146 = vmul.f32 %v112, %v135
    %v147 = vmul.f32 %v113, %v145
    %v149 = vperm.slane %v95, 0
    %v151 = vmul.f32 %v146, %v149
    %v152 = vmul.f32 %v147, %v149
    %v154 = vperm.slane %v96, 0
    %v156 = vadd.f32 %v151, %v154
    %v157 = vadd.f32 %v152, %v154
    %v158 = vpack.c.bf16 %v156, %v156
    %v159 = vpack.c.bf16 %v157, %v157
    %vm160 = vcmask 257024
    %161 = vst.msk [vmem:[%s6] sm:$0xf] %vm160, %v158
    %162 = vst.msk [vmem:[%s6 + $0x4] sm:$0xf] %vm160, %v159
  $region33: #{bert_encoder_forward.14} parent=0 // pred_fallthru
    _
  // Predicated region
  $region34: #{bert_encoder_forward.14} parent=0 // pred_check
    _
  $region35: #{bert_encoder_forward.14} parent=0 // pred_check_branch
    %164 = sbr.rel (0) target = $region37
  $region36: #{bert_encoder_forward.14} parent=0 // pred_region
    _
  $region37: #{bert_encoder_forward.14} parent=0 // pred_fallthru
    _
  // Predicated region
  $region38: #{bert_encoder_forward.14} parent=0 // pred_check
    _
  $region39: #{bert_encoder_forward.14} parent=0 // pred_check_branch
    %166 = sbr.rel (0) target = $region41
  $region40: #{bert_encoder_forward.14} parent=0 // pred_region
    _
  $region41: #{bert_encoder_forward.14} parent=0 // pred_fallthru
    _

// kernel: bert_encoder_forward.13
$region0: #{bert_encoder_forward.13}
  #allocation0 [shape = 'u32[]', space=smem, size = 0x4, offset = 0x4, fixed_abs, tag = 'smem constant byte address 0x4 - core index']
  #allocation1 [shape = 'u32[72,128]{1,0:T(1,128)}', space=vmem, size = 0x9000, scoped, tag = 'internal scratch']
  #allocation2 [shape = 'f32[4,8,1]{2,1,0:T(8,128)}', space=vmem, size = 0x4000, scoped, tag = 'scratch operand']
  #allocation3 [shape = 'f32[4,8,1]{2,1,0:T(8,128)}', space=vmem, size = 0x4000, scoped, tag = 'scratch operand']
  #allocation4 [shape = 'f32[4,8,8]{2,1,0:T(8,128)}', space=vmem, size = 0x4000, scoped, tag = 'scratch operand']
  %s0 = inlined_call_operand.vmem [shape: bf16[2,8,3,4,8], index: 0, kind: input, shape index: {}, may-alias: {0,1,2}]
  %s1 = inlined_call_operand.vmem [shape: bf16[2,8,3,4,8], index: 1, kind: input, shape index: {}, may-alias: {0,1,2}]
  %s2 = inlined_call_operand.vmem [shape: bf16[2,8,3,4,8], index: 2, kind: input, shape index: {}, may-alias: {0,1,2}]
  %s3 = inlined_call_operand.vmem [shape: bf16[2,8,4,8], index: 3, kind: output, shape index: {}]
  %s4 = sld [smem:[#allocation0]]
  $region176: #{bert_encoder_forward.13} parent=0
    _
  %s6 = ssub.s32 1, %s4
  %s7 = scalar_select 0, %s6, %s4
  $region1: #{bert_encoder_forward.13} parent=0
    #allocation5 [shape = 'u8[16384]{0}', space=vmem, size = 0x4000, scoped, tag = 'input window, operand 0']
    #allocation6 [shape = 'u8[16384]{0}', space=vmem, size = 0x4000, scoped, tag = 'input window, operand 1']
    #allocation7 [shape = 'u8[16384]{0}', space=vmem, size = 0x4000, scoped, tag = 'input window, operand 2']
    loop: start=0, step=1, limit=4
    $region2: #{bert_encoder_forward.13} parent=1 // loop_pre_header
      _
    $region3: #{bert_encoder_forward.13} parent=1 // loop_header
      %s9 = sphi 0, %s13
      %p10 = scmp.ge.s32.totalorder %s9, 4
      %s16 = sphi 0, %s35
      %s17 = sphi 0, %s31
      %s18 = sphi 0, %s27
      %s19 = sphi 0, %s16
      %s20 = sphi 0, %s17
      %s21 = sphi 0, %s18
      %s22 = sphi 0, %s19
      %s23 = sphi 0, %s20
      %s24 = sphi 0, %s21
      %s40 = sphi 0, %s42
      %s43 = sphi 0, %s40
      %s44 = sphi 0, %s43
      %s60 = sphi 0, %s44
      %s68 = sphi 0, %s70
      %s71 = sphi 0, %s68
      %s72 = sphi 0, %s71
      %s88 = sphi 0, %s72
      %s96 = sphi 0, %s98
      %s99 = sphi 0, %s96
      %s100 = sphi 0, %s99
      %s116 = sphi 0, %s100
      %s124 = sphi 0, %s126
      %s127 = sphi 0, %s124
      %s128 = sphi 0, %s127
      %s144 = sphi 0, %s128
    $region4: #{bert_encoder_forward.13} parent=1 // loop_header_branch
      %12 = sbr.rel (%p10) target = $region8
    $region5: #{bert_encoder_forward.13} parent=1 // loop_body
      %s14 = ssub.s32 %s9, 1
      %s15 = ssub.s32 %s9, 2
      %s25 = sadd.s32 1, %s18
      %p26 = scmp.ge.s32.totalorder %s25, 1
      %s27 = scalar_select %p26, 0, %s25
      %s28 = sadd.s32 1, %s17
      %s29 = scalar_select %p26, %s28, %s17
      %p30 = scmp.ge.s32.totalorder %s29, 1
      %s31 = scalar_select %p30, 0, %s29
      %s32 = sadd.s32 1, %s16
      %s33 = scalar_select %p30, %s32, %s16
      %p34 = scmp.ge.s32.totalorder %s33, 2
      %s35 = scalar_select %p34, 0, %s33
      %s36 = ssub.s32 %s16, %s35
      %s37 = ssub.s32 %s17, %s31
      %s38 = sor.u32 %s36, %s37
      %p39 = scmp.eq.s32.totalorder %s38, 0
      %s41 = sadd.s32 %s40, 1
      %s42 = scalar_select %p39, %s40, %s41
      %p45 = pneg %p39
      %p46 = scmp.eq.s32.totalorder %s9, 1
      %p47 = por %p45, %p46
      %p48 = scmp.ne.s32.totalorder %s40, %s43
      %p49 = scmp.eq.s32.totalorder %s9, 0
      %p50 = por %p48, %p49
      %p51 = scmp.ne.s32.totalorder %s40, %s43
      %p52 = scmp.eq.s32.totalorder %s14, 1
      %p53 = por %p51, %p52
      %p54 = scmp.ne.s32.totalorder %s43, %s44
      %p55 = scmp.eq.s32.totalorder %s14, 0
      %p56 = por %p54, %p55
      %p57 = scmp.ne.s32.totalorder %s43, %s44
      %p58 = scmp.eq.s32.totalorder %s15, 1
      %p59 = por %p57, %p58
      %p61 = scmp.ne.s32.totalorder %s44, %s60
      %p62 = scmp.eq.s32.totalorder %s15, 0
      %p63 = por %p61, %p62
      %s64 = ssub.s32 %s16, %s35
      %s65 = ssub.s32 %s18, %s27
      %s66 = sor.u32 %s64, %s65
      %p67 = scmp.eq.s32.totalorder %s66, 0
      %s69 = sadd.s32 %s68, 1
      %s70 = scalar_select %p67, %s68, %s69
      %p73 = pneg %p67
      %p74 = scmp.eq.s32.totalorder %s9, 1
      %p75 = por %p73, %p74
      %p76 = scmp.ne.s32.totalorder %s68, %s71
      %p77 = scmp.eq.s32.totalorder %s9, 0
      %p78 = por %p76, %p77
      %p79 = scmp.ne.s32.totalorder %s68, %s71
      %p80 = scmp.eq.s32.totalorder %s14, 1
      %p81 = por %p79, %p80
      %p82 = scmp.ne.s32.totalorder %s71, %s72
      %p83 = scmp.eq.s32.totalorder %s14, 0
      %p84 = por %p82, %p83
      %p85 = scmp.ne.s32.totalorder %s71, %s72
      %p86 = scmp.eq.s32.totalorder %s15, 1
      %p87 = por %p85, %p86
      %p89 = scmp.ne.s32.totalorder %s72, %s88
      %p90 = scmp.eq.s32.totalorder %s15, 0
      %p91 = por %p89, %p90
      %s92 = ssub.s32 %s16, %s35
      %s93 = ssub.s32 %s18, %s27
      %s94 = sor.u32 %s92, %s93
      %p95 = scmp.eq.s32.totalorder %s94, 0
      %s97 = sadd.s32 %s96, 1
      %s98 = scalar_select %p95, %s96, %s97
      %p101 = pneg %p95
      %p102 = scmp.eq.s32.totalorder %s9, 1
      %p103 = por %p101, %p102
      %p104 = scmp.ne.s32.totalorder %s96, %s99
      %p105 = scmp.eq.s32.totalorder %s9, 0
      %p106 = por %p104, %p105
      %p107 = scmp.ne.s32.totalorder %s96, %s99
      %p108 = scmp.eq.s32.totalorder %s14, 1
      %p109 = por %p107, %p108
      %p110 = scmp.ne.s32.totalorder %s99, %s100
      %p111 = scmp.eq.s32.totalorder %s14, 0
      %p112 = por %p110, %p111
      %p113 = scmp.ne.s32.totalorder %s99, %s100
      %p114 = scmp.eq.s32.totalorder %s15, 1
      %p115 = por %p113, %p114
      %p117 = scmp.ne.s32.totalorder %s100, %s116
      %p118 = scmp.eq.s32.totalorder %s15, 0
      %p119 = por %p117, %p118
      %s120 = ssub.s32 %s16, %s35
      %s121 = ssub.s32 %s17, %s31
      %s122 = sor.u32 %s120, %s121
      %p123 = scmp.eq.s32.totalorder %s122, 0
      %s125 = sadd.s32 %s124, 1
      %s126 = scalar_select %p123, %s124, %s125
      %p129 = pneg %p123
      %p130 = scmp.eq.s32.totalorder %s9, 1
      %p131 = por %p129, %p130
      %p132 = scmp.ne.s32.totalorder %s124, %s127
      %p133 = scmp.eq.s32.totalorder %s9, 0
      %p134 = por %p132, %p133
      %p135 = scmp.ne.s32.totalorder %s124, %s127
      %p136 = scmp.eq.s32.totalorder %s14, 1
      %p137 = por %p135, %p136
      %p138 = scmp.ne.s32.totalorder %s127, %s128
      %p139 = scmp.eq.s32.totalorder %s14, 0
      %p140 = por %p138, %p139
      %p141 = scmp.ne.s32.totalorder %s127, %s128
      %p142 = scmp.eq.s32.totalorder %s15, 1
      %p143 = por %p141, %p142
      %p145 = scmp.ne.s32.totalorder %s128, %s144
      %p146 = scmp.eq.s32.totalorder %s15, 0
      %p147 = por %p145, %p146
      %p148 = scmp.le.s32.totalorder 1, %s9
      %p149 = scmp.lt.s32.totalorder %s9, 3
      %p150 = pnand %p148, %p149
      %p151 = pneg %p150
      // Predicated region
      $region9: #{bert_encoder_forward.13} parent=5 // pred_check
        _
      $region10: #{bert_encoder_forward.13} parent=5 // pred_check_branch
        %153 = sbr.rel (%p150) target = $region12
      $region11: #{bert_encoder_forward.13} parent=5 // pred_region
        %s154 = ssub.s32 %s9, 1
      $region12: #{bert_encoder_forward.13} parent=5 // pred_fallthru
        _
      %p155 = scmp.lt.s32.totalorder %s9, 2
      // Predicated region
      $region13: #{bert_encoder_forward.13} parent=5 // pred_check
        %p156 = pneg %p155
      $region14: #{bert_encoder_forward.13} parent=5 // pred_check_branch
        %158 = sbr.rel (%p156) target = $region16
      $region15: #{bert_encoder_forward.13} parent=5 // pred_region
        // Predicated region
        $region17: #{bert_encoder_forward.13} parent=15 // pred_check
          %p159 = pneg %p50
        $region18: #{bert_encoder_forward.13} parent=15 // pred_check_branch
          %161 = sbr.rel (%p159) target = $region20
        $region19: #{bert_encoder_forward.13} parent=15 // pred_region
          %s162 = sand.u32 %s40, 1
          %s163 = sand.u32 %s40, 1
          %s164 = smul.addr %s163, 16
          %s165 = scalar_lea.vmem [#allocation5], %s164
          %s166 = smul.u32 8, %s17
          %s167 = smul.addr %s166, 3
          %s168 = smul.addr %s16, 24
          %s169 = sadd.s32 %s167, %s168
          %s170 = smul.addr %s169, 2
          %s171 = scalar_lea.vmem %s0, %s170
          // Predicated region
          $region21: #{bert_encoder_forward.13} parent=19 // pred_check
            _
          $region22: #{bert_encoder_forward.13} parent=19 // pred_check_branch
            %173 = sbr.rel (0) target = $region24
          $region23: #{bert_encoder_forward.13} parent=19 // pred_region
            // Predicated region
            $region25: #{bert_encoder_forward.13} parent=23 // pred_check
              _
            $region26: #{bert_encoder_forward.13} parent=23 // pred_check_branch
              %175 = sbr.rel target = $region28
            $region27: #{bert_encoder_forward.13} parent=23 // pred_region
              // Predicated region
              $region40: #{bert_encoder_forward.13} parent=27 // pred_check
                _
              $region41: #{bert_encoder_forward.13} parent=27 // pred_check_branch
                %205 = sbr.rel (0) target = $region43
              $region42: #{bert_encoder_forward.13} parent=27 // pred_region
                loop: start=0, step=1, limit=1
                $region44: #{bert_encoder_forward.13} parent=42 // loop_pre_header
                  _
                $region45: #{bert_encoder_forward.13} parent=42 // loop_header
                  %s207 = sphi 0, %s211
                  %p208 = scmp.ge.s32.totalorder %s207, 1
                  %s212 = sphi %s171, %s171
                  %s213 = sphi %s165, %s165
                $region46: #{bert_encoder_forward.13} parent=42 // loop_header_branch
                  %210 = sbr.rel (%p208) target = $region50
                $region47: #{bert_encoder_forward.13} parent=42 // loop_body
                  _
                $region48: #{bert_encoder_forward.13} parent=42 // loop_footer
                  %s211 = sadd.s32 1, %s207
                $region49: #{bert_encoder_forward.13} parent=42 // loop_footer_branch
                  %206 = sbr.rel target = $region45
                $region50: #{bert_encoder_forward.13} parent=42 // loop_exit
                  _
                %s215 = ssub.s32 4, 1
                loop: start=0, step=1, limit=1
                $region51: #{bert_encoder_forward.13} parent=42 // loop_pre_header
                  _
                $region52: #{bert_encoder_forward.13} parent=42 // loop_header
                  %s217 = sphi 0, %s221
                  %p218 = scmp.ge.s32.totalorder %s217, 1
                  %s222 = sphi %s171, %s171
                  %s223 = sphi %s165, %s165
                $region53: #{bert_encoder_forward.13} parent=42 // loop_header_branch
                  %220 = sbr.rel (%p218) target = $region57
                $region54: #{bert_encoder_forward.13} parent=42 // loop_body
                  %v224 = vld [vmem:[%s222] sm:%s215]
                  %225 = vst [vmem:[%s223] sm:%s215] %v224
                  %v226 = vld [vmem:[%s222 + $0x6] sm:%s215]
                  %227 = vst [vmem:[%s223 + $0x2] sm:%s215] %v226
                  %v228 = vld [vmem:[%s222 + $0xc] sm:%s215]
                  %229 = vst [vmem:[%s223 + $0x4] sm:%s215] %v228
                  %v230 = vld [vmem:[%s222 + $0x12] sm:%s215]
                  %231 = vst [vmem:[%s223 + $0x6] sm:%s215] %v230
                  %v232 = vld [vmem:[%s222 + $0x18] sm:%s215]
                  %233 = vst [vmem:[%s223 + $0x8] sm:%s215] %v232
                  %v234 = vld [vmem:[%s222 + $0x1e] sm:%s215]
                  %235 = vst [vmem:[%s223 + $0xa] sm:%s215] %v234
                  %v236 = vld [vmem:[%s222 + $0x24] sm:%s215]
                  %237 = vst [vmem:[%s223 + $0xc] sm:%s215] %v236
                  %v238 = vld [vmem:[%s222 + $0x2a] sm:%s215]
                  %239 = vst [vmem:[%s223 + $0xe] sm:%s215] %v238
                $region55: #{bert_encoder_forward.13} parent=42 // loop_footer
                  %s221 = sadd.s32 1, %s217
                $region56: #{bert_encoder_forward.13} parent=42 // loop_footer_branch
                  %216 = sbr.rel target = $region52
                $region57: #{bert_encoder_forward.13} parent=42 // loop_exit
                  _
              $region43: #{bert_encoder_forward.13} parent=27 // pred_fallthru
                _
            $region28: #{bert_encoder_forward.13} parent=23 // pred_fallthru
              _
            // Predicated region
            $region29: #{bert_encoder_forward.13} parent=23 // pred_check
              _
            $region30: #{bert_encoder_forward.13} parent=23 // pred_check_branch
              %177 = sbr.rel (0) target = $region32
            $region31: #{bert_encoder_forward.13} parent=23 // pred_region
              %s179 = ssub.s32 4, 1
              loop: start=0, step=1, limit=1
              $region33: #{bert_encoder_forward.13} parent=31 // loop_pre_header
                _
              $region34: #{bert_encoder_forward.13} parent=31 // loop_header
                %s181 = sphi 0, %s185
                %p182 = scmp.ge.s32.totalorder %s181, 1
                %s186 = sphi %s171, %s171
                %s187 = sphi %s165, %s165
              $region35: #{bert_encoder_forward.13} parent=31 // loop_header_branch
                %184 = sbr.rel (%p182) target = $region39
              $region36: #{bert_encoder_forward.13} parent=31 // loop_body
                %v188 = vld [vmem:[%s186] sm:%s179]
                %189 = vst [vmem:[%s187] sm:%s179] %v188
                %v190 = vld [vmem:[%s186 + $0x6] sm:%s179]
                %191 = vst [vmem:[%s187 + $0x2] sm:%s179] %v190
                %v192 = vld [vmem:[%s186 + $0xc] sm:%s179]
                %193 = vst [vmem:[%s187 + $0x4] sm:%s179] %v192
                %v194 = vld [vmem:[%s186 + $0x12] sm:%s179]
                %195 = vst [vmem:[%s187 + $0x6] sm:%s179] %v194
                %v196 = vld [vmem:[%s186 + $0x18] sm:%s179]
                %197 = vst [vmem:[%s187 + $0x8] sm:%s179] %v196
                %v198 = vld [vmem:[%s186 + $0x1e] sm:%s179]
                %199 = vst [vmem:[%s187 + $0xa] sm:%s179] %v198
                %v200 = vld [vmem:[%s186 + $0x24] sm:%s179]
                %201 = vst [vmem:[%s187 + $0xc] sm:%s179] %v200
                %v202 = vld [vmem:[%s186 + $0x2a] sm:%s179]
                %203 = vst [vmem:[%s187 + $0xe] sm:%s179] %v202
              $region37: #{bert_encoder_forward.13} parent=31 // loop_footer
                %s185 = sadd.s32 1, %s181
              $region38: #{bert_encoder_forward.13} parent=31 // loop_footer_branch
                %180 = sbr.rel target = $region34
              $region39: #{bert_encoder_forward.13} parent=31 // loop_exit
                _
            $region32: #{bert_encoder_forward.13} parent=23 // pred_fallthru
              _
          $region24: #{bert_encoder_forward.13} parent=19 // pred_fallthru
            _
          %240 = vnop
        $region20: #{bert_encoder_forward.13} parent=15 // pred_fallthru
          _
        // Predicated region
        $region58: #{bert_encoder_forward.13} parent=15 // pred_check
          %p241 = pneg %p78
        $region59: #{bert_encoder_forward.13} parent=15 // pred_check_branch
          %243 = sbr.rel (%p241) target = $region61
        $region60: #{bert_encoder_forward.13} parent=15 // pred_region
          %s244 = sand.u32 %s68, 1
          %s245 = sand.u32 %s68, 1
          %s246 = smul.addr %s245, 16
          %s247 = scalar_lea.vmem [#allocation6], %s246
          %s248 = smul.u32 8, %s18
          %s249 = smul.addr %s248, 3
          %s250 = sadd.s32 1, %s249
          %s251 = smul.addr %s16, 24
          %s252 = sadd.s32 %s250, %s251
          %s253 = smul.addr %s252, 2
          %s254 = scalar_lea.vmem %s1, %s253
          // Predicated region
          $region62: #{bert_encoder_forward.13} parent=60 // pred_check
            _
          $region63: #{bert_encoder_forward.13} parent=60 // pred_check_branch
            %256 = sbr.rel (0) target = $region65
          $region64: #{bert_encoder_forward.13} parent=60 // pred_region
            // Predicated region
            $region66: #{bert_encoder_forward.13} parent=64 // pred_check
              _
            $region67: #{bert_encoder_forward.13} parent=64 // pred_check_branch
              %258 = sbr.rel target = $region69
            $region68: #{bert_encoder_forward.13} parent=64 // pred_region
              // Predicated region
              $region81: #{bert_encoder_forward.13} parent=68 // pred_check
                _
              $region82: #{bert_encoder_forward.13} parent=68 // pred_check_branch
                %288 = sbr.rel (0) target = $region84
              $region83: #{bert_encoder_forward.13} parent=68 // pred_region
                loop: start=0, step=1, limit=1
                $region85: #{bert_encoder_forward.13} parent=83 // loop_pre_header
                  _
                $region86: #{bert_encoder_forward.13} parent=83 // loop_header
                  %s290 = sphi 0, %s294
                  %p291 = scmp.ge.s32.totalorder %s290, 1
                  %s295 = sphi %s254, %s254
                  %s296 = sphi %s247, %s247
                $region87: #{bert_encoder_forward.13} parent=83 // loop_header_branch
                  %293 = sbr.rel (%p291) target = $region91
                $region88: #{bert_encoder_forward.13} parent=83 // loop_body
                  _
                $region89: #{bert_encoder_forward.13} parent=83 // loop_footer
                  %s294 = sadd.s32 1, %s290
                $region90: #{bert_encoder_forward.13} parent=83 // loop_footer_branch
                  %289 = sbr.rel target = $region86
                $region91: #{bert_encoder_forward.13} parent=83 // loop_exit
                  _
                %s298 = ssub.s32 4, 1
                loop: start=0, step=1, limit=1
                $region92: #{bert_encoder_forward.13} parent=83 // loop_pre_header
                  _
                $region93: #{bert_encoder_forward.13} parent=83 // loop_header
                  %s300 = sphi 0, %s304
                  %p301 = scmp.ge.s32.totalorder %s300, 1
                  %s305 = sphi %s254, %s254
                  %s306 = sphi %s247, %s247
                $region94: #{bert_encoder_forward.13} parent=83 // loop_header_branch
                  %303 = sbr.rel (%p301) target = $region98
                $region95: #{bert_encoder_forward.13} parent=83 // loop_body
                  %v307 = vld [vmem:[%s305] sm:%s298]
                  %308 = vst [vmem:[%s306] sm:%s298] %v307
                  %v309 = vld [vmem:[%s305 + $0x6] sm:%s298]
                  %310 = vst [vmem:[%s306 + $0x2] sm:%s298] %v309
                  %v311 = vld [vmem:[%s305 + $0xc] sm:%s298]
                  %312 = vst [vmem:[%s306 + $0x4] sm:%s298] %v311
                  %v313 = vld [vmem:[%s305 + $0x12] sm:%s298]
                  %314 = vst [vmem:[%s306 + $0x6] sm:%s298] %v313
                  %v315 = vld [vmem:[%s305 + $0x18] sm:%s298]
                  %316 = vst [vmem:[%s306 + $0x8] sm:%s298] %v315
                  %v317 = vld [vmem:[%s305 + $0x1e] sm:%s298]
                  %318 = vst [vmem:[%s306 + $0xa] sm:%s298] %v317
                  %v319 = vld [vmem:[%s305 + $0x24] sm:%s298]
                  %320 = vst [vmem:[%s306 + $0xc] sm:%s298] %v319
                  %v321 = vld [vmem:[%s305 + $0x2a] sm:%s298]
                  %322 = vst [vmem:[%s306 + $0xe] sm:%s298] %v321
                $region96: #{bert_encoder_forward.13} parent=83 // loop_footer
                  %s304 = sadd.s32 1, %s300
                $region97: #{bert_encoder_forward.13} parent=83 // loop_footer_branch
                  %299 = sbr.rel target = $region93
                $region98: #{bert_encoder_forward.13} parent=83 // loop_exit
                  _
              $region84: #{bert_encoder_forward.13} parent=68 // pred_fallthru
                _
            $region69: #{bert_encoder_forward.13} parent=64 // pred_fallthru
              _
            // Predicated region
            $region70: #{bert_encoder_forward.13} parent=64 // pred_check
              _
            $region71: #{bert_encoder_forward.13} parent=64 // pred_check_branch
              %260 = sbr.rel (0) target = $region73
            $region72: #{bert_encoder_forward.13} parent=64 // pred_region
              %s262 = ssub.s32 4, 1
              loop: start=0, step=1, limit=1
              $region74: #{bert_encoder_forward.13} parent=72 // loop_pre_header
                _
              $region75: #{bert_encoder_forward.13} parent=72 // loop_header
                %s264 = sphi 0, %s268
                %p265 = scmp.ge.s32.totalorder %s264, 1
                %s269 = sphi %s254, %s254
                %s270 = sphi %s247, %s247
              $region76: #{bert_encoder_forward.13} parent=72 // loop_header_branch
                %267 = sbr.rel (%p265) target = $region80
              $region77: #{bert_encoder_forward.13} parent=72 // loop_body
                %v271 = vld [vmem:[%s269] sm:%s262]
                %272 = vst [vmem:[%s270] sm:%s262] %v271
                %v273 = vld [vmem:[%s269 + $0x6] sm:%s262]
                %274 = vst [vmem:[%s270 + $0x2] sm:%s262] %v273
                %v275 = vld [vmem:[%s269 + $0xc] sm:%s262]
                %276 = vst [vmem:[%s270 + $0x4] sm:%s262] %v275
                %v277 = vld [vmem:[%s269 + $0x12] sm:%s262]
                %278 = vst [vmem:[%s270 + $0x6] sm:%s262] %v277
                %v279 = vld [vmem:[%s269 + $0x18] sm:%s262]
                %280 = vst [vmem:[%s270 + $0x8] sm:%s262] %v279
                %v281 = vld [vmem:[%s269 + $0x1e] sm:%s262]
                %282 = vst [vmem:[%s270 + $0xa] sm:%s262] %v281
                %v283 = vld [vmem:[%s269 + $0x24] sm:%s262]
                %284 = vst [vmem:[%s270 + $0xc] sm:%s262] %v283
                %v285 = vld [vmem:[%s269 + $0x2a] sm:%s262]
                %286 = vst [vmem:[%s270 + $0xe] sm:%s262] %v285
              $region78: #{bert_encoder_forward.13} parent=72 // loop_footer
                %s268 = sadd.s32 1, %s264
              $region79: #{bert_encoder_forward.13} parent=72 // loop_footer_branch
                %263 = sbr.rel target = $region75
              $region80: #{bert_encoder_forward.13} parent=72 // loop_exit
                _
            $region73: #{bert_encoder_forward.13} parent=64 // pred_fallthru
              _
          $region65: #{bert_encoder_forward.13} parent=60 // pred_fallthru
            _
          %323 = vnop
        $region61: #{bert_encoder_forward.13} parent=15 // pred_fallthru
          _
        // Predicated region
        $region99: #{bert_encoder_forward.13} parent=15 // pred_check
          %p324 = pneg %p106
        $region100: #{bert_encoder_forward.13} parent=15 // pred_check_branch
          %326 = sbr.rel (%p324) target = $region102
        $region101: #{bert_encoder_forward.13} parent=15 // pred_region
          %s327 = sand.u32 %s96, 1
          %s328 = sand.u32 %s96, 1
          %s329 = smul.addr %s328, 16
          %s330 = scalar_lea.vmem [#allocation7], %s329
          %s331 = smul.u32 8, %s18
          %s332 = smul.addr %s331, 3
          %s333 = sadd.s32 2, %s332
          %s334 = smul.addr %s16, 24
          %s335 = sadd.s32 %s333, %s334
          %s336 = smul.addr %s335, 2
          %s337 = scalar_lea.vmem %s2, %s336
          // Predicated region
          $region103: #{bert_encoder_forward.13} parent=101 // pred_check
            _
          $region104: #{bert_encoder_forward.13} parent=101 // pred_check_branch
            %339 = sbr.rel (0) target = $region106
          $region105: #{bert_encoder_forward.13} parent=101 // pred_region
            // Predicated region
            $region107: #{bert_encoder_forward.13} parent=105 // pred_check
              _
            $region108: #{bert_encoder_forward.13} parent=105 // pred_check_branch
              %341 = sbr.rel target = $region110
            $region109: #{bert_encoder_forward.13} parent=105 // pred_region
              // Predicated region
              $region122: #{bert_encoder_forward.13} parent=109 // pred_check
                _
              $region123: #{bert_encoder_forward.13} parent=109 // pred_check_branch
                %371 = sbr.rel (0) target = $region125
              $region124: #{bert_encoder_forward.13} parent=109 // pred_region
                loop: start=0, step=1, limit=1
                $region126: #{bert_encoder_forward.13} parent=124 // loop_pre_header
                  _
                $region127: #{bert_encoder_forward.13} parent=124 // loop_header
                  %s373 = sphi 0, %s377
                  %p374 = scmp.ge.s32.totalorder %s373, 1
                  %s378 = sphi %s337, %s337
                  %s379 = sphi %s330, %s330
                $region128: #{bert_encoder_forward.13} parent=124 // loop_header_branch
                  %376 = sbr.rel (%p374) target = $region132
                $region129: #{bert_encoder_forward.13} parent=124 // loop_body
                  _
                $region130: #{bert_encoder_forward.13} parent=124 // loop_footer
                  %s377 = sadd.s32 1, %s373
                $region131: #{bert_encoder_forward.13} parent=124 // loop_footer_branch
                  %372 = sbr.rel target = $region127
                $region132: #{bert_encoder_forward.13} parent=124 // loop_exit
                  _
                %s381 = ssub.s32 4, 1
                loop: start=0, step=1, limit=1
                $region133: #{bert_encoder_forward.13} parent=124 // loop_pre_header
                  _
                $region134: #{bert_encoder_forward.13} parent=124 // loop_header
                  %s383 = sphi 0, %s387
                  %p384 = scmp.ge.s32.totalorder %s383, 1
                  %s388 = sphi %s337, %s337
                  %s389 = sphi %s330, %s330
                $region135: #{bert_encoder_forward.13} parent=124 // loop_header_branch
                  %386 = sbr.rel (%p384) target = $region139
                $region136: #{bert_encoder_forward.13} parent=124 // loop_body
                  %v390 = vld [vmem:[%s388] sm:%s381]
                  %391 = vst [vmem:[%s389] sm:%s381] %v390
                  %v392 = vld [vmem:[%s388 + $0x6] sm:%s381]
                  %393 = vst [vmem:[%s389 + $0x2] sm:%s381] %v392
                  %v394 = vld [vmem:[%s388 + $0xc] sm:%s381]
                  %395 = vst [vmem:[%s389 + $0x4] sm:%s381] %v394
                  %v396 = vld [vmem:[%s388 + $0x12] sm:%s381]
                  %397 = vst [vmem:[%s389 + $0x6] sm:%s381] %v396
                  %v398 = vld [vmem:[%s388 + $0x18] sm:%s381]
                  %399 = vst [vmem:[%s389 + $0x8] sm:%s381] %v398
                  %v400 = vld [vmem:[%s388 + $0x1e] sm:%s381]
                  %401 = vst [vmem:[%s389 + $0xa] sm:%s381] %v400
                  %v402 = vld [vmem:[%s388 + $0x24] sm:%s381]
                  %403 = vst [vmem:[%s389 + $0xc] sm:%s381] %v402
                  %v404 = vld [vmem:[%s388 + $0x2a] sm:%s381]
                  %405 = vst [vmem:[%s389 + $0xe] sm:%s381] %v404
                $region137: #{bert_encoder_forward.13} parent=124 // loop_footer
                  %s387 = sadd.s32 1, %s383
                $region138: #{bert_encoder_forward.13} parent=124 // loop_footer_branch
                  %382 = sbr.rel target = $region134
                $region139: #{bert_encoder_forward.13} parent=124 // loop_exit
                  _
              $region125: #{bert_encoder_forward.13} parent=109 // pred_fallthru
                _
            $region110: #{bert_encoder_forward.13} parent=105 // pred_fallthru
              _
            // Predicated region
            $region111: #{bert_encoder_forward.13} parent=105 // pred_check
              _
            $region112: #{bert_encoder_forward.13} parent=105 // pred_check_branch
              %343 = sbr.rel (0) target = $region114
            $region113: #{bert_encoder_forward.13} parent=105 // pred_region
              %s345 = ssub.s32 4, 1
              loop: start=0, step=1, limit=1
              $region115: #{bert_encoder_forward.13} parent=113 // loop_pre_header
                _
              $region116: #{bert_encoder_forward.13} parent=113 // loop_header
                %s347 = sphi 0, %s351
                %p348 = scmp.ge.s32.totalorder %s347, 1
                %s352 = sphi %s337, %s337
                %s353 = sphi %s330, %s330
              $region117: #{bert_encoder_forward.13} parent=113 // loop_header_branch
                %350 = sbr.rel (%p348) target = $region121
              $region118: #{bert_encoder_forward.13} parent=113 // loop_body
                %v354 = vld [vmem:[%s352] sm:%s345]
                %355 = vst [vmem:[%s353] sm:%s345] %v354
                %v356 = vld [vmem:[%s352 + $0x6] sm:%s345]
                %357 = vst [vmem:[%s353 + $0x2] sm:%s345] %v356
                %v358 = vld [vmem:[%s352 + $0xc] sm:%s345]
                %359 = vst [vmem:[%s353 + $0x4] sm:%s345] %v358
                %v360 = vld [vmem:[%s352 + $0x12] sm:%s345]
                %361 = vst [vmem:[%s353 + $0x6] sm:%s345] %v360
                %v362 = vld [vmem:[%s352 + $0x18] sm:%s345]
                %363 = vst [vmem:[%s353 + $0x8] sm:%s345] %v362
                %v364 = vld [vmem:[%s352 + $0x1e] sm:%s345]
                %365 = vst [vmem:[%s353 + $0xa] sm:%s345] %v364
                %v366 = vld [vmem:[%s352 + $0x24] sm:%s345]
                %367 = vst [vmem:[%s353 + $0xc] sm:%s345] %v366
                %v368 = vld [vmem:[%s352 + $0x2a] sm:%s345]
                %369 = vst [vmem:[%s353 + $0xe] sm:%s345] %v368
              $region119: #{bert_encoder_forward.13} parent=113 // loop_footer
                %s351 = sadd.s32 1, %s347
              $region120: #{bert_encoder_forward.13} parent=113 // loop_footer_branch
                %346 = sbr.rel target = $region116
              $region121: #{bert_encoder_forward.13} parent=113 // loop_exit
                _
            $region114: #{bert_encoder_forward.13} parent=105 // pred_fallthru
              _
          $region106: #{bert_encoder_forward.13} parent=101 // pred_fallthru
            _
          %406 = vnop
        $region102: #{bert_encoder_forward.13} parent=15 // pred_fallthru
          _
      $region16: #{bert_encoder_forward.13} parent=5 // pred_fallthru
        _
      %p407 = scmp.le.s32.totalorder 1, %s9
      %p408 = scmp.lt.s32.totalorder %s9, 3
      %p409 = pnand %p407, %p408
      %p410 = pneg %p409
      // Predicated region
      $region140: #{bert_encoder_forward.13} parent=5 // pred_check
        _
      $region141: #{bert_encoder_forward.13} parent=5 // pred_check_branch
        %412 = sbr.rel (%p409) target = $region143
      $region142: #{bert_encoder_forward.13} parent=5 // pred_region
        %s413 = ssub.s32 %s9, 1
        %s414 = sand.u32 %s43, 1
        %s415 = sand.u32 %s43, 1
        %s416 = smul.addr %s415, 16
        %s417 = scalar_lea.vmem [#allocation5], %s416
        // Predicated region
        $region144: #{bert_encoder_forward.13} parent=142 // pred_check
          %p418 = pneg %p56
        $region145: #{bert_encoder_forward.13} parent=142 // pred_check_branch
          %420 = sbr.rel (%p418) target = $region147
        $region146: #{bert_encoder_forward.13} parent=142 // pred_region
          _
        $region147: #{bert_encoder_forward.13} parent=142 // pred_fallthru
          _
        %s421 = sand.u32 %s71, 1
        %s422 = sand.u32 %s71, 1
        %s423 = smul.addr %s422, 16
        %s424 = scalar_lea.vmem [#allocation6], %s423
        // Predicated region
        $region148: #{bert_encoder_forward.13} parent=142 // pred_check
          %p425 = pneg %p84
        $region149: #{bert_encoder_forward.13} parent=142 // pred_check_branch
          %427 = sbr.rel (%p425) target = $region151
        $region150: #{bert_encoder_forward.13} parent=142 // pred_region
          _
        $region151: #{bert_encoder_forward.13} parent=142 // pred_fallthru
          _
        %s428 = sand.u32 %s99, 1
        %s429 = sand.u32 %s99, 1
        %s430 = smul.addr %s429, 16
        %s431 = scalar_lea.vmem [#allocation7], %s430
        // Predicated region
        $region152: #{bert_encoder_forward.13} parent=142 // pred_check
          %p432 = pneg %p112
        $region153: #{bert_encoder_forward.13} parent=142 // pred_check_branch
          %434 = sbr.rel (%p432) target = $region155
        $region154: #{bert_encoder_forward.13} parent=142 // pred_region
          _
        $region155: #{bert_encoder_forward.13} parent=142 // pred_fallthru
          _
        %s435 = sand.u32 %s43, 1
        %s436 = sand.u32 %s43, 1
        %s437 = smul.addr %s436, 16
        %s438 = scalar_lea.vmem [#allocation5], %s437
        %p439 = pneg %p56
        %p440 = pneg %p53
        %s441 = sand.u32 %s71, 1
        %s442 = sand.u32 %s71, 1
        %s443 = smul.addr %s442, 16
        %s444 = scalar_lea.vmem [#allocation6], %s443
        %p445 = pneg %p84
        %p446 = pneg %p81
        %s447 = sand.u32 %s99, 1
        %s448 = sand.u32 %s99, 1
        %s449 = smul.addr %s448, 16
        %s450 = scalar_lea.vmem [#allocation7], %s449
        %p451 = pneg %p112
        %p452 = pneg %p109
        %p453 = pneg %p140
        %p454 = pneg %p137
        %s455 = smul.u32 8, %s20
        %p456 = scmp.lt.s32.totalorder %s19, 1
        %s457 = scalar_select %p456, %s19, 1
        %p458 = scmp.lt.s32.totalorder %s455, 7
        %s459 = scalar_select %p458, %s455, 7
        %s460 = smul.addr %s457, 8
        %s461 = sadd.s32 %s459, %s460
        %s462 = smul.addr %s461, 2
        %s463 = scalar_lea.vmem %s3, %s462
        %s464 = smul.u32 8, %s20
        %s465 = smul.u32 8, %s21
        %s466 = smul.u32 8, %s21
        %s467 = smul.u32 8, %s20
        %p468 = scmp.lt.s32.totalorder %s19, 1
        %s469 = scalar_select %p468, %s19, 1
        %p470 = scmp.lt.s32.totalorder %s467, 7
        %s471 = scalar_select %p470, %s467, 7
        %s472 = smul.addr %s469, 8
        %s473 = sadd.s32 %s471, %s472
        %s474 = smul.addr %s473, 2
        %s475 = scalar_lea.vmem %s3, %s474
        %s476 = smul.u32 8, %s20
        %p478 = scmp.eq.s32.totalorder %s21, 0
        // Predicated region
        $region156: #{bert_encoder_forward.13} parent=142 // pred_check
          %p479 = pneg %p478
        $region157: #{bert_encoder_forward.13} parent=142 // pred_check_branch
          %481 = sbr.rel (%p479) target = $region159
        $region158: #{bert_encoder_forward.13} parent=142 // pred_region
          %vm482 = vcmask 7168
          %483 = vst.msk [vmem:[#allocation2] sm:$0xff] %vm482, -inf
          %484 = vst.msk [vmem:[#allocation2 + $0x8] sm:$0xff] %vm482, -inf
          %485 = vst.msk [vmem:[#allocation2 + $0x10] sm:$0xff] %vm482, -inf
          %486 = vst.msk [vmem:[#allocation2 + $0x18] sm:$0xff] %vm482, -inf
          %487 = vst.msk [vmem:[#allocation3] sm:$0xff] %vm482, 0.0
          %488 = vst.msk [vmem:[#allocation3 + $0x8] sm:$0xff] %vm482, 0.0
          %489 = vst.msk [vmem:[#allocation3 + $0x10] sm:$0xff] %vm482, 0.0
          %490 = vst.msk [vmem:[#allocation3 + $0x18] sm:$0xff] %vm482, 0.0
          %vm491 = vcmask 64512
          %492 = vst.msk [vmem:[#allocation4] sm:$0xff] %vm491, 0.0
          %493 = vst.msk [vmem:[#allocation4 + $0x8] sm:$0xff] %vm491, 0.0
          %494 = vst.msk [vmem:[#allocation4 + $0x10] sm:$0xff] %vm491, 0.0
          %495 = vst.msk [vmem:[#allocation4 + $0x18] sm:$0xff] %vm491, 0.0
        $region159: #{bert_encoder_forward.13} parent=142 // pred_fallthru
          _
        %v496 = vld [vmem:[%s417] sm:$0x3]
        %v497 = vld [vmem:[%s417 + $0x2] sm:$0x3]
        %v498 = vld [vmem:[%s417 + $0x4] sm:$0x3]
        %v499 = vld [vmem:[%s417 + $0x6] sm:$0x3]
        %v500 = vld [vmem:[%s417 + $0x8] sm:$0x3]
        %v501 = vld [vmem:[%s417 + $0xa] sm:$0x3]
        %v502 = vld [vmem:[%s417 + $0xc] sm:$0x3]
        %v503 = vld [vmem:[%s417 + $0xe] sm:$0x3]
        %v504 = vrot.slane %v498, 4
        %vm505 = vcmask 1047556
        %v506 = vsel %vm505, %v504, %v496
        %v508 = vunpack.c.l.s4 1934713408
        %v509 = vunpack.c.0.s8 %v508
        %v510 = vperm.slane %v506, %v509
        %v511 = vrot.slane %v510, 4
        %v512 = vsel %vm505, 0, %v511
        %v513 = vrot.slane %v499, 4
        %v514 = vsel %vm505, %v513, %v497
        %v516 = vunpack.c.l.s4 1934713408
        %v517 = vunpack.c.0.s8 %v516
        %v518 = vperm.slane %v514, %v517
        %v519 = vrot.slane %v518, 4
        %v520 = vsel %vm505, 0, %v519
        %v521 = vrot.slane %v502, 4
        %v522 = vsel %vm505, %v521, %v500
        %v524 = vunpack.c.l.s4 1934713408
        %v525 = vunpack.c.0.s8 %v524
        %v526 = vperm.slane %v522, %v525
        %v527 = vrot.slane %v526, 4
        %v528 = vsel %vm505, 0, %v527
        %v529 = vrot.slane %v503, 4
        %v530 = vsel %vm505, %v529, %v501
        %v532 = vunpack.c.l.s4 1934713408
        %v533 = vunpack.c.0.s8 %v532
        %v534 = vperm.slane %v530, %v533
        %v535 = vrot.slane %v534, 4
        %v536 = vsel %vm505, 0, %v535
        %v539 = vpack.i.b16 %v518, %v510
        %v540 = vshrl.u32 %v510, 16
        %v541 = vshrl.u32 %v518, 16
        %v542 = vpack.i.b16 %v541, %v540
        %v545 = vpack.i.b16 %v520, %v512
        %v546 = vshrl.u32 %v512, 16
        %v547 = vshrl.u32 %v520, 16
        %v548 = vpack.i.b16 %v547, %v546
        %v551 = vpack.i.b16 %v534, %v526
        %v552 = vshrl.u32 %v526, 16
        %v553 = vshrl.u32 %v534, 16
        %v554 = vpack.i.b16 %v553, %v552
        %v557 = vpack.i.b16 %v536, %v528
        %v558 = vshrl.u32 %v528, 16
        %v559 = vshrl.u32 %v536, 16
        %v560 = vpack.i.b16 %v559, %v558
        %v561 = vld [vmem:[%s424] sm:$0x3]
        %v562 = vld [vmem:[%s424 + $0x2] sm:$0x3]
        %v563 = vld [vmem:[%s424 + $0x4] sm:$0x3]
        %v564 = vld [vmem:[%s424 + $0x6] sm:$0x3]
        %v565 = vld [vmem:[%s424 + $0x8] sm:$0x3]
        %v566 = vld [vmem:[%s424 + $0xa] sm:$0x3]
        %v567 = vld [vmem:[%s424 + $0xc] sm:$0x3]
        %v568 = vld [vmem:[%s424 + $0xe] sm:$0x3]
        %v569 = vrot.slane %v563, 4
        %v570 = vsel %vm505, %v569, %v561
        %v572 = vunpack.c.l.s4 1934713408
        %v573 = vunpack.c.0.s8 %v572
        %v574 = vperm.slane %v570, %v573
        %v575 = vrot.slane %v574, 4
        %v576 = vsel %vm505, 0, %v575
        %v577 = vrot.slane %v564, 4
        %v578 = vsel %vm505, %v577, %v562
        %v580 = vunpack.c.l.s4 1934713408
        %v581 = vunpack.c.0.s8 %v580
        %v582 = vperm.slane %v578, %v581
        %v583 = vrot.slane %v582, 4
        %v584 = vsel %vm505, 0, %v583
        %v585 = vrot.slane %v567, 4
        %v586 = vsel %vm505, %v585, %v565
        %v588 = vunpack.c.l.s4 1934713408
        %v589 = vunpack.c.0.s8 %v588
        %v590 = vperm.slane %v586, %v589
        %v591 = vrot.slane %v590, 4
        %v592 = vsel %vm505, 0, %v591
        %v593 = vrot.slane %v568, 4
        %v594 = vsel %vm505, %v593, %v566
        %v596 = vunpack.c.l.s4 1934713408
        %v597 = vunpack.c.0.s8 %v596
        %v598 = vperm.slane %v594, %v597
        %v599 = vrot.slane %v598, 4
        %v600 = vsel %vm505, 0, %v599
        %v603 = vpack.i.b16 %v582, %v574
        %v604 = vshrl.u32 %v574, 16
        %v605 = vshrl.u32 %v582, 16
        %v606 = vpack.i.b16 %v605, %v604
        %v609 = vpack.i.b16 %v584, %v576
        %v610 = vshrl.u32 %v576, 16
        %v611 = vshrl.u32 %v584, 16
        %v612 = vpack.i.b16 %v611, %v610
        %v615 = vpack.i.b16 %v598, %v590
        %v616 = vshrl.u32 %v590, 16
        %v617 = vshrl.u32 %v598, 16
        %v618 = vpack.i.b16 %v617, %v616
        %v621 = vpack.i.b16 %v600, %v592
        %v622 = vshrl.u32 %v592, 16
        %v623 = vshrl.u32 %v600, 16
        %v624 = vpack.i.b16 %v623, %v622
        %v625 = vld [vmem:[%s431] sm:$0x3]
        %v626 = vld [vmem:[%s431 + $0x2] sm:$0x3]
        %v627 = vld [vmem:[%s431 + $0x4] sm:$0x3]
        %v628 = vld [vmem:[%s431 + $0x6] sm:$0x3]
        %v629 = vld [vmem:[%s431 + $0x8] sm:$0x3]
        %v630 = vld [vmem:[%s431 + $0xa] sm:$0x3]
        %v631 = vld [vmem:[%s431 + $0xc] sm:$0x3]
        %v632 = vld [vmem:[%s431 + $0xe] sm:$0x3]
        %v633 = vrot.slane %v627, 4
        %v634 = vsel %vm505, %v633, %v625
        %v636 = vunpack.c.l.s4 1934713408
        %v637 = vunpack.c.0.s8 %v636
        %v638 = vperm.slane %v634, %v637
        %v639 = vrot.slane %v638, 4
        %v640 = vsel %vm505, 0, %v639
        %v641 = vrot.slane %v628, 4
        %v642 = vsel %vm505, %v641, %v626
        %v644 = vunpack.c.l.s4 1934713408
        %v645 = vunpack.c.0.s8 %v644
        %v646 = vperm.slane %v642, %v645
        %v647 = vrot.slane %v646, 4
        %v648 = vsel %vm505, 0, %v647
        %v649 = vrot.slane %v631, 4
        %v650 = vsel %vm505, %v649, %v629
        %v652 = vunpack.c.l.s4 1934713408
        %v653 = vunpack.c.0.s8 %v652
        %v654 = vperm.slane %v650, %v653
        %v655 = vrot.slane %v654, 4
        %v656 = vsel %vm505, 0, %v655
        %v657 = vrot.slane %v632, 4
        %v658 = vsel %vm505, %v657, %v630
        %v660 = vunpack.c.l.s4 1934713408
        %v661 = vunpack.c.0.s8 %v660
        %v662 = vperm.slane %v658, %v661
        %v663 = vrot.slane %v662, 4
        %v664 = vsel %vm505, 0, %v663
        %v667 = vpack.i.b16 %v646, %v638
        %v668 = vshrl.u32 %v638, 16
        %v669 = vshrl.u32 %v646, 16
        %v670 = vpack.i.b16 %v669, %v668
        %v673 = vpack.i.b16 %v648, %v640
        %v674 = vshrl.u32 %v640, 16
        %v675 = vshrl.u32 %v648, 16
        %v676 = vpack.i.b16 %v675, %v674
        %v679 = vpack.i.b16 %v662, %v654
        %v680 = vshrl.u32 %v654, 16
        %v681 = vshrl.u32 %v662, 16
        %v682 = vpack.i.b16 %v681, %v680
        %v685 = vpack.i.b16 %v664, %v656
        %v686 = vshrl.u32 %v656, 16
        %v687 = vshrl.u32 %v664, 16
        %v688 = vpack.i.b16 %v687, %v686
        %690 = vst [vmem:[#allocation1] ss:$4 sm:$0xff] %v539
        %s692 = scalar_lea.vmem [#allocation1], 1
        %693 = vst [vmem:[%s692] ss:$4 sm:$0xff] %v551
        %v694 = vld.sshfl [vmem:[#allocation1] sm:$0xff pattern:$0x73625140]
        %696 = vst [vmem:[#allocation1] ss:$4 sm:$0xff] %v603
        %s698 = scalar_lea.vmem [#allocation1], 1
        %699 = vst [vmem:[%s698] ss:$4 sm:$0xff] %v615
        %v700 = vld.sshfl [vmem:[#allocation1] sm:$0xff pattern:$0x73625140]
        %vm701 = vcmask 64512
        %v702 = vsel %vm701, %v694, 0
        %v704 = vsel %vm701, %v700, 0
        %706 = vmatpush.bf16.xpose.msra.mxu0 0
        %707 = vmatpush.bf16.xpose.msra.mxu0 0
        %708 = vmatpush.bf16.xpose.msra.mxu0 0
        %709 = vmatpush.bf16.xpose.msra.mxu0 0
        %710 = vmatpush.bf16.xpose.msra.mxu0 0
        %711 = vmatpush.bf16.xpose.msra.mxu0 0
        %712 = vmatpush.bf16.xpose.msra.mxu0 0
        %713 = vmatpush.bf16.xpose.msra.mxu0 %v704
        %714 = vmatmul.bf16.gmra.mxu0 %v702
        %v715 = vpop.f32.mrf.mxu0
        %v716 = vadd.f32 0.0, %v715
        %v717 = vpop.f32.mrf.mxu0
        %718 = vdwg.mxu0
        %720 = vst [vmem:[#allocation1] ss:$4 sm:$0xff] %v542
        %s722 = scalar_lea.vmem [#allocation1], 1
        %723 = vst [vmem:[%s722] ss:$4 sm:$0xff] %v554
        %v724 = vld.sshfl [vmem:[#allocation1] sm:$0xff pattern:$0x73625140]
        %726 = vst [vmem:[#allocation1] ss:$4 sm:$0xff] %v606
        %s728 = scalar_lea.vmem [#allocation1], 1
        %729 = vst [vmem:[%s728] ss:$4 sm:$0xff] %v618
        %v730 = vld.sshfl [vmem:[#allocation1] sm:$0xff pattern:$0x73625140]
        %v731 = vsel %vm701, %v724, 0
        %v733 = vsel %vm701, %v730, 0
        %735 = vmatpush.bf16.xpose.msra.mxu0 0
        %736 = vmatpush.bf16.xpose.msra.mxu0 0
        %737 = vmatpush.bf16.xpose.msra.mxu0 0
        %738 = vmatpush.bf16.xpose.msra.mxu0 0
        %739 = vmatpush.bf16.xpose.msra.mxu0 0
        %740 = vmatpush.bf16.xpose.msra.mxu0 0
        %741 = vmatpush.bf16.xpose.msra.mxu0 0
        %742 = vmatpush.bf16.xpose.msra.mxu0 %v733
        %743 = vmatmul.bf16.gmra.mxu0 %v731
        %v744 = vpop.f32.mrf.mxu0
        %v745 = vadd.f32 0.0, %v744
        %v746 = vpop.f32.mrf.mxu0
        %747 = vdwg.mxu0
        %749 = vst [vmem:[#allocation1] ss:$4 sm:$0xff] %v545
        %s751 = scalar_lea.vmem [#allocation1], 1
        %752 = vst [vmem:[%s751] ss:$4 sm:$0xff] %v557
        %v753 = vld.sshfl [vmem:[#allocation1] sm:$0xff pattern:$0x73625140]
        %755 = vst [vmem:[#allocation1] ss:$4 sm:$0xff] %v609
        %s757 = scalar_lea.vmem [#allocation1], 1
        %758 = vst [vmem:[%s757] ss:$4 sm:$0xff] %v621
        %v759 = vld.sshfl [vmem:[#allocation1] sm:$0xff pattern:$0x73625140]
        %v760 = vsel %vm701, %v753, 0
        %v762 = vsel %vm701, %v759, 0
        %764 = vmatpush.bf16.xpose.msra.mxu0 0
        %765 = vmatpush.bf16.xpose.msra.mxu0 0
        %766 = vmatpush.bf16.xpose.msra.mxu0 0
        %767 = vmatpush.bf16.xpose.msra.mxu0 0
        %768 = vmatpush.bf16.xpose.msra.mxu0 0
        %769 = vmatpush.bf16.xpose.msra.mxu0 0
        %770 = vmatpush.bf16.xpose.msra.mxu0 0
        %771 = vmatpush.bf16.xpose.msra.mxu0 %v762
        %772 = vmatmul.bf16.gmra.mxu0 %v760
        %v773 = vpop.f32.mrf.mxu0
        %v774 = vadd.f32 0.0, %v773
        %v775 = vpop.f32.mrf.mxu0
        %776 = vdwg.mxu0
        %778 = vst [vmem:[#allocation1] ss:$4 sm:$0xff] %v548
        %s780 = scalar_lea.vmem [#allocation1], 1
        %781 = vst [vmem:[%s780] ss:$4 sm:$0xff] %v560
        %v782 = vld.sshfl [vmem:[#allocation1] sm:$0xff pattern:$0x73625140]
        %784 = vst [vmem:[#allocation1] ss:$4 sm:$0xff] %v612
        %s786 = scalar_lea.vmem [#allocation1], 1
        %787 = vst [vmem:[%s786] ss:$4 sm:$0xff] %v624
        %v788 = vld.sshfl [vmem:[#allocation1] sm:$0xff pattern:$0x73625140]
        %v789 = vsel %vm701, %v782, 0
        %v791 = vsel %vm701, %v788, 0
        %793 = vmatpush.bf16.xpose.msra.mxu0 0
        %794 = vmatpush.bf16.xpose.msra.mxu0 0
        %795 = vmatpush.bf16.xpose.msra.mxu0 0
        %796 = vmatpush.bf16.xpose.msra.mxu0 0
        %797 = vmatpush.bf16.xpose.msra.mxu0 0
        %798 = vmatpush.bf16.xpose.msra.mxu0 0
        %799 = vmatpush.bf16.xpose.msra.mxu0 0
        %800 = vmatpush.bf16.xpose.msra.mxu0 %v791
        %801 = vmatmul.bf16.gmra.mxu0 %v789
        %v802 = vpop.f32.mrf.mxu0
        %v803 = vadd.f32 0.0, %v802
        %v804 = vpop.f32.mrf.mxu0
        %805 = vdwg.mxu0
        %v806 = vld [vmem:[#allocation2] sm:$0xff]
        %v807 = vld [vmem:[#allocation2 + $0x8] sm:$0xff]
        %v808 = vld [vmem:[#allocation2 + $0x10] sm:$0xff]
        %v809 = vld [vmem:[#allocation2 + $0x18] sm:$0xff]
        %v810 = vsel %vm701, %v716, -inf
        %811 = vmax.xlane.f32.xlu0 %v810
        %v812 = vpop.xlane.xlu0 %811
        %v813 = vsel %vm701, %v745, -inf
        %814 = vmax.xlane.f32.xlu0 %v813
        %v815 = vpop.xlane.xlu0 %814
        %v816 = vsel %vm701, %v774, -inf
        %817 = vmax.xlane.f32.xlu0 %v816
        %v818 = vpop.xlane.xlu0 %817
        %v819 = vsel %vm701, %v803, -inf
        %820 = vmax.xlane.f32.xlu0 %v819
        %v821 = vpop.xlane.xlu0 %820
        %v822 = vmax.f32 %v806, %v812
        %v823 = vmax.f32 %v807, %v815
        %v824 = vmax.f32 %v808, %v818
        %v825 = vmax.f32 %v809, %v821
        %v826 = vsub.f32 %v806, %v822
        %v827 = vsub.f32 %v807, %v823
        %v828 = vsub.f32 %v808, %v824
        %v829 = vsub.f32 %v809, %v825
        %v830 = vmul.f32 %v826, 1.442695
        %v831 = vpow.pop %v830
        %v832 = vmul.f32 %v827, 1.442695
        %v833 = vpow.pop %v832
        %v834 = vmul.f32 %v828, 1.442695
        %v835 = vpow.pop %v834
        %v836 = vmul.f32 %v829, 1.442695
        %v837 = vpow.pop %v836
        %839 = vset.pattern.permute.xlu0 0
        %840 = vperm.xlu0 %839, %v822
        %v841 = vpop.permute.xlu0 %840
        %844 = vset.pattern.permute.xlu0 0
        %845 = vperm.xlu0 %844, %v823
        %v846 = vpop.permute.xlu0 %845
        %849 = vset.pattern.permute.xlu0 0
        %850 = vperm.xlu0 %849, %v824
        %v851 = vpop.permute.xlu0 %850
        %854 = vset.pattern.permute.xlu0 0
        %855 = vperm.xlu0 %854, %v825
        %v856 = vpop.permute.xlu0 %855
        %v858 = vsub.f32 %v716, %v841
        %v859 = vsub.f32 %v745, %v846
        %v860 = vsub.f32 %v774, %v851
        %v861 = vsub.f32 %v803, %v856
        %v862 = vmul.f32 %v858, 1.442695
        %v863 = vpow.pop %v862
        %v864 = vmul.f32 %v859, 1.442695
        %v865 = vpow.pop %v864
        %v866 = vmul.f32 %v860, 1.442695
        %v867 = vpow.pop %v866
        %v868 = vmul.f32 %v861, 1.442695
        %v869 = vpow.pop %v868
        %v870 = vld [vmem:[#allocation3] sm:$0xff]
        %v871 = vld [vmem:[#allocation3 + $0x8] sm:$0xff]
        %v872 = vld [vmem:[#allocation3 + $0x10] sm:$0xff]
        %v873 = vld [vmem:[#allocation3 + $0x18] sm:$0xff]
        %v874 = vmul.f32 %v831, %v870
        %v875 = vmul.f32 %v833, %v871
        %v876 = vmul.f32 %v835, %v872
        %v877 = vmul.f32 %v837, %v873
        %v878 = vsel %vm701, %v863, 0.0
        %879 = vadd.xlane.f32.xlu0 %v878
        %v880 = vpop.xlane.xlu0 %879
        %v881 = vsel %vm701, %v865, 0.0
        %882 = vadd.xlane.f32.xlu0 %v881
        %v883 = vpop.xlane.xlu0 %882
        %v884 = vsel %vm701, %v867, 0.0
        %885 = vadd.xlane.f32.xlu0 %v884
        %v886 = vpop.xlane.xlu0 %885
        %v887 = vsel %vm701, %v869, 0.0
        %888 = vadd.xlane.f32.xlu0 %v887
        %v889 = vpop.xlane.xlu0 %888
        %v890 = vadd.f32 %v874, %v880
        %v891 = vadd.f32 %v875, %v883
        %v892 = vadd.f32 %v876, %v886
        %v893 = vadd.f32 %v877, %v889
        %vm894 = vcmask 7168
        %895 = vst.msk [vmem:[#allocation3] sm:$0xff] %vm894, %v890
        %896 = vst.msk [vmem:[#allocation3 + $0x8] sm:$0xff] %vm894, %v891
        %897 = vst.msk [vmem:[#allocation3 + $0x10] sm:$0xff] %vm894, %v892
        %898 = vst.msk [vmem:[#allocation3 + $0x18] sm:$0xff] %vm894, %v893
        %v899 = vld [vmem:[#allocation4] sm:$0xff]
        %v900 = vld [vmem:[#allocation4 + $0x8] sm:$0xff]
        %v901 = vld [vmem:[#allocation4 + $0x10] sm:$0xff]
        %v902 = vld [vmem:[#allocation4 + $0x18] sm:$0xff]
        %904 = vset.pattern.permute.xlu0 0
        %905 = vperm.xlu0 %904, %v831
        %v906 = vpop.permute.xlu0 %905
        %909 = vset.pattern.permute.xlu0 0
        %910 = vperm.xlu0 %909, %v833
        %v911 = vpop.permute.xlu0 %910
        %914 = vset.pattern.permute.xlu0 0
        %915 = vperm.xlu0 %914, %v835
        %v916 = vpop.permute.xlu0 %915
        %919 = vset.pattern.permute.xlu0 0
        %920 = vperm.xlu0 %919, %v837
        %v921 = vpop.permute.xlu0 %920
        %v923 = vmul.f32 %v906, %v899
        %v924 = vmul.f32 %v911, %v900
        %v925 = vmul.f32 %v916, %v901
        %v926 = vmul.f32 %v921, %v902
        %v927 = vpack.c.bf16 %v863, %v863
        %v928 = vpack.c.bf16 %v865, %v865
        %v929 = vpack.c.bf16 %v867, %v867
        %v930 = vpack.c.bf16 %v869, %v869
        %932 = vst [vmem:[#allocation1] ss:$4 sm:$0xff] %v667
        %s934 = scalar_lea.vmem [#allocation1], 1
        %935 = vst [vmem:[%s934] ss:$4 sm:$0xff] %v679
        %v936 = vld.sshfl [vmem:[#allocation1] sm:$0xff pattern:$0x73625140]
        %v938 = vsel %vm701, %v927, 0
        %vm940 = vcmask 1043456
        %v941 = vsel %vm940, %v936, 0
        %943 = vmatpush.bf16.msra.mxu0 0
        %944 = vmatpush.bf16.msra.mxu0 0
        %945 = vmatpush.bf16.msra.mxu0 0
        %946 = vmatpush.bf16.msra.mxu0 0
        %947 = vmatpush.bf16.msra.mxu0 0
        %948 = vmatpush.bf16.msra.mxu0 0
        %949 = vmatpush.bf16.msra.mxu0 0
        %950 = vmatpush.bf16.msra.mxu0 %v941
        %951 = vmatmul.bf16.gmra.mxu0 %v938
        %v952 = vpop.f32.mrf.mxu0
        %v953 = vadd.f32 0.0, %v952
        %v954 = vpop.f32.mrf.mxu0
        %955 = vdwg.mxu0
        %957 = vst [vmem:[#allocation1] ss:$4 sm:$0xff] %v670
        %s959 = scalar_lea.vmem [#allocation1], 1
        %960 = vst [vmem:[%s959] ss:$4 sm:$0xff] %v682
        %v961 = vld.sshfl [vmem:[#allocation1] sm:$0xff pattern:$0x73625140]
        %v963 = vsel %vm701, %v928, 0
        %v965 = vsel %vm940, %v961, 0
        %967 = vmatpush.bf16.msra.mxu0 0
        %968 = vmatpush.bf16.msra.mxu0 0
        %969 = vmatpush.bf16.msra.mxu0 0
        %970 = vmatpush.bf16.msra.mxu0 0
        %971 = vmatpush.bf16.msra.mxu0 0
        %972 = vmatpush.bf16.msra.mxu0 0
        %973 = vmatpush.bf16.msra.mxu0 0
        %974 = vmatpush.bf16.msra.mxu0 %v965
        %975 = vmatmul.bf16.gmra.mxu0 %v963
        %v976 = vpop.f32.mrf.mxu0
        %v977 = vadd.f32 0.0, %v976
        %v978 = vpop.f32.mrf.mxu0
        %979 = vdwg.mxu0
        %981 = vst [vmem:[#allocation1] ss:$4 sm:$0xff] %v673
        %s983 = scalar_lea.vmem [#allocation1], 1
        %984 = vst [vmem:[%s983] ss:$4 sm:$0xff] %v685
        %v985 = vld.sshfl [vmem:[#allocation1] sm:$0xff pattern:$0x73625140]
        %v987 = vsel %vm701, %v929, 0
        %v989 = vsel %vm940, %v985, 0
        %991 = vmatpush.bf16.msra.mxu0 0
        %992 = vmatpush.bf16.msra.mxu0 0
        %993 = vmatpush.bf16.msra.mxu0 0
        %994 = vmatpush.bf16.msra.mxu0 0
        %995 = vmatpush.bf16.msra.mxu0 0
        %996 = vmatpush.bf16.msra.mxu0 0
        %997 = vmatpush.bf16.msra.mxu0 0
        %998 = vmatpush.bf16.msra.mxu0 %v989
        %999 = vmatmul.bf16.gmra.mxu0 %v987
        %v1000 = vpop.f32.mrf.mxu0
        %v1001 = vadd.f32 0.0, %v1000
        %v1002 = vpop.f32.mrf.mxu0
        %1003 = vdwg.mxu0
        %1005 = vst [vmem:[#allocation1] ss:$4 sm:$0xff] %v676
        %s1007 = scalar_lea.vmem [#allocation1], 1
        %1008 = vst [vmem:[%s1007] ss:$4 sm:$0xff] %v688
        %v1009 = vld.sshfl [vmem:[#allocation1] sm:$0xff pattern:$0x73625140]
        %v1011 = vsel %vm701, %v930, 0
        %v1013 = vsel %vm940, %v1009, 0
        %1015 = vmatpush.bf16.msra.mxu0 0
        %1016 = vmatpush.bf16.msra.mxu0 0
        %1017 = vmatpush.bf16.msra.mxu0 0
        %1018 = vmatpush.bf16.msra.mxu0 0
        %1019 = vmatpush.bf16.msra.mxu0 0
        %1020 = vmatpush.bf16.msra.mxu0 0
        %1021 = vmatpush.bf16.msra.mxu0 0
        %1022 = vmatpush.bf16.msra.mxu0 %v1013
        %1023 = vmatmul.bf16.gmra.mxu0 %v1011
        %v1024 = vpop.f32.mrf.mxu0
        %v1025 = vadd.f32 0.0, %v1024
        %v1026 = vpop.f32.mrf.mxu0
        %1027 = vdwg.mxu0
        %v1028 = vadd.f32 %v923, %v953
        %v1029 = vadd.f32 %v924, %v977
        %v1030 = vadd.f32 %v925, %v1001
        %v1031 = vadd.f32 %v926, %v1025
        %1032 = vst.msk [vmem:[#allocation4] sm:$0xff] %vm701, %v1028
        %1033 = vst.msk [vmem:[#allocation4 + $0x8] sm:$0xff] %vm701, %v1029
        %1034 = vst.msk [vmem:[#allocation4 + $0x10] sm:$0xff] %vm701, %v1030
        %1035 = vst.msk [vmem:[#allocation4 + $0x18] sm:$0xff] %vm701, %v1031
        %1036 = vst.msk [vmem:[#allocation2] sm:$0xff] %vm894, %v822
        %1037 = vst.msk [vmem:[#allocation2 + $0x8] sm:$0xff] %vm894, %v823
        %1038 = vst.msk [vmem:[#allocation2 + $0x10] sm:$0xff] %vm894, %v824
        %1039 = vst.msk [vmem:[#allocation2 + $0x18] sm:$0xff] %vm894, %v825
        // Predicated region
        $region160: #{bert_encoder_forward.13} parent=142 // pred_check
          %p1040 = pneg %p478
        $region161: #{bert_encoder_forward.13} parent=142 // pred_check_branch
          %1042 = sbr.rel (%p1040) target = $region163
        $region162: #{bert_encoder_forward.13} parent=142 // pred_region
          %v1043 = vld [vmem:[#allocation4] sm:$0xff]
          %v1044 = vld [vmem:[#allocation4 + $0x8] sm:$0xff]
          %v1045 = vld [vmem:[#allocation4 + $0x10] sm:$0xff]
          %v1046 = vld [vmem:[#allocation4 + $0x18] sm:$0xff]
          %v1047 = vld [vmem:[#allocation3] sm:$0xff]
          %v1048 = vld [vmem:[#allocation3 + $0x8] sm:$0xff]
          %v1049 = vld [vmem:[#allocation3 + $0x10] sm:$0xff]
          %v1050 = vld [vmem:[#allocation3 + $0x18] sm:$0xff]
          %v1051 = vrcp.pop %v1047
          %v1052 = vrcp.pop %v1048
          %v1053 = vrcp.pop %v1049
          %v1054 = vrcp.pop %v1050
          %1056 = vset.pattern.permute.xlu0 0
          %1057 = vperm.xlu0 %1056, %v1051
          %v1058 = vpop.permute.xlu0 %1057
          %1061 = vset.pattern.permute.xlu0 0
          %1062 = vperm.xlu0 %1061, %v1052
          %v1063 = vpop.permute.xlu0 %1062
          %1066 = vset.pattern.permute.xlu0 0
          %1067 = vperm.xlu0 %1066, %v1053
          %v1068 = vpop.permute.xlu0 %1067
          %1071 = vset.pattern.permute.xlu0 0
          %1072 = vperm.xlu0 %1071, %v1054
          %v1073 = vpop.permute.xlu0 %1072
          %v1075 = vmul.f32 %v1043, %v1058
          %v1076 = vmul.f32 %v1044, %v1063
          %v1077 = vmul.f32 %v1045, %v1068
          %v1078 = vmul.f32 %v1046, %v1073
          %v1079 = vrot.slane %v1077, 4
          %vm1080 = vcmask 1047556
          %v1081 = vsel %vm1080, %v1079, %v1075
          %v1082 = vrot.slane %v1075, 4
          %v1083 = vsel %vm1080, %v1077, %v1082
          %v1085 = vunpack.c.l.s4 1983009808
          %v1086 = vunpack.c.0.s8 %v1085
          %v1087 = vperm.slane %v1081, %v1086
          %v1089 = vunpack.c.l.s4 1983009808
          %v1090 = vunpack.c.0.s8 %v1089
          %v1091 = vperm.slane %v1083, %v1090
          %v1092 = vrot.slane %v1078, 4
          %v1093 = vsel %vm1080, %v1092, %v1076
          %v1094 = vrot.slane %v1076, 4
          %v1095 = vsel %vm1080, %v1078, %v1094
          %v1097 = vunpack.c.l.s4 1983009808
          %v1098 = vunpack.c.0.s8 %v1097
          %v1099 = vperm.slane %v1093, %v1098
          %v1101 = vunpack.c.l.s4 1983009808
          %v1102 = vunpack.c.0.s8 %v1101
          %v1103 = vperm.slane %v1095, %v1102
          %v1104 = vrot.slane %v1099, 4
          %v1105 = vsel %vm1080, %v1104, %v1087
          %v1106 = vrot.slane %v1087, 4
          %v1107 = vsel %vm1080, %v1099, %v1106
          %v1109 = vunpack.c.l.s4 1934713408
          %v1110 = vunpack.c.0.s8 %v1109
          %v1111 = vperm.slane %v1105, %v1110
          %v1113 = vunpack.c.l.s4 1934713408
          %v1114 = vunpack.c.0.s8 %v1113
          %v1115 = vperm.slane %v1107, %v1114
          %v1116 = vrot.slane %v1103, 4
          %v1117 = vsel %vm1080, %v1116, %v1091
          %v1118 = vrot.slane %v1091, 4
          %v1119 = vsel %vm1080, %v1103, %v1118
          %v1121 = vunpack.c.l.s4 1934713408
          %v1122 = vunpack.c.0.s8 %v1121
          %v1123 = vperm.slane %v1117, %v1122
          %v1125 = vunpack.c.l.s4 1934713408
          %v1126 = vunpack.c.0.s8 %v1125
          %v1127 = vperm.slane %v1119, %v1126
          %v1128 = vrot.slane %v1111, 4
          %v1129 = vsel %vm1080, 0.0, %v1128
          %v1130 = vrot.slane %v1115, 4
          %v1131 = vsel %vm1080, 0.0, %v1130
          %v1132 = vrot.slane %v1123, 4
          %v1133 = vsel %vm1080, 0.0, %v1132
          %v1134 = vrot.slane %v1127, 4
          %v1135 = vsel %vm1080, 0.0, %v1134
          %v1136 = vpack.c.bf16 %v1111, %v1111
          %v1137 = vpack.c.bf16 %v1129, %v1129
          %v1138 = vpack.c.bf16 %v1115, %v1115
          %v1139 = vpack.c.bf16 %v1131, %v1131
          %v1140 = vpack.c.bf16 %v1123, %v1123
          %v1141 = vpack.c.bf16 %v1133, %v1133
          %v1142 = vpack.c.bf16 %v1127, %v1127
          %v1143 = vpack.c.bf16 %v1135, %v1135
          %vm1144 = vcmask 58368
          %1145 = vst.msk [vmem:[%s475] sm:$0x3] %vm1144, %v1136
          %1146 = vst.msk [vmem:[%s475 + $0x2] sm:$0x3] %vm1144, %v1137
          %1147 = vst.msk [vmem:[%s475 + $0x4] sm:$0x3] %vm1144, %v1138
          %1148 = vst.msk [vmem:[%s475 + $0x6] sm:$0x3] %vm1144, %v1139
          %1149 = vst.msk [vmem:[%s475 + $0x8] sm:$0x3] %vm1144, %v1140
          %1150 = vst.msk [vmem:[%s475 + $0xa] sm:$0x3] %vm1144, %v1141
          %1151 = vst.msk [vmem:[%s475 + $0xc] sm:$0x3] %vm1144, %v1142
          %1152 = vst.msk [vmem:[%s475 + $0xe] sm:$0x3] %vm1144, %v1143
        $region163: #{bert_encoder_forward.13} parent=142 // pred_fallthru
          _
        %s1153 = smul.u32 8, %s20
        %p1154 = scmp.lt.s32.totalorder %s19, 1
        %s1155 = scalar_select %p1154, %s19, 1
        %p1156 = scmp.lt.s32.totalorder %s1153, 7
        %s1157 = scalar_select %p1156, %s1153, 7
        %s1158 = smul.addr %s1155, 8
        %s1159 = sadd.s32 %s1157, %s1158
        %s1160 = smul.addr %s1159, 2
        %s1161 = scalar_lea.vmem %s3, %s1160
        // Predicated region
        $region164: #{bert_encoder_forward.13} parent=142 // pred_check
          %p1162 = pneg %p137
        $region165: #{bert_encoder_forward.13} parent=142 // pred_check_branch
          %1164 = sbr.rel (%p1162) target = $region167
        $region166: #{bert_encoder_forward.13} parent=142 // pred_region
          %s1165 = smul.u32 8, %s20
        $region167: #{bert_encoder_forward.13} parent=142 // pred_fallthru
          _
      $region143: #{bert_encoder_forward.13} parent=5 // pred_fallthru
        _
      %p1166 = scmp.le.s32.totalorder 2, %s9
      // Predicated region
      $region168: #{bert_encoder_forward.13} parent=5 // pred_check
        %p1167 = pneg %p1166
      $region169: #{bert_encoder_forward.13} parent=5 // pred_check_branch
        %1169 = sbr.rel (%p1167) target = $region171
      $region170: #{bert_encoder_forward.13} parent=5 // pred_region
        %s1170 = ssub.s32 %s9, 2
        // Predicated region
        $region172: #{bert_encoder_forward.13} parent=170 // pred_check
          %p1171 = pneg %p143
        $region173: #{bert_encoder_forward.13} parent=170 // pred_check_branch
          %1173 = sbr.rel (%p1171) target = $region175
        $region174: #{bert_encoder_forward.13} parent=170 // pred_region
          %s1174 = smul.u32 8, %s23
          %p1175 = scmp.lt.s32.totalorder %s22, 1
          %s1176 = scalar_select %p1175, %s22, 1
          %p1177 = scmp.lt.s32.totalorder %s1174, 7
          %s1178 = scalar_select %p1177, %s1174, 7
          %s1179 = smul.addr %s1176, 8
          %s1180 = sadd.s32 %s1178, %s1179
          %s1181 = smul.addr %s1180, 2
          %s1182 = scalar_lea.vmem %s3, %s1181
        $region175: #{bert_encoder_forward.13} parent=170 // pred_fallthru
          _
      $region171: #{bert_encoder_forward.13} parent=5 // pred_fallthru
        _
    $region6: #{bert_encoder_forward.13} parent=1 // loop_footer
      %s13 = sadd.s32 1, %s9
    $region7: #{bert_encoder_forward.13} parent=1 // loop_footer_branch
      %8 = sbr.rel target = $region3
    $region8: #{bert_encoder_forward.13} parent=1 // loop_exit
      _

// kernel: bert_encoder_forward.15
$region0: #{bert_encoder_forward.15}
  #allocation0 [shape = 'u32[]', space=smem, size = 0x4, offset = 0x4, fixed_abs, tag = 'smem constant byte address 0x4 - core index']
  #allocation1 [shape = 'u32[72,128]{1,0:T(1,128)}', space=vmem, size = 0x9000, scoped, tag = 'internal scratch']
  #allocation2 [shape = 'f32[16,64]{1,0:T(8,128)}', space=vmem, size = 0x2000, scoped, tag = 'scratch operand']
  %s0 = inlined_call_operand.vmem [shape: bf16[16,32], index: 0, kind: input, shape index: {}]
  %s1 = inlined_call_operand.vmem [shape: bf16[32,64], index: 1, kind: input, shape index: {}]
  %s2 = inlined_call_operand.vmem [shape: f32[1,64], index: 2, kind: input, shape index: {}]
  %s3 = inlined_call_operand.vmem [shape: bf16[16,64], index: 3, kind: output, shape index: {}]
  %s4 = sld [smem:[#allocation0]]
  $region30: #{bert_encoder_forward.15} parent=0
    _
  %s6 = ssub.s32 1, %s4
  %s7 = scalar_select 0, %s6, %s4
  // Predicated region
  $region2: #{bert_encoder_forward.15} parent=0 // pred_check
    _
  $region3: #{bert_encoder_forward.15} parent=0 // pred_check_branch
    %9 = sbr.rel (0) target = $region5
  $region4: #{bert_encoder_forward.15} parent=0 // pred_region
    _
  $region5: #{bert_encoder_forward.15} parent=0 // pred_fallthru
    _
  // Predicated region
  $region6: #{bert_encoder_forward.15} parent=0 // pred_check
    _
  $region7: #{bert_encoder_forward.15} parent=0 // pred_check_branch
    %11 = sbr.rel (0) target = $region9
  $region8: #{bert_encoder_forward.15} parent=0 // pred_region
    _
  $region9: #{bert_encoder_forward.15} parent=0 // pred_fallthru
    _
  // Predicated region
  $region10: #{bert_encoder_forward.15} parent=0 // pred_check
    _
  $region11: #{bert_encoder_forward.15} parent=0 // pred_check_branch
    %13 = sbr.rel (0) target = $region13
  $region12: #{bert_encoder_forward.15} parent=0 // pred_region
    _
  $region13: #{bert_encoder_forward.15} parent=0 // pred_fallthru
    _
  %p15 = scmp.eq.s32.totalorder 0, 0
  // Predicated region
  $region14: #{bert_encoder_forward.15} parent=0 // pred_check
    %p16 = pneg %p15
  $region15: #{bert_encoder_forward.15} parent=0 // pred_check_branch
    %18 = sbr.rel (%p16) target = $region17
  $region16: #{bert_encoder_forward.15} parent=0 // pred_region
    %vm19 = vcmask 523264
    %20 = vst.msk [vmem:[#allocation2] sm:$0xff] %vm19, 0.0
    %21 = vst.msk [vmem:[#allocation2 + $0x8] sm:$0xff] %vm19, 0.0
  $region17: #{bert_encoder_forward.15} parent=0 // pred_fallthru
    _
  %v22 = vld [vmem:[#allocation2] sm:$0xff]
  %v23 = vld [vmem:[#allocation2 + $0x8] sm:$0xff]
  %v24 = vld [vmem:[%s0] sm:$0xf]
  %v25 = vld [vmem:[%s0 + $0x4] sm:$0xf]
  %v26 = vld [vmem:[%s1] sm:$0xf]
  %v27 = vld [vmem:[%s1 + $0x4] sm:$0xf]
  %v28 = vld [vmem:[%s1 + $0x8] sm:$0xf]
  %v29 = vld [vmem:[%s1 + $0xc] sm:$0xf]
  %v32 = vunpack.c.l.b16 %v24
  %v33 = vunpack.c.l.b16 %v25
  %v34 = vpack.c.b16 %v33, %v32
  %v39 = vunpack.c.l.b16 %v26
  %v40 = vunpack.c.l.b16 %v27
  %v41 = vunpack.c.l.b16 %v28
  %v42 = vunpack.c.l.b16 %v29
  %v43 = vpack.c.b16 %v40, %v39
  %v44 = vpack.c.b16 %v42, %v41
  %vm47 = vcmask 261120
  %v49 = vsel %vm47, %v34, 0
  %51 = vmatpush.bf16.msra.mxu0 0
  %52 = vmatpush.bf16.msra.mxu0 0
  %53 = vmatpush.bf16.msra.mxu0 0
  %54 = vmatpush.bf16.msra.mxu0 0
  %55 = vmatpush.bf16.msra.mxu0 0
  %56 = vmatpush.bf16.msra.mxu0 0
  %57 = vmatpush.bf16.msra.mxu0 %v44
  %58 = vmatpush.bf16.msra.mxu0 %v43
  %59 = vmatmul.bf16.gmra.mxu0 %v49
  %v60 = vpop.f32.mrf.mxu0
  %v61 = vadd.f32 0.0, %v60
  %v62 = vpop.f32.mrf.mxu0
  %v63 = vadd.f32 0.0, %v62
  %64 = vdwg.mxu0
  %v65 = vadd.f32 %v22, %v61
  %v66 = vadd.f32 %v23, %v63
  %vm67 = vcmask 523264
  %68 = vst.msk [vmem:[#allocation2] sm:$0xff] %vm67, %v65
  %69 = vst.msk [vmem:[#allocation2 + $0x8] sm:$0xff] %vm67, %v66
  // Predicated region
  $region18: #{bert_encoder_forward.15} parent=0 // pred_check
    %p70 = pneg %p15
  $region19: #{bert_encoder_forward.15} parent=0 // pred_check_branch
    %72 = sbr.rel (%p70) target = $region21
  $region20: #{bert_encoder_forward.15} parent=0 // pred_region
    %v73 = vld [vmem:[#allocation2] sm:$0xff]
    %v74 = vld [vmem:[#allocation2 + $0x8] sm:$0xff]
    %v75 = vld [vmem:[%s2] sm:$0x1]
    %v77 = vperm.slane %v75, 0
    %v79 = vadd.f32 %v73, %v77
    %v80 = vadd.f32 %v74, %v77
    %v81 = vmul.f32 %v79, 0.5
    %v82 = vmul.f32 %v80, 0.5
    %v83 = vmul.f32 %v79, 0.044715
    %v84 = vmul.f32 %v80, 0.044715
    %v85 = vmul.f32 %v83, %v79
    %v86 = vmul.f32 %v84, %v80
    %v87 = vmul.f32 %v85, %v79
    %v88 = vmul.f32 %v86, %v80
    %v89 = vadd.f32 %v79, %v87
    %v90 = vadd.f32 %v80, %v88
    %v91 = vmul.f32 %v89, 0.7978846
    %v92 = vmul.f32 %v90, 0.7978846
    %v93 = vtanh.pop %v91
    %v94 = vtanh.pop %v92
    %v95 = vadd.f32 %v93, 1.0
    %v96 = vadd.f32 %v94, 1.0
    %v97 = vmul.f32 %v81, %v95
    %v98 = vmul.f32 %v82, %v96
    %v99 = vpack.c.bf16 %v97, %v97
    %v100 = vpack.c.bf16 %v98, %v98
    %vm101 = vcmask 519168
    %102 = vst.msk [vmem:[%s3] sm:$0xf] %vm101, %v99
    %103 = vst.msk [vmem:[%s3 + $0x4] sm:$0xf] %vm101, %v100
  $region21: #{bert_encoder_forward.15} parent=0 // pred_fallthru
    _
  // Predicated region
  $region22: #{bert_encoder_forward.15} parent=0 // pred_check
    _
  $region23: #{bert_encoder_forward.15} parent=0 // pred_check_branch
    %105 = sbr.rel (0) target = $region25
  $region24: #{bert_encoder_forward.15} parent=0 // pred_region
    _
  $region25: #{bert_encoder_forward.15} parent=0 // pred_fallthru
    _
  // Predicated region
  $region26: #{bert_encoder_forward.15} parent=0 // pred_check
    _
  $region27: #{bert_encoder_forward.15} parent=0 // pred_check_branch
    %107 = sbr.rel (0) target = $region29
  $region28: #{bert_encoder_forward.15} parent=0 // pred_region
    _
  $region29: #{bert_encoder_forward.15} parent=0 // pred_fallthru
    _

// kernel: bert_encoder_forward.16
$region0: #{bert_encoder_forward.16}
  #allocation0 [shape = 'u32[]', space=smem, size = 0x4, offset = 0x4, fixed_abs, tag = 'smem constant byte address 0x4 - core index']
  #allocation1 [shape = 'u32[72,128]{1,0:T(1,128)}', space=vmem, size = 0x9000, scoped, tag = 'internal scratch']
  #allocation2 [shape = 'f32[16,32]{1,0:T(8,128)}', space=vmem, size = 0x2000, scoped, tag = 'scratch operand']
  %s0 = inlined_call_operand.vmem [shape: bf16[16,64], index: 0, kind: input, shape index: {}]
  %s1 = inlined_call_operand.vmem [shape: bf16[64,32], index: 1, kind: input, shape index: {}]
  %s2 = inlined_call_operand.vmem [shape: f32[1,32], index: 2, kind: input, shape index: {}]
  %s3 = inlined_call_operand.vmem [shape: bf16[16,32], index: 3, kind: input, shape index: {}]
  %s4 = inlined_call_operand.vmem [shape: f32[1,32], index: 4, kind: input, shape index: {}]
  %s5 = inlined_call_operand.vmem [shape: f32[1,32], index: 5, kind: input, shape index: {}]
  %s6 = inlined_call_operand.vmem [shape: bf16[16,32], index: 6, kind: output, shape index: {}]
  %s7 = sld [smem:[#allocation0]]
  $region42: #{bert_encoder_forward.16} parent=0
    _
  %s9 = ssub.s32 1, %s7
  %s10 = scalar_select 0, %s9, %s7
  // Predicated region
  $region2: #{bert_encoder_forward.16} parent=0 // pred_check
    _
  $region3: #{bert_encoder_forward.16} parent=0 // pred_check_branch
    %12 = sbr.rel (0) target = $region5
  $region4: #{bert_encoder_forward.16} parent=0 // pred_region
    _
  $region5: #{bert_encoder_forward.16} parent=0 // pred_fallthru
    _
  // Predicated region
  $region6: #{bert_encoder_forward.16} parent=0 // pred_check
    _
  $region7: #{bert_encoder_forward.16} parent=0 // pred_check_branch
    %14 = sbr.rel (0) target = $region9
  $region8: #{bert_encoder_forward.16} parent=0 // pred_region
    _
  $region9: #{bert_encoder_forward.16} parent=0 // pred_fallthru
    _
  // Predicated region
  $region10: #{bert_encoder_forward.16} parent=0 // pred_check
    _
  $region11: #{bert_encoder_forward.16} parent=0 // pred_check_branch
    %16 = sbr.rel (0) target = $region13
  $region12: #{bert_encoder_forward.16} parent=0 // pred_region
    _
  $region13: #{bert_encoder_forward.16} parent=0 // pred_fallthru
    _
  // Predicated region
  $region14: #{bert_encoder_forward.16} parent=0 // pred_check
    _
  $region15: #{bert_encoder_forward.16} parent=0 // pred_check_branch
    %18 = sbr.rel (0) target = $region17
  $region16: #{bert_encoder_forward.16} parent=0 // pred_region
    _
  $region17: #{bert_encoder_forward.16} parent=0 // pred_fallthru
    _
  // Predicated region
  $region18: #{bert_encoder_forward.16} parent=0 // pred_check
    _
  $region19: #{bert_encoder_forward.16} parent=0 // pred_check_branch
    %20 = sbr.rel (0) target = $region21
  $region20: #{bert_encoder_forward.16} parent=0 // pred_region
    _
  $region21: #{bert_encoder_forward.16} parent=0 // pred_fallthru
    _
  // Predicated region
  $region22: #{bert_encoder_forward.16} parent=0 // pred_check
    _
  $region23: #{bert_encoder_forward.16} parent=0 // pred_check_branch
    %22 = sbr.rel (0) target = $region25
  $region24: #{bert_encoder_forward.16} parent=0 // pred_region
    _
  $region25: #{bert_encoder_forward.16} parent=0 // pred_fallthru
    _
  %p24 = scmp.eq.s32.totalorder 0, 0
  // Predicated region
  $region26: #{bert_encoder_forward.16} parent=0 // pred_check
    %p25 = pneg %p24
  $region27: #{bert_encoder_forward.16} parent=0 // pred_check_branch
    %27 = sbr.rel (%p25) target = $region29
  $region28: #{bert_encoder_forward.16} parent=0 // pred_region
    %vm28 = vcmask 261120
    %29 = vst.msk [vmem:[#allocation2] sm:$0xff] %vm28, 0.0
    %30 = vst.msk [vmem:[#allocation2 + $0x8] sm:$0xff] %vm28, 0.0
  $region29: #{bert_encoder_forward.16} parent=0 // pred_fallthru
    _
  %v31 = vld [vmem:[#allocation2] sm:$0xff]
  %v32 = vld [vmem:[#allocation2 + $0x8] sm:$0xff]
  %v33 = vld [vmem:[%s0] sm:$0xf]
  %v34 = vld [vmem:[%s0 + $0x4] sm:$0xf]
  %v35 = vld [vmem:[%s1] sm:$0xf]
  %v36 = vld [vmem:[%s1 + $0x4] sm:$0xf]
  %v37 = vld [vmem:[%s1 + $0x8] sm:$0xf]
  %v38 = vld [vmem:[%s1 + $0xc] sm:$0xf]
  %v39 = vld [vmem:[%s1 + $0x10] sm:$0xf]
  %v40 = vld [vmem:[%s1 + $0x14] sm:$0xf]
  %v41 = vld [vmem:[%s1 + $0x18] sm:$0xf]
  %v42 = vld [vmem:[%s1 + $0x1c] sm:$0xf]
  %v45 = vunpack.c.l.b16 %v33
  %v46 = vunpack.c.l.b16 %v34
  %v47 = vpack.c.b16 %v46, %v45
  %v56 = vunpack.c.l.b16 %v35
  %v57 = vunpack.c.l.b16 %v36
  %v58 = vunpack.c.l.b16 %v37
  %v59 = vunpack.c.l.b16 %v38
  %v60 = vunpack.c.l.b16 %v39
  %v61 = vunpack.c.l.b16 %v40
  %v62 = vunpack.c.l.b16 %v41
  %v63 = vunpack.c.l.b16 %v42
  %v64 = vpack.c.b16 %v57, %v56
  %v65 = vpack.c.b16 %v59, %v58
  %v66 = vpack.c.b16 %v61, %v60
  %v67 = vpack.c.b16 %v63, %v62
  %vm72 = vcmask 523264
  %v74 = vsel %vm72, %v47, 0
  %76 = vmatpush.bf16.msra.mxu0 0
  %77 = vmatpush.bf16.msra.mxu0 0
  %78 = vmatpush.bf16.msra.mxu0 0
  %79 = vmatpush.bf16.msra.mxu0 0
  %80 = vmatpush.bf16.msra.mxu0 %v67
  %81 = vmatpush.bf16.msra.mxu0 %v66
  %82 = vmatpush.bf16.msra.mxu0 %v65
  %83 = vmatpush.bf16.msra.mxu0 %v64
  %84 = vmatmul.bf16.gmra.mxu0 %v74
  %v85 = vpop.f32.mrf.mxu0
  %v86 = vadd.f32 0.0, %v85
  %v87 = vpop.f32.mrf.mxu0
  %v88 = vadd.f32 0.0, %v87
  %89 = vdwg.mxu0
  %v90 = vadd.f32 %v31, %v86
  %v91 = vadd.f32 %v32, %v88
  %vm92 = vcmask 261120
  %93 = vst.msk [vmem:[#allocation2] sm:$0xff] %vm92, %v90
  %94 = vst.msk [vmem:[#allocation2 + $0x8] sm:$0xff] %vm92, %v91
  // Predicated region
  $region30: #{bert_encoder_forward.16} parent=0 // pred_check
    %p95 = pneg %p24
  $region31: #{bert_encoder_forward.16} parent=0 // pred_check_branch
    %97 = sbr.rel (%p95) target = $region33
  $region32: #{bert_encoder_forward.16} parent=0 // pred_region
    %v98 = vld [vmem:[#allocation2] sm:$0xff]
    %v99 = vld [vmem:[#allocation2 + $0x8] sm:$0xff]
    %v100 = vld [vmem:[%s2] sm:$0x1]
    %v102 = vperm.slane %v100, 0
    %v104 = vadd.f32 %v98, %v102
    %v105 = vadd.f32 %v99, %v102
    %v106 = vld [vmem:[%s3] sm:$0xf]
    %v107 = vld [vmem:[%s3 + $0x4] sm:$0xf]
    %v108 = vunpack.c.l.bf16 %v106
    %v109 = vunpack.c.l.bf16 %v107
    %v110 = vadd.f32 %v104, %v108
    %v111 = vadd.f32 %v105, %v109
    %v112 = vld [vmem:[%s4] sm:$0x1]
    %v113 = vld [vmem:[%s5] sm:$0x1]
    %v114 = vsel %vm92, %v110, 0.0
    %115 = vadd.xlane.f32.xlu0 %v114
    %v116 = vpop.xlane.xlu0 %115
    %v117 = vsel %vm92, %v111, 0.0
    %118 = vadd.xlane.f32.xlu0 %v117
    %v119 = vpop.xlane.xlu0 %118
    %v120 = vrcp.pop 32.0
    %v121 = vmul.f32 32.0, %v120
    %v122 = vsub.f32 1.0, %v121
    %v123 = vmul.f32 %v120, %v122
    %v124 = vadd.f32 %v120, %v123
    %vm125 = vweird.f32 %v120
    %v126 = vsel %vm125, %v120, %v124
    %v127 = vmul.f32 %v116, %v126
    %v128 = vmul.f32 %v119, %v126
    %v129 = vsub.f32 %v110, %v127
    %v130 = vsub.f32 %v111, %v128
    %v131 = vmul.f32 %v129, %v129
    %v132 = vmul.f32 %v130, %v130
    %v133 = vsel %vm92, %v131, 0.0
    %134 = vadd.xlane.f32.xlu0 %v133
    %v135 = vpop.xlane.xlu0 %134
    %v136 = vsel %vm92, %v132, 0.0
    %137 = vadd.xlane.f32.xlu0 %v136
    %v138 = vpop.xlane.xlu0 %137
    %v139 = vmul.f32 %v135, %v126
    %v140 = vmul.f32 %v138, %v126
    %v141 = vadd.f32 %v139, 1e-05
    %v142 = vadd.f32 %v140, 1e-05
    %v143 = vrsqrt.pop %v141
    %v144 = vmul.f32 %v143, %v141
    %v145 = vmul.f32 %v144, %v143
    %v146 = vmul.f32 0.5, %v145
    %v147 = vsub.f32 1.5, %v146
    %v148 = vmul.f32 %v143, %v147
    %vm149 = vweird.f32 %v141
    %vm150 = vweird.f32 %v143
    %vm151 = vmor %vm149, %vm150
    %v152 = vsel %vm151, %v143, %v148
    %v153 = vrsqrt.pop %v142
    %v154 = vmul.f32 %v153, %v142
    %v155 = vmul.f32 %v154, %v153
    %v156 = vmul.f32 0.5, %v155
    %v157 = vsub.f32 1.5, %v156
    %v158 = vmul.f32 %v153, %v157
    %vm159 = vweird.f32 %v142
    %vm160 = vweird.f32 %v153
    %vm161 = vmor %vm159, %vm160
    %v162 = vsel %vm161, %v153, %v158
    %v163 = vmul.f32 %v129, %v152
    %v164 = vmul.f32 %v130, %v162
    %v166 = vperm.slane %v112, 0
    %v168 = vmul.f32 %v163, %v166
    %v169 = vmul.f32 %v164, %v166
    %v171 = vperm.slane %v113, 0
    %v173 = vadd.f32 %v168, %v171
    %v174 = vadd.f32 %v169, %v171
    %v175 = vpack.c.bf16 %v173, %v173
    %v176 = vpack.c.bf16 %v174, %v174
    %vm177 = vcmask 257024
    %178 = vst.msk [vmem:[%s6] sm:$0xf] %vm177, %v175
    %179 = vst.msk [vmem:[%s6 + $0x4] sm:$0xf] %vm177, %v176
  $region33: #{bert_encoder_forward.16} parent=0 // pred_fallthru
    _
  // Predicated region
  $region34: #{bert_encoder_forward.16} parent=0 // pred_check
    _
  $region35: #{bert_encoder_forward.16} parent=0 // pred_check_branch
    %181 = sbr.rel (0) target = $region37
  $region36: #{bert_encoder_forward.16} parent=0 // pred_region
    _
  $region37: #{bert_encoder_forward.16} parent=0 // pred_fallthru
    _
  // Predicated region
  $region38: #{bert_encoder_forward.16} parent=0 // pred_check
    _
  $region39: #{bert_encoder_forward.16} parent=0 // pred_check_branch
    %183 = sbr.rel (0) target = $region41
  $region40: #{bert_encoder_forward.16} parent=0 // pred_region
    _
  $region41: #{bert_encoder_forward.16} parent=0 // pred_fallthru
    _

</llo_original>
